<compile_context>
chip_gen: v7x
topology: tpu7x:2x2x1
jax: 0.10.0
libtpu: 0.0.40
codegen_flags: <defaults>
</compile_context>

<pallas_src>
import functools
import math

import jax
import jax.numpy as jnp
from jax.experimental import pallas as pl
from jax.experimental.pallas import tpu as pltpu


# ---------------------------------------------------------------------------
# Math helpers (shared by the kernels and the pure-JAX reference).
# ---------------------------------------------------------------------------
def _layer_norm(x, gamma, beta, eps=1e-5):
    mu = jnp.mean(x, axis=-1, keepdims=True)
    var = jnp.mean(jnp.square(x - mu), axis=-1, keepdims=True)
    return (x - mu) * jax.lax.rsqrt(var + eps) * gamma + beta


def _erf(x):
    # Abramowitz & Stegun 7.1.26 rational approximation (max abs err ~1.5e-7).
    # Used instead of jax.lax.erf so the kernel only needs exp/mul/where,
    # which are guaranteed to lower in Mosaic.
    a1, a2, a3, a4, a5 = (0.254829592, -0.284496736, 1.421413741,
                          -1.453152027, 1.061405429)
    p = 0.3275911
    ax = jnp.abs(x)
    t = 1.0 / (1.0 + p * ax)
    poly = ((((a5 * t + a4) * t + a3) * t + a2) * t + a1) * t
    y = 1.0 - poly * jnp.exp(-ax * ax)
    return jnp.where(x >= 0, y, -y)


def _gelu_exact(x):
    # erf-form GELU, matching PyTorch nn.GELU() (default exact variant).
    return 0.5 * x * (1.0 + _erf(x * (1.0 / math.sqrt(2.0))))


def _softmax_lastdim(x):
    m = jnp.max(x, axis=-1, keepdims=True)
    e = jnp.exp(x - m)
    return e / jnp.sum(e, axis=-1, keepdims=True)


def make_positional_encoding(embed_dim, max_len=512):
    """Deterministic sinusoidal table, identical to the PyTorch __init__."""
    pos = jnp.arange(0, max_len, dtype=jnp.float32)[:, None]
    i = jnp.arange(0, embed_dim, 2, dtype=jnp.float32)
    angle_rates = 1.0 / jnp.power(10000.0, i / embed_dim)
    angles = pos * angle_rates
    pe = jnp.zeros((max_len, embed_dim), dtype=jnp.float32)
    pe = pe.at[:, 0::2].set(jnp.sin(angles))
    pe = pe.at[:, 1::2].set(jnp.cos(angles))
    return pe


# ---------------------------------------------------------------------------
# Single fused kernel: embedding+PE (layer 0) -> transformer block `layer`
# -> final LN + vocab head (last layer).  Activation lives in VMEM scratch.
# ---------------------------------------------------------------------------
def _fused_forward_kernel(
        ids_ref, emb_ref, pe_ref,
        wqkv_ref, bqkv_ref, wo_ref, bo_ref,
        g1_ref, be1_ref, w1_ref, bf1_ref, w2_ref, bf2_ref, g2_ref, be2_ref,
        gf_ref, bef_ref, wh_ref, bh_ref,
        logits_ref,
        x_ref,                      # VMEM scratch: (local_batch*seq, D) f32
        *, num_heads, seq, local_batch, layer_axis):
    f32 = jnp.float32
    bf16 = jnp.bfloat16
    layer = pl.program_id(layer_axis)
    n_layers = pl.num_programs(layer_axis)

    rows = local_batch * seq
    d = emb_ref.shape[1]
    dh = d // num_heads
    scale = 1.0 / math.sqrt(dh)

    # ---- first step on the layer axis: token embedding (one-hot @ table on
    #      the MXU) + positional encoding, written to the resident scratch ----
    @pl.when(layer == 0)
    def _():
        ids = ids_ref[...]                                      # (rows, 1) i32
        vocab = emb_ref.shape[0]
        iota_v = jax.lax.broadcasted_iota(jnp.int32, (rows, vocab), 1)
        onehot = (ids == iota_v).astype(emb_ref.dtype)          # (rows, V) bf16
        tok = jnp.dot(onehot, emb_ref[...], preferred_element_type=f32)
        pe = pe_ref[...].astype(f32)                            # (seq, d)
        if local_batch > 1:                                     # broadcast over batch
            pe = jnp.concatenate([pe] * local_batch, axis=0)    # (rows, d)
        x_ref[...] = tok + pe

    # ----------------------- transformer block `layer` -----------------------
    x = x_ref[...]                                              # (rows, d) f32
    x_bf = x.astype(bf16)

    qkv = (jnp.dot(x_bf, wqkv_ref[0], preferred_element_type=f32)
           + bqkv_ref[0].astype(f32))                           # (rows, 3d) f32
    q = qkv[:, :d]
    k = qkv[:, d:2 * d]
    v = qkv[:, 2 * d:]

    # Causal mask (applied in f32; diagonal always unmasked).
    row_i = jax.lax.broadcasted_iota(jnp.int32, (seq, seq), 0)
    col_i = jax.lax.broadcasted_iota(jnp.int32, (seq, seq), 1)
    allowed = (col_i <= row_i)[None]                            # (1, T, T)

    def split_heads(m):
        # (rows, d) -> (local_batch*num_heads, seq, dh); every slice is
        # (8,128)-tile aligned (seq is a multiple of 8, dh == 128).
        parts = [m[b * seq:(b + 1) * seq, h * dh:(h + 1) * dh]
                 for b in range(local_batch) for h in range(num_heads)]
        return jnp.stack(parts, axis=0)

    qh = split_heads(q).astype(bf16)
    kh = split_heads(k).astype(bf16)
    vh = split_heads(v).astype(bf16)

    # Batched attention over all (batch, head) pairs in one einsum pair.
    s = jnp.einsum('nqd,nkd->nqk', qh, kh,
                   preferred_element_type=f32) * scale          # (n, T, T) f32
    s = jnp.where(allowed, s, f32(-1e30))
    p = _softmax_lastdim(s)                                     # f32
    ctx = jnp.einsum('nqk,nkd->nqd', p.astype(bf16), vh,
                     preferred_element_type=f32)                # (n, T, dh)

    # Output projection via row-blocked w_o (no lane-axis concat of heads).
    wo = wo_ref[0]                                              # (d, d) bf16
    per_batch = []
    for b in range(local_batch):
        acc = jnp.zeros((seq, d), f32)
        for h in range(num_heads):
            acc = acc + jnp.dot(ctx[b * num_heads + h].astype(bf16),
                                wo[h * dh:(h + 1) * dh, :],
                                preferred_element_type=f32)
        per_batch.append(acc)
    attn_out = (per_batch[0] if local_batch == 1
                else jnp.concatenate(per_batch, axis=0))        # (rows, d)
    attn_out = attn_out + bo_ref[0].astype(f32)

    x1 = _layer_norm(x + attn_out, g1_ref[0].astype(f32), be1_ref[0].astype(f32))

    h1 = (jnp.dot(x1.astype(bf16), w1_ref[0], preferred_element_type=f32)
          + bf1_ref[0].astype(f32))
    h1 = _gelu_exact(h1)
    ff = (jnp.dot(h1.astype(bf16), w2_ref[0], preferred_element_type=f32)
          + bf2_ref[0].astype(f32))
    x2 = _layer_norm(x1 + ff, g2_ref[0].astype(f32), be2_ref[0].astype(f32))

    x_ref[...] = x2                                             # stays in VMEM

    # ---- last step on the layer axis: final LayerNorm + vocab head ----
    @pl.when(layer == n_layers - 1)
    def _():
        xn = _layer_norm(x2, gf_ref[...].astype(f32), bef_ref[...].astype(f32))
        logits = (jnp.dot(xn.astype(bf16), wh_ref[...],
                          preferred_element_type=f32)
                  + bh_ref[...].astype(f32))
        logits_ref[...] = logits.astype(logits_ref.dtype)


# ---------------------------------------------------------------------------
# Wrapper: one pallas_call for the whole forward pass.
# ---------------------------------------------------------------------------
def char_transformer_forward(ids, params, pe_table, num_heads,
                             *, batch_parallel=False):
    b, t = ids.shape
    vocab, d = params["emb"].shape
    n_layers = params["w_qkv"].shape[0]
    ffn = params["w1"].shape[2]

    ids2d = ids.reshape(b * t, 1).astype(jnp.int32)
    pe = pe_table[:t].astype(jnp.float32)                       # (T, D), no tile

    local_batch = 1 if batch_parallel else b

    if batch_parallel:
        # grid = (batch, layers): "parallel" batch axis -> one sequence per
        # TensorCore on v7x megacore; layers stay sequential ("arbitrary").
        grid = (b, n_layers)
        semantics = ("parallel", "arbitrary")
        layer_axis = 1
        c2 = lambda bi, li: (0, 0)
        l3 = lambda bi, li: (li, 0, 0)
        ids_spec = pl.BlockSpec((t, 1), lambda bi, li: (bi, 0))
        out_spec = pl.BlockSpec((t, vocab), lambda bi, li: (bi, 0))
    else:
        # grid = (layers,): single-TC chips (v5e / v6e) get one fused,
        # batch-flattened block (M = B*T rows on the MXU) per layer.
        grid = (n_layers,)
        semantics = ("arbitrary",)
        layer_axis = 0
        c2 = lambda li: (0, 0)
        l3 = lambda li: (li, 0, 0)
        ids_spec = pl.BlockSpec((b * t, 1), c2)
        out_spec = pl.BlockSpec((b * t, vocab), c2)

    in_specs = [
        ids_spec,
        pl.BlockSpec((vocab, d), c2),          # embedding table
        pl.BlockSpec((t, d), c2),              # positional encoding slice
        pl.BlockSpec((1, d, 3 * d), l3),       # w_qkv[l]
        pl.BlockSpec((1, 1, 3 * d), l3),       # b_qkv[l]
        pl.BlockSpec((1, d, d), l3),           # w_o[l]
        pl.BlockSpec((1, 1, d), l3),           # b_o[l]
        pl.BlockSpec((1, 1, d), l3),           # g1[l]
        pl.BlockSpec((1, 1, d), l3),           # be1[l]
        pl.BlockSpec((1, d, ffn), l3),         # w1[l]
        pl.BlockSpec((1, 1, ffn), l3),         # bf1[l]
        pl.BlockSpec((1, ffn, d), l3),         # w2[l]
        pl.BlockSpec((1, 1, d), l3),           # bf2[l]
        pl.BlockSpec((1, 1, d), l3),           # g2[l]
        pl.BlockSpec((1, 1, d), l3),           # be2[l]
        pl.BlockSpec((1, d), c2),              # g_f
        pl.BlockSpec((1, d), c2),              # be_f
        pl.BlockSpec((d, vocab), c2),          # w_head
        pl.BlockSpec((1, vocab), c2),          # b_head
    ]

    kernel = functools.partial(
        _fused_forward_kernel, num_heads=num_heads, seq=t,
        local_batch=local_batch, layer_axis=layer_axis)

    logits2d = pl.pallas_call(
        kernel,
        out_shape=jax.ShapeDtypeStruct((b * t, vocab), jnp.float32),
        grid=grid,
        in_specs=in_specs,
        out_specs=out_spec,
        scratch_shapes=[pltpu.VMEM((local_batch * t, d), jnp.float32)],
        compiler_params=pltpu.CompilerParams(dimension_semantics=semantics),
    )(ids2d, params["emb"], pe,
      params["w_qkv"], params["b_qkv"], params["w_o"], params["b_o"],
      params["g1"], params["be1"], params["w1"], params["bf1"],
      params["w2"], params["bf2"], params["g2"], params["be2"],
      params["g_f"], params["be_f"], params["w_head"], params["b_head"])

    return logits2d.reshape(b, t, vocab)


# ---------------------------------------------------------------------------
# Pure-JAX reference (same math, same bf16-stored weights, f32 arithmetic).
# ---------------------------------------------------------------------------
def ref_forward(ids, params, pe_table, num_heads):
    b, t = ids.shape
    emb = params["emb"].astype(jnp.float32)
    vocab, d = emb.shape
    n_layers = params["w_qkv"].shape[0]
    dh = d // num_heads
    scale = 1.0 / math.sqrt(dh)

    x = emb[ids] + pe_table[:t][None].astype(jnp.float32)
    row = jnp.arange(t)[:, None]
    col = jnp.arange(t)[None, :]
    allowed = col <= row
    for l in range(n_layers):
        wqkv = params["w_qkv"][l].astype(jnp.float32)
        wo = params["w_o"][l].astype(jnp.float32)
        qkv = x @ wqkv + params["b_qkv"][l]
        q, k, v = qkv[..., :d], qkv[..., d:2 * d], qkv[..., 2 * d:]
        outs = []
        for h in range(num_heads):
            qh = q[..., h * dh:(h + 1) * dh]
            kh = k[..., h * dh:(h + 1) * dh]
            vh = v[..., h * dh:(h + 1) * dh]
            s = jnp.einsum('btd,bsd->bts', qh, kh) * scale
            s = jnp.where(allowed[None], s, jnp.float32(-1e30))
            p = _softmax_lastdim(s)
            outs.append(jnp.einsum('bts,bsd->btd', p, vh))
        ctx = jnp.concatenate(outs, axis=-1)
        attn_out = ctx @ wo + params["b_o"][l]
        x = _layer_norm(x + attn_out, params["g1"][l], params["be1"][l])
        h1 = _gelu_exact(x @ params["w1"][l].astype(jnp.float32) + params["bf1"][l])
        ff = h1 @ params["w2"][l].astype(jnp.float32) + params["bf2"][l]
        x = _layer_norm(x + ff, params["g2"][l], params["be2"][l])
    xn = _layer_norm(x, params["g_f"], params["be_f"])
    return xn @ params["w_head"].astype(jnp.float32) + params["b_head"]


# ---------------------------------------------------------------------------
# Deterministic parameters: bf16 matmul weights, f32 biases / LayerNorm params.
# ---------------------------------------------------------------------------
def init_params(key, vocab, d, f, layers):
    ks = jax.random.split(key, 10)

    def w(k, shape, std=0.02):
        return (jax.random.normal(k, shape, dtype=jnp.float32) * std).astype(
            jnp.bfloat16)

    def bias(k, shape, std=0.02):
        return jax.random.normal(k, shape, dtype=jnp.float32) * std

    return {
        "emb": jax.random.normal(ks[0], (vocab, d),
                                 dtype=jnp.float32).astype(jnp.bfloat16),
        "w_qkv": w(ks[1], (layers, d, 3 * d)),
        "b_qkv": bias(ks[2], (layers, 1, 3 * d)),
        "w_o": w(ks[3], (layers, d, d)),
        "b_o": bias(ks[4], (layers, 1, d)),
        "g1": jnp.ones((layers, 1, d), jnp.float32),
        "be1": jnp.zeros((layers, 1, d), jnp.float32),
        "w1": w(ks[5], (layers, d, f)),
        "bf1": bias(ks[6], (layers, 1, f)),
        "w2": w(ks[7], (layers, f, d)),
        "bf2": bias(ks[8], (layers, 1, d)),
        "g2": jnp.ones((layers, 1, d), jnp.float32),
        "be2": jnp.zeros((layers, 1, d), jnp.float32),
        "g_f": jnp.ones((1, d), jnp.float32),
        "be_f": jnp.zeros((1, d), jnp.float32),
        "w_head": w(ks[9], (d, vocab)),
        "b_head": jnp.zeros((1, vocab), jnp.float32),
    }


if __name__ == "__main__":
    # Small, lane-friendly CharTransformer config:
    # batch=2, seq=16, embed_dim=256, heads=2 (head_dim=128), layers=2, vocab=128.
    B, T = 2, 16
    VOCAB, D, H, LAYERS = 128, 256, 2, 2
    FFN = 4 * D
    MAX_LEN = 64

    key = jax.random.PRNGKey(0)
    k_ids, k_par = jax.random.split(key)
    ids = jax.random.randint(k_ids, (B, T), 0, VOCAB, dtype=jnp.int32)
    params = init_params(k_par, VOCAB, D, FFN, LAYERS)
    pe = make_positional_encoding(D, MAX_LEN)

    # Fully-fused forward, batch flattened into the MXU M-dim (best on
    # single-TC v5e / v6e).
    logits = char_transformer_forward(ids, params, pe, num_heads=H,
                                      batch_parallel=False)
    logits = jax.block_until_ready(logits)
    assert logits.shape == (B, T, VOCAB)

    # Same fused kernel with a leading "parallel" batch grid axis (one
    # sequence per TensorCore on v7x megacore).
    logits_mc = char_transformer_forward(ids, params, pe, num_heads=H,
                                         batch_parallel=True)
    logits_mc = jax.block_until_ready(logits_mc)
    assert logits_mc.shape == (B, T, VOCAB)

    with jax.default_matmul_precision("highest"):
        ref = jax.block_until_ready(ref_forward(ids, params, pe, num_heads=H))

    err1 = float(jnp.max(jnp.abs(logits - ref)))
    err2 = float(jnp.max(jnp.abs(logits_mc - ref)))
    assert jnp.allclose(logits, ref, atol=5e-2, rtol=5e-2), (
        f"flattened-batch mismatch vs reference, max abs err {err1}")
    assert jnp.allclose(logits_mc, ref, atol=5e-2, rtol=5e-2), (
        f"batch-parallel mismatch vs reference, max abs err {err2}")

    print("KERNEL_OK")
</pallas_src>

<mosaic_0001>
module attributes {stable_mosaic.version = 11 : i64} {
  func.func @_fused_forward_kernel(%arg0: i32, %arg1: memref<32x1xi32, #tpu.memory_space<vmem>>, %arg2: memref<128x256xbf16, #tpu.memory_space<vmem>>, %arg3: memref<16x256xf32, #tpu.memory_space<vmem>>, %arg4: memref<1x256x768xbf16, #tpu.memory_space<vmem>>, %arg5: memref<1x1x768xf32, #tpu.memory_space<vmem>>, %arg6: memref<1x256x256xbf16, #tpu.memory_space<vmem>>, %arg7: memref<1x1x256xf32, #tpu.memory_space<vmem>>, %arg8: memref<1x1x256xf32, #tpu.memory_space<vmem>>, %arg9: memref<1x1x256xf32, #tpu.memory_space<vmem>>, %arg10: memref<1x256x1024xbf16, #tpu.memory_space<vmem>>, %arg11: memref<1x1x1024xf32, #tpu.memory_space<vmem>>, %arg12: memref<1x1024x256xbf16, #tpu.memory_space<vmem>>, %arg13: memref<1x1x256xf32, #tpu.memory_space<vmem>>, %arg14: memref<1x1x256xf32, #tpu.memory_space<vmem>>, %arg15: memref<1x1x256xf32, #tpu.memory_space<vmem>>, %arg16: memref<1x256xf32, #tpu.memory_space<vmem>>, %arg17: memref<1x256xf32, #tpu.memory_space<vmem>>, %arg18: memref<256x128xbf16, #tpu.memory_space<vmem>>, %arg19: memref<1x128xf32, #tpu.memory_space<vmem>>, %arg20: memref<32x128xf32, #tpu.memory_space<vmem>>, %arg21: memref<32x256xf32, #tpu.memory_space<vmem>>) attributes {dimension_semantics = [#tpu.dimension_semantics<arbitrary>], iteration_bounds = array<i64: 2>, scalar_prefetch = 0 : i64, scratch_operands = 1 : i64, tpu.core_type = #tpu.core_type<tc>, window_params = [{pipeline_mode = #tpu.pipeline_mode<synchronous>, transform_indices = @transform_0, window_bounds = array<i64: 32, 1>}, {pipeline_mode = #tpu.pipeline_mode<synchronous>, transform_indices = @transform_1, window_bounds = array<i64: 128, 256>}, {pipeline_mode = #tpu.pipeline_mode<synchronous>, transform_indices = @transform_2, window_bounds = array<i64: 16, 256>}, {transform_indices = @transform_3, window_bounds = array<i64: 1, 256, 768>}, {transform_indices = @transform_4, window_bounds = array<i64: 1, 1, 768>}, {transform_indices = @transform_5, window_bounds = array<i64: 1, 256, 256>}, {transform_indices = @transform_6, window_bounds = array<i64: 1, 1, 256>}, {transform_indices = @transform_7, window_bounds = array<i64: 1, 1, 256>}, {transform_indices = @transform_8, window_bounds = array<i64: 1, 1, 256>}, {transform_indices = @transform_9, window_bounds = array<i64: 1, 256, 1024>}, {transform_indices = @transform_10, window_bounds = array<i64: 1, 1, 1024>}, {transform_indices = @transform_11, window_bounds = array<i64: 1, 1024, 256>}, {transform_indices = @transform_12, window_bounds = array<i64: 1, 1, 256>}, {transform_indices = @transform_13, window_bounds = array<i64: 1, 1, 256>}, {transform_indices = @transform_14, window_bounds = array<i64: 1, 1, 256>}, {pipeline_mode = #tpu.pipeline_mode<synchronous>, transform_indices = @transform_15, window_bounds = array<i64: 1, 256>}, {pipeline_mode = #tpu.pipeline_mode<synchronous>, transform_indices = @transform_16, window_bounds = array<i64: 1, 256>}, {pipeline_mode = #tpu.pipeline_mode<synchronous>, transform_indices = @transform_17, window_bounds = array<i64: 256, 128>}, {pipeline_mode = #tpu.pipeline_mode<synchronous>, transform_indices = @transform_18, window_bounds = array<i64: 1, 128>}, {pipeline_mode = #tpu.pipeline_mode<synchronous>, transform_indices = @transform_19, window_bounds = array<i64: 32, 128>}]} {
    %c0_i32 = arith.constant 0 : i32
    %0 = arith.cmpi eq, %arg0, %c0_i32 : i32
    %1 = arith.extui %0 : i1 to i32
    %c0_i32_0 = arith.constant 0 : i32
    %2 = arith.cmpi ne, %1, %c0_i32_0 : i32
    scf.if %2 {
      %c0_80 = arith.constant 0 : index
      %c0_81 = arith.constant 0 : index
      %214 = vector.load %arg1[%c0_80, %c0_81] : memref<32x1xi32, #tpu.memory_space<vmem>>, vector<32x1xi32>
      %215 = tpu.iota {dimensions = array<i32: 1>} : vector<32x128xi32>
      %216 = vector.broadcast %214 : vector<32x1xi32> to vector<32x128xi32>
      %217 = arith.cmpi eq, %216, %215 : vector<32x128xi32>
      %218 = arith.extui %217 : vector<32x128xi1> to vector<32x128xi32>
      %219 = arith.sitofp %218 : vector<32x128xi32> to vector<32x128xf32>
      %220 = arith.truncf %219 : vector<32x128xf32> to vector<32x128xbf16>
      %c0_82 = arith.constant 0 : index
      %c0_83 = arith.constant 0 : index
      %221 = vector.load %arg2[%c0_82, %c0_83] : memref<128x256xbf16, #tpu.memory_space<vmem>>, vector<128x256xbf16>
      %cst_84 = arith.constant dense<0.000000e+00> : vector<32x256xf32>
      %222 = tpu.matmul %220, %221, %cst_84 {dimension_numbers = #tpu.dot_dimension_numbers<[1], [0], [0], [1], [0, 0, 1, 1], [], []>} : vector<32x128xbf16>, vector<128x256xbf16>, vector<32x256xf32> -> vector<32x256xf32>
      %c0_85 = arith.constant 0 : index
      %c0_86 = arith.constant 0 : index
      %223 = vector.load %arg3[%c0_85, %c0_86] : memref<16x256xf32, #tpu.memory_space<vmem>>, vector<16x256xf32>
      %224 = tpu.concatenate %223, %223 in 0 : vector<16x256xf32>, vector<16x256xf32> -> vector<32x256xf32>
      %225 = arith.addf %222, %224 : vector<32x256xf32>
      %c0_87 = arith.constant 0 : index
      %c0_88 = arith.constant 0 : index
      %226 = vector.load %arg21[%c0_87, %c0_88] : memref<32x256xf32, #tpu.memory_space<vmem>>, vector<32x256xf32>
      tpu.vector_store %arg21[%c0_87, %c0_88], %225 {strides = array<i32>} : memref<32x256xf32, #tpu.memory_space<vmem>>, vector<32x256xf32>,
    } else {
    }
    %c0 = arith.constant 0 : index
    %c0_1 = arith.constant 0 : index
    %3 = vector.load %arg21[%c0, %c0_1] : memref<32x256xf32, #tpu.memory_space<vmem>>, vector<32x256xf32>
    %4 = arith.truncf %3 : vector<32x256xf32> to vector<32x256xbf16>
    %c0_2 = arith.constant 0 : index
    %c0_3 = arith.constant 0 : index
    %c0_4 = arith.constant 0 : index
    %5 = vector.load %arg4[%c0_2, %c0_3, %c0_4] : memref<1x256x768xbf16, #tpu.memory_space<vmem>>, vector<1x256x768xbf16>
    %6 = vector.shape_cast %5 : vector<1x256x768xbf16> to vector<256x768xbf16>
    %cst = arith.constant dense<0.000000e+00> : vector<32x768xf32>
    %7 = tpu.matmul %4, %6, %cst {dimension_numbers = #tpu.dot_dimension_numbers<[1], [0], [0], [1], [0, 0, 1, 1], [], []>} : vector<32x256xbf16>, vector<256x768xbf16>, vector<32x768xf32> -> vector<32x768xf32>
    %c0_5 = arith.constant 0 : index
    %c0_6 = arith.constant 0 : index
    %c0_7 = arith.constant 0 : index
    %8 = vector.load %arg5[%c0_5, %c0_6, %c0_7] : memref<1x1x768xf32, #tpu.memory_space<vmem>>, vector<1x1x768xf32>
    %9 = vector.shape_cast %8 : vector<1x1x768xf32> to vector<1x768xf32>
    %10 = vector.broadcast %9 : vector<1x768xf32> to vector<32x768xf32>
    %11 = arith.addf %7, %10 : vector<32x768xf32>
    %12 = vector.extract_strided_slice %11 {offsets = [0, 0], sizes = [32, 256], strides = [1, 1]} : vector<32x768xf32> to vector<32x256xf32>
    %13 = vector.extract_strided_slice %11 {offsets = [0, 256], sizes = [32, 256], strides = [1, 1]} : vector<32x768xf32> to vector<32x256xf32>
    %14 = vector.extract_strided_slice %11 {offsets = [0, 512], sizes = [32, 256], strides = [1, 1]} : vector<32x768xf32> to vector<32x256xf32>
    %15 = tpu.iota {dimensions = array<i32: 0>} : vector<16x16xi32>
    %16 = tpu.iota {dimensions = array<i32: 1>} : vector<16x16xi32>
    %17 = arith.cmpi sle, %16, %15 : vector<16x16xi32>
    %18 = vector.shape_cast %17 : vector<16x16xi1> to vector<1x16x16xi1>
    %19 = vector.extract_strided_slice %12 {offsets = [0, 0], sizes = [16, 128], strides = [1, 1]} : vector<32x256xf32> to vector<16x128xf32>
    %20 = vector.extract_strided_slice %12 {offsets = [0, 128], sizes = [16, 128], strides = [1, 1]} : vector<32x256xf32> to vector<16x128xf32>
    %21 = vector.extract_strided_slice %12 {offsets = [16, 0], sizes = [16, 128], strides = [1, 1]} : vector<32x256xf32> to vector<16x128xf32>
    %22 = vector.extract_strided_slice %12 {offsets = [16, 128], sizes = [16, 128], strides = [1, 1]} : vector<32x256xf32> to vector<16x128xf32>
    %23 = vector.shape_cast %19 : vector<16x128xf32> to vector<1x16x128xf32>
    %24 = vector.shape_cast %20 : vector<16x128xf32> to vector<1x16x128xf32>
    %25 = vector.shape_cast %21 : vector<16x128xf32> to vector<1x16x128xf32>
    %26 = vector.shape_cast %22 : vector<16x128xf32> to vector<1x16x128xf32>
    %27 = tpu.concatenate %23, %24, %25, %26 in 0 : vector<1x16x128xf32>, vector<1x16x128xf32>, vector<1x16x128xf32>, vector<1x16x128xf32> -> vector<4x16x128xf32>
    %28 = arith.truncf %27 : vector<4x16x128xf32> to vector<4x16x128xbf16>
    %29 = vector.extract_strided_slice %13 {offsets = [0, 0], sizes = [16, 128], strides = [1, 1]} : vector<32x256xf32> to vector<16x128xf32>
    %30 = vector.extract_strided_slice %13 {offsets = [0, 128], sizes = [16, 128], strides = [1, 1]} : vector<32x256xf32> to vector<16x128xf32>
    %31 = vector.extract_strided_slice %13 {offsets = [16, 0], sizes = [16, 128], strides = [1, 1]} : vector<32x256xf32> to vector<16x128xf32>
    %32 = vector.extract_strided_slice %13 {offsets = [16, 128], sizes = [16, 128], strides = [1, 1]} : vector<32x256xf32> to vector<16x128xf32>
    %33 = vector.shape_cast %29 : vector<16x128xf32> to vector<1x16x128xf32>
    %34 = vector.shape_cast %30 : vector<16x128xf32> to vector<1x16x128xf32>
    %35 = vector.shape_cast %31 : vector<16x128xf32> to vector<1x16x128xf32>
    %36 = vector.shape_cast %32 : vector<16x128xf32> to vector<1x16x128xf32>
    %37 = tpu.concatenate %33, %34, %35, %36 in 0 : vector<1x16x128xf32>, vector<1x16x128xf32>, vector<1x16x128xf32>, vector<1x16x128xf32> -> vector<4x16x128xf32>
    %38 = arith.truncf %37 : vector<4x16x128xf32> to vector<4x16x128xbf16>
    %39 = vector.extract_strided_slice %14 {offsets = [0, 0], sizes = [16, 128], strides = [1, 1]} : vector<32x256xf32> to vector<16x128xf32>
    %40 = vector.extract_strided_slice %14 {offsets = [0, 128], sizes = [16, 128], strides = [1, 1]} : vector<32x256xf32> to vector<16x128xf32>
    %41 = vector.extract_strided_slice %14 {offsets = [16, 0], sizes = [16, 128], strides = [1, 1]} : vector<32x256xf32> to vector<16x128xf32>
    %42 = vector.extract_strided_slice %14 {offsets = [16, 128], sizes = [16, 128], strides = [1, 1]} : vector<32x256xf32> to vector<16x128xf32>
    %43 = vector.shape_cast %39 : vector<16x128xf32> to vector<1x16x128xf32>
    %44 = vector.shape_cast %40 : vector<16x128xf32> to vector<1x16x128xf32>
    %45 = vector.shape_cast %41 : vector<16x128xf32> to vector<1x16x128xf32>
    %46 = vector.shape_cast %42 : vector<16x128xf32> to vector<1x16x128xf32>
    %47 = tpu.concatenate %43, %44, %45, %46 in 0 : vector<1x16x128xf32>, vector<1x16x128xf32>, vector<1x16x128xf32>, vector<1x16x128xf32> -> vector<4x16x128xf32>
    %48 = arith.truncf %47 : vector<4x16x128xf32> to vector<4x16x128xbf16>
    "tpu.trace_start"() <{level = 10 : i32, message = "nqd,nkd->nqk"}> : () -> ()
    %cst_8 = arith.constant dense<0.000000e+00> : vector<4x16x16xf32>
    %49 = tpu.matmul %28, %38, %cst_8 {dimension_numbers = #tpu.dot_dimension_numbers<[2], [2], [1], [1], [0, 0, 0, 1, 1, 1], [0], [0]>} : vector<4x16x128xbf16>, vector<4x16x128xbf16>, vector<4x16x16xf32> -> vector<4x16x16xf32>
    "tpu.trace_stop"() : () -> ()
    %cst_9 = arith.constant 0.0883883461 : f32
    %50 = vector.broadcast %cst_9 : f32 to vector<4x16x16xf32>
    %51 = arith.mulf %49, %50 : vector<4x16x16xf32>
    %cst_10 = arith.constant -1.000000e+30 : f32
    %52 = vector.shape_cast %18 : vector<1x16x16xi1> to vector<1x16x16xi1>
    %53 = vector.broadcast %52 : vector<1x16x16xi1> to vector<4x16x16xi1>
    %54 = vector.broadcast %cst_10 : f32 to vector<4x16x16xf32>
    %55 = arith.select %53, %51, %54 : vector<4x16x16xi1>, vector<4x16x16xf32>
    %cst_11 = arith.constant dense<0xFF800000> : vector<4x16xf32>
    %56 = vector.multi_reduction <maximumf>, %55, %cst_11 [2] : vector<4x16x16xf32> to vector<4x16xf32>
    %57 = vector.shape_cast %56 : vector<4x16xf32> to vector<4x16x1xf32>
    %58 = vector.broadcast %57 : vector<4x16x1xf32> to vector<4x16x16xf32>
    %59 = arith.subf %55, %58 : vector<4x16x16xf32>
    %60 = math.exp %59 : vector<4x16x16xf32>
    %cst_12 = arith.constant dense<0.000000e+00> : vector<4x16xf32>
    %61 = vector.multi_reduction <add>, %60, %cst_12 [2] : vector<4x16x16xf32> to vector<4x16xf32>
    %62 = vector.shape_cast %61 : vector<4x16xf32> to vector<4x16x1xf32>
    %63 = vector.broadcast %62 : vector<4x16x1xf32> to vector<4x16x16xf32>
    %64 = arith.divf %60, %63 : vector<4x16x16xf32>
    %65 = arith.truncf %64 : vector<4x16x16xf32> to vector<4x16x16xbf16>
    "tpu.trace_start"() <{level = 10 : i32, message = "nqk,nkd->nqd"}> : () -> ()
    %cst_13 = arith.constant dense<0.000000e+00> : vector<4x16x128xf32>
    %66 = tpu.matmul %65, %48, %cst_13 {dimension_numbers = #tpu.dot_dimension_numbers<[2], [1], [1], [2], [0, 0, 0, 1, 1, 2], [0], [0]>} : vector<4x16x16xbf16>, vector<4x16x128xbf16>, vector<4x16x128xf32> -> vector<4x16x128xf32>
    "tpu.trace_stop"() : () -> ()
    %c0_14 = arith.constant 0 : index
    %c0_15 = arith.constant 0 : index
    %c0_16 = arith.constant 0 : index
    %67 = vector.load %arg6[%c0_14, %c0_15, %c0_16] : memref<1x256x256xbf16, #tpu.memory_space<vmem>>, vector<1x256x256xbf16>
    %68 = vector.shape_cast %67 : vector<1x256x256xbf16> to vector<256x256xbf16>
    %cst_17 = arith.constant 0.000000e+00 : f32
    %69 = vector.broadcast %cst_17 : f32 to vector<16x256xf32>
    %70 = vector.extract_strided_slice %66 {offsets = [0, 0, 0], sizes = [1, 16, 128], strides = [1, 1, 1]} : vector<4x16x128xf32> to vector<1x16x128xf32>
    %71 = vector.shape_cast %70 : vector<1x16x128xf32> to vector<16x128xf32>
    %72 = arith.truncf %71 : vector<16x128xf32> to vector<16x128xbf16>
    %73 = vector.extract_strided_slice %68 {offsets = [0, 0], sizes = [128, 256], strides = [1, 1]} : vector<256x256xbf16> to vector<128x256xbf16>
    %cst_18 = arith.constant dense<0.000000e+00> : vector<16x256xf32>
    %74 = tpu.matmul %72, %73, %cst_18 {dimension_numbers = #tpu.dot_dimension_numbers<[1], [0], [0], [1], [0, 0, 1, 1], [], []>} : vector<16x128xbf16>, vector<128x256xbf16>, vector<16x256xf32> -> vector<16x256xf32>
    %75 = arith.addf %69, %74 : vector<16x256xf32>
    %76 = vector.extract_strided_slice %66 {offsets = [1, 0, 0], sizes = [1, 16, 128], strides = [1, 1, 1]} : vector<4x16x128xf32> to vector<1x16x128xf32>
    %77 = vector.shape_cast %76 : vector<1x16x128xf32> to vector<16x128xf32>
    %78 = arith.truncf %77 : vector<16x128xf32> to vector<16x128xbf16>
    %79 = vector.extract_strided_slice %68 {offsets = [128, 0], sizes = [128, 256], strides = [1, 1]} : vector<256x256xbf16> to vector<128x256xbf16>
    %cst_19 = arith.constant dense<0.000000e+00> : vector<16x256xf32>
    %80 = tpu.matmul %78, %79, %cst_19 {dimension_numbers = #tpu.dot_dimension_numbers<[1], [0], [0], [1], [0, 0, 1, 1], [], []>} : vector<16x128xbf16>, vector<128x256xbf16>, vector<16x256xf32> -> vector<16x256xf32>
    %81 = arith.addf %75, %80 : vector<16x256xf32>
    %cst_20 = arith.constant 0.000000e+00 : f32
    %82 = vector.broadcast %cst_20 : f32 to vector<16x256xf32>
    %83 = vector.extract_strided_slice %66 {offsets = [2, 0, 0], sizes = [1, 16, 128], strides = [1, 1, 1]} : vector<4x16x128xf32> to vector<1x16x128xf32>
    %84 = vector.shape_cast %83 : vector<1x16x128xf32> to vector<16x128xf32>
    %85 = arith.truncf %84 : vector<16x128xf32> to vector<16x128xbf16>
    %86 = vector.extract_strided_slice %68 {offsets = [0, 0], sizes = [128, 256], strides = [1, 1]} : vector<256x256xbf16> to vector<128x256xbf16>
    %cst_21 = arith.constant dense<0.000000e+00> : vector<16x256xf32>
    %87 = tpu.matmul %85, %86, %cst_21 {dimension_numbers = #tpu.dot_dimension_numbers<[1], [0], [0], [1], [0, 0, 1, 1], [], []>} : vector<16x128xbf16>, vector<128x256xbf16>, vector<16x256xf32> -> vector<16x256xf32>
    %88 = arith.addf %82, %87 : vector<16x256xf32>
    %89 = vector.extract_strided_slice %66 {offsets = [3, 0, 0], sizes = [1, 16, 128], strides = [1, 1, 1]} : vector<4x16x128xf32> to vector<1x16x128xf32>
    %90 = vector.shape_cast %89 : vector<1x16x128xf32> to vector<16x128xf32>
    %91 = arith.truncf %90 : vector<16x128xf32> to vector<16x128xbf16>
    %92 = vector.extract_strided_slice %68 {offsets = [128, 0], sizes = [128, 256], strides = [1, 1]} : vector<256x256xbf16> to vector<128x256xbf16>
    %cst_22 = arith.constant dense<0.000000e+00> : vector<16x256xf32>
    %93 = tpu.matmul %91, %92, %cst_22 {dimension_numbers = #tpu.dot_dimension_numbers<[1], [0], [0], [1], [0, 0, 1, 1], [], []>} : vector<16x128xbf16>, vector<128x256xbf16>, vector<16x256xf32> -> vector<16x256xf32>
    %94 = arith.addf %88, %93 : vector<16x256xf32>
    %95 = tpu.concatenate %81, %94 in 0 : vector<16x256xf32>, vector<16x256xf32> -> vector<32x256xf32>
    %c0_23 = arith.constant 0 : index
    %c0_24 = arith.constant 0 : index
    %c0_25 = arith.constant 0 : index
    %96 = vector.load %arg7[%c0_23, %c0_24, %c0_25] : memref<1x1x256xf32, #tpu.memory_space<vmem>>, vector<1x1x256xf32>
    %97 = vector.shape_cast %96 : vector<1x1x256xf32> to vector<1x256xf32>
    %98 = vector.broadcast %97 : vector<1x256xf32> to vector<32x256xf32>
    %99 = arith.addf %95, %98 : vector<32x256xf32>
    %100 = arith.addf %3, %99 : vector<32x256xf32>
    %c0_26 = arith.constant 0 : index
    %c0_27 = arith.constant 0 : index
    %c0_28 = arith.constant 0 : index
    %101 = vector.load %arg8[%c0_26, %c0_27, %c0_28] : memref<1x1x256xf32, #tpu.memory_space<vmem>>, vector<1x1x256xf32>
    %102 = vector.shape_cast %101 : vector<1x1x256xf32> to vector<1x256xf32>
    %c0_29 = arith.constant 0 : index
    %c0_30 = arith.constant 0 : index
    %c0_31 = arith.constant 0 : index
    %103 = vector.load %arg9[%c0_29, %c0_30, %c0_31] : memref<1x1x256xf32, #tpu.memory_space<vmem>>, vector<1x1x256xf32>
    %104 = vector.shape_cast %103 : vector<1x1x256xf32> to vector<1x256xf32>
    %cst_32 = arith.constant dense<0.000000e+00> : vector<32xf32>
    %105 = vector.multi_reduction <add>, %100, %cst_32 [1] : vector<32x256xf32> to vector<32xf32>
    %106 = vector.shape_cast %105 : vector<32xf32> to vector<32x1xf32>
    %cst_33 = arith.constant 2.560000e+02 : f32
    %107 = vector.broadcast %cst_33 : f32 to vector<32x1xf32>
    %108 = arith.divf %106, %107 : vector<32x1xf32>
    %109 = vector.broadcast %108 : vector<32x1xf32> to vector<32x256xf32>
    %110 = arith.subf %100, %109 : vector<32x256xf32>
    %111 = arith.mulf %110, %110 : vector<32x256xf32>
    %cst_34 = arith.constant dense<0.000000e+00> : vector<32xf32>
    %112 = vector.multi_reduction <add>, %111, %cst_34 [1] : vector<32x256xf32> to vector<32xf32>
    %113 = vector.shape_cast %112 : vector<32xf32> to vector<32x1xf32>
    %cst_35 = arith.constant 2.560000e+02 : f32
    %114 = vector.broadcast %cst_35 : f32 to vector<32x1xf32>
    %115 = arith.divf %113, %114 : vector<32x1xf32>
    %116 = vector.broadcast %108 : vector<32x1xf32> to vector<32x256xf32>
    %117 = arith.subf %100, %116 : vector<32x256xf32>
    %cst_36 = arith.constant 9.99999974E-6 : f32
    %118 = vector.broadcast %cst_36 : f32 to vector<32x1xf32>
    %119 = arith.addf %115, %118 : vector<32x1xf32>
    %120 = math.rsqrt %119 : vector<32x1xf32>
    %121 = vector.broadcast %120 : vector<32x1xf32> to vector<32x256xf32>
    %122 = arith.mulf %117, %121 : vector<32x256xf32>
    %123 = vector.broadcast %102 : vector<1x256xf32> to vector<32x256xf32>
    %124 = arith.mulf %122, %123 : vector<32x256xf32>
    %125 = vector.broadcast %104 : vector<1x256xf32> to vector<32x256xf32>
    %126 = arith.addf %124, %125 : vector<32x256xf32>
    %127 = arith.truncf %126 : vector<32x256xf32> to vector<32x256xbf16>
    %c0_37 = arith.constant 0 : index
    %c0_38 = arith.constant 0 : index
    %c0_39 = arith.constant 0 : index
    %128 = vector.load %arg10[%c0_37, %c0_38, %c0_39] : memref<1x256x1024xbf16, #tpu.memory_space<vmem>>, vector<1x256x1024xbf16>
    %129 = vector.shape_cast %128 : vector<1x256x1024xbf16> to vector<256x1024xbf16>
    %cst_40 = arith.constant dense<0.000000e+00> : vector<32x1024xf32>
    %130 = tpu.matmul %127, %129, %cst_40 {dimension_numbers = #tpu.dot_dimension_numbers<[1], [0], [0], [1], [0, 0, 1, 1], [], []>} : vector<32x256xbf16>, vector<256x1024xbf16>, vector<32x1024xf32> -> vector<32x1024xf32>
    %c0_41 = arith.constant 0 : index
    %c0_42 = arith.constant 0 : index
    %c0_43 = arith.constant 0 : index
    %131 = vector.load %arg11[%c0_41, %c0_42, %c0_43] : memref<1x1x1024xf32, #tpu.memory_space<vmem>>, vector<1x1x1024xf32>
    %132 = vector.shape_cast %131 : vector<1x1x1024xf32> to vector<1x1024xf32>
    %133 = vector.broadcast %132 : vector<1x1024xf32> to vector<32x1024xf32>
    %134 = arith.addf %130, %133 : vector<32x1024xf32>
    %cst_44 = arith.constant 5.000000e-01 : f32
    %135 = vector.broadcast %cst_44 : f32 to vector<32x1024xf32>
    %136 = arith.mulf %135, %134 : vector<32x1024xf32>
    %cst_45 = arith.constant 0.707106769 : f32
    %137 = vector.broadcast %cst_45 : f32 to vector<32x1024xf32>
    %138 = arith.mulf %134, %137 : vector<32x1024xf32>
    %139 = math.absf %138 : vector<32x1024xf32>
    %cst_46 = arith.constant 0.327591091 : f32
    %140 = vector.broadcast %cst_46 : f32 to vector<32x1024xf32>
    %141 = arith.mulf %140, %139 : vector<32x1024xf32>
    %cst_47 = arith.constant 1.000000e+00 : f32
    %142 = vector.broadcast %cst_47 : f32 to vector<32x1024xf32>
    %143 = arith.addf %142, %141 : vector<32x1024xf32>
    %cst_48 = arith.constant 1.000000e+00 : f32
    %144 = vector.broadcast %cst_48 : f32 to vector<32x1024xf32>
    %145 = arith.divf %144, %143 : vector<32x1024xf32>
    %cst_49 = arith.constant 1.06140542 : f32
    %146 = vector.broadcast %cst_49 : f32 to vector<32x1024xf32>
    %147 = arith.mulf %146, %145 : vector<32x1024xf32>
    %cst_50 = arith.constant -1.45315206 : f32
    %148 = vector.broadcast %cst_50 : f32 to vector<32x1024xf32>
    %149 = arith.addf %147, %148 : vector<32x1024xf32>
    %150 = arith.mulf %149, %145 : vector<32x1024xf32>
    %cst_51 = arith.constant 1.42141378 : f32
    %151 = vector.broadcast %cst_51 : f32 to vector<32x1024xf32>
    %152 = arith.addf %150, %151 : vector<32x1024xf32>
    %153 = arith.mulf %152, %145 : vector<32x1024xf32>
    %cst_52 = arith.constant -0.284496725 : f32
    %154 = vector.broadcast %cst_52 : f32 to vector<32x1024xf32>
    %155 = arith.addf %153, %154 : vector<32x1024xf32>
    %156 = arith.mulf %155, %145 : vector<32x1024xf32>
    %cst_53 = arith.constant 0.254829586 : f32
    %157 = vector.broadcast %cst_53 : f32 to vector<32x1024xf32>
    %158 = arith.addf %156, %157 : vector<32x1024xf32>
    %159 = arith.mulf %158, %145 : vector<32x1024xf32>
    %cst_54 = arith.constant 0.000000e+00 : f32
    %160 = vector.broadcast %cst_54 : f32 to vector<32x1024xf32>
    %161 = arith.subf %160, %139 : vector<32x1024xf32>
    %162 = arith.mulf %161, %139 : vector<32x1024xf32>
    %163 = math.exp %162 : vector<32x1024xf32>
    %164 = arith.mulf %159, %163 : vector<32x1024xf32>
    %cst_55 = arith.constant 1.000000e+00 : f32
    %165 = vector.broadcast %cst_55 : f32 to vector<32x1024xf32>
    %166 = arith.subf %165, %164 : vector<32x1024xf32>
    %cst_56 = arith.constant 0.000000e+00 : f32
    %167 = vector.broadcast %cst_56 : f32 to vector<32x1024xf32>
    %168 = arith.cmpf oge, %138, %167 : vector<32x1024xf32>
    %cst_57 = arith.constant 0.000000e+00 : f32
    %169 = vector.broadcast %cst_57 : f32 to vector<32x1024xf32>
    %170 = arith.subf %169, %166 : vector<32x1024xf32>
    %171 = arith.select %168, %166, %170 : vector<32x1024xi1>, vector<32x1024xf32>
    %cst_58 = arith.constant 1.000000e+00 : f32
    %172 = vector.broadcast %cst_58 : f32 to vector<32x1024xf32>
    %173 = arith.addf %172, %171 : vector<32x1024xf32>
    %174 = arith.mulf %136, %173 : vector<32x1024xf32>
    %175 = arith.truncf %174 : vector<32x1024xf32> to vector<32x1024xbf16>
    %c0_59 = arith.constant 0 : index
    %c0_60 = arith.constant 0 : index
    %c0_61 = arith.constant 0 : index
    %176 = vector.load %arg12[%c0_59, %c0_60, %c0_61] : memref<1x1024x256xbf16, #tpu.memory_space<vmem>>, vector<1x1024x256xbf16>
    %177 = vector.shape_cast %176 : vector<1x1024x256xbf16> to vector<1024x256xbf16>
    %cst_62 = arith.constant dense<0.000000e+00> : vector<32x256xf32>
    %178 = tpu.matmul %175, %177, %cst_62 {dimension_numbers = #tpu.dot_dimension_numbers<[1], [0], [0], [1], [0, 0, 1, 1], [], []>} : vector<32x1024xbf16>, vector<1024x256xbf16>, vector<32x256xf32> -> vector<32x256xf32>
    %c0_63 = arith.constant 0 : index
    %c0_64 = arith.constant 0 : index
    %c0_65 = arith.constant 0 : index
    %179 = vector.load %arg13[%c0_63, %c0_64, %c0_65] : memref<1x1x256xf32, #tpu.memory_space<vmem>>, vector<1x1x256xf32>
    %180 = vector.shape_cast %179 : vector<1x1x256xf32> to vector<1x256xf32>
    %181 = vector.broadcast %180 : vector<1x256xf32> to vector<32x256xf32>
    %182 = arith.addf %178, %181 : vector<32x256xf32>
    %183 = arith.addf %126, %182 : vector<32x256xf32>
    %c0_66 = arith.constant 0 : index
    %c0_67 = arith.constant 0 : index
    %c0_68 = arith.constant 0 : index
    %184 = vector.load %arg14[%c0_66, %c0_67, %c0_68] : memref<1x1x256xf32, #tpu.memory_space<vmem>>, vector<1x1x256xf32>
    %185 = vector.shape_cast %184 : vector<1x1x256xf32> to vector<1x256xf32>
    %c0_69 = arith.constant 0 : index
    %c0_70 = arith.constant 0 : index
    %c0_71 = arith.constant 0 : index
    %186 = vector.load %arg15[%c0_69, %c0_70, %c0_71] : memref<1x1x256xf32, #tpu.memory_space<vmem>>, vector<1x1x256xf32>
    %187 = vector.shape_cast %186 : vector<1x1x256xf32> to vector<1x256xf32>
    %cst_72 = arith.constant dense<0.000000e+00> : vector<32xf32>
    %188 = vector.multi_reduction <add>, %183, %cst_72 [1] : vector<32x256xf32> to vector<32xf32>
    %189 = vector.shape_cast %188 : vector<32xf32> to vector<32x1xf32>
    %cst_73 = arith.constant 2.560000e+02 : f32
    %190 = vector.broadcast %cst_73 : f32 to vector<32x1xf32>
    %191 = arith.divf %189, %190 : vector<32x1xf32>
    %192 = vector.broadcast %191 : vector<32x1xf32> to vector<32x256xf32>
    %193 = arith.subf %183, %192 : vector<32x256xf32>
    %194 = arith.mulf %193, %193 : vector<32x256xf32>
    %cst_74 = arith.constant dense<0.000000e+00> : vector<32xf32>
    %195 = vector.multi_reduction <add>, %194, %cst_74 [1] : vector<32x256xf32> to vector<32xf32>
    %196 = vector.shape_cast %195 : vector<32xf32> to vector<32x1xf32>
    %cst_75 = arith.constant 2.560000e+02 : f32
    %197 = vector.broadcast %cst_75 : f32 to vector<32x1xf32>
    %198 = arith.divf %196, %197 : vector<32x1xf32>
    %199 = vector.broadcast %191 : vector<32x1xf32> to vector<32x256xf32>
    %200 = arith.subf %183, %199 : vector<32x256xf32>
    %cst_76 = arith.constant 9.99999974E-6 : f32
    %201 = vector.broadcast %cst_76 : f32 to vector<32x1xf32>
    %202 = arith.addf %198, %201 : vector<32x1xf32>
    %203 = math.rsqrt %202 : vector<32x1xf32>
    %204 = vector.broadcast %203 : vector<32x1xf32> to vector<32x256xf32>
    %205 = arith.mulf %200, %204 : vector<32x256xf32>
    %206 = vector.broadcast %185 : vector<1x256xf32> to vector<32x256xf32>
    %207 = arith.mulf %205, %206 : vector<32x256xf32>
    %208 = vector.broadcast %187 : vector<1x256xf32> to vector<32x256xf32>
    %209 = arith.addf %207, %208 : vector<32x256xf32>
    %c0_77 = arith.constant 0 : index
    %c0_78 = arith.constant 0 : index
    %210 = vector.load %arg21[%c0_77, %c0_78] : memref<32x256xf32, #tpu.memory_space<vmem>>, vector<32x256xf32>
    tpu.vector_store %arg21[%c0_77, %c0_78], %209 {strides = array<i32>} : memref<32x256xf32, #tpu.memory_space<vmem>>, vector<32x256xf32>,
    %c1_i32 = arith.constant 1 : i32
    %211 = arith.cmpi eq, %arg0, %c1_i32 : i32
    %212 = arith.extui %211 : i1 to i32
    %c0_i32_79 = arith.constant 0 : i32
    %213 = arith.cmpi ne, %212, %c0_i32_79 : i32
    scf.if %213 {
      %c0_80 = arith.constant 0 : index
      %c0_81 = arith.constant 0 : index
      %214 = vector.load %arg16[%c0_80, %c0_81] : memref<1x256xf32, #tpu.memory_space<vmem>>, vector<1x256xf32>
      %c0_82 = arith.constant 0 : index
      %c0_83 = arith.constant 0 : index
      %215 = vector.load %arg17[%c0_82, %c0_83] : memref<1x256xf32, #tpu.memory_space<vmem>>, vector<1x256xf32>
      %cst_84 = arith.constant dense<0.000000e+00> : vector<32xf32>
      %216 = vector.multi_reduction <add>, %209, %cst_84 [1] : vector<32x256xf32> to vector<32xf32>
      %217 = vector.shape_cast %216 : vector<32xf32> to vector<32x1xf32>
      %cst_85 = arith.constant 2.560000e+02 : f32
      %218 = vector.broadcast %cst_85 : f32 to vector<32x1xf32>
      %219 = arith.divf %217, %218 : vector<32x1xf32>
      %220 = vector.broadcast %219 : vector<32x1xf32> to vector<32x256xf32>
      %221 = arith.subf %209, %220 : vector<32x256xf32>
      %222 = arith.mulf %221, %221 : vector<32x256xf32>
      %cst_86 = arith.constant dense<0.000000e+00> : vector<32xf32>
      %223 = vector.multi_reduction <add>, %222, %cst_86 [1] : vector<32x256xf32> to vector<32xf32>
      %224 = vector.shape_cast %223 : vector<32xf32> to vector<32x1xf32>
      %cst_87 = arith.constant 2.560000e+02 : f32
      %225 = vector.broadcast %cst_87 : f32 to vector<32x1xf32>
      %226 = arith.divf %224, %225 : vector<32x1xf32>
      %227 = vector.broadcast %219 : vector<32x1xf32> to vector<32x256xf32>
      %228 = arith.subf %209, %227 : vector<32x256xf32>
      %cst_88 = arith.constant 9.99999974E-6 : f32
      %229 = vector.broadcast %cst_88 : f32 to vector<32x1xf32>
      %230 = arith.addf %226, %229 : vector<32x1xf32>
      %231 = math.rsqrt %230 : vector<32x1xf32>
      %232 = vector.broadcast %231 : vector<32x1xf32> to vector<32x256xf32>
      %233 = arith.mulf %228, %232 : vector<32x256xf32>
      %234 = vector.broadcast %214 : vector<1x256xf32> to vector<32x256xf32>
      %235 = arith.mulf %233, %234 : vector<32x256xf32>
      %236 = vector.broadcast %215 : vector<1x256xf32> to vector<32x256xf32>
      %237 = arith.addf %235, %236 : vector<32x256xf32>
      %238 = arith.truncf %237 : vector<32x256xf32> to vector<32x256xbf16>
      %c0_89 = arith.constant 0 : index
      %c0_90 = arith.constant 0 : index
      %239 = vector.load %arg18[%c0_89, %c0_90] : memref<256x128xbf16, #tpu.memory_space<vmem>>, vector<256x128xbf16>
      %cst_91 = arith.constant dense<0.000000e+00> : vector<32x128xf32>
      %240 = tpu.matmul %238, %239, %cst_91 {dimension_numbers = #tpu.dot_dimension_numbers<[1], [0], [0], [1], [0, 0, 1, 1], [], []>} : vector<32x256xbf16>, vector<256x128xbf16>, vector<32x128xf32> -> vector<32x128xf32>
      %c0_92 = arith.constant 0 : index
      %c0_93 = arith.constant 0 : index
      %241 = vector.load %arg19[%c0_92, %c0_93] : memref<1x128xf32, #tpu.memory_space<vmem>>, vector<1x128xf32>
      %242 = vector.broadcast %241 : vector<1x128xf32> to vector<32x128xf32>
      %243 = arith.addf %240, %242 : vector<32x128xf32>
      %c0_94 = arith.constant 0 : index
      %c0_95 = arith.constant 0 : index
      %244 = vector.load %arg20[%c0_94, %c0_95] : memref<32x128xf32, #tpu.memory_space<vmem>>, vector<32x128xf32>
      tpu.vector_store %arg20[%c0_94, %c0_95], %243 {strides = array<i32>} : memref<32x128xf32, #tpu.memory_space<vmem>>, vector<32x128xf32>,
    } else {
    }
    return
  }
  func.func @transform_0(%arg0: i32) -> (i32, i32) {
    %c0_i32 = arith.constant 0 : i32
    %c0_i32_0 = arith.constant 0 : i32
    %c0_i32_1 = arith.constant 0 : i32
    return %c0_i32, %c0_i32_0 : i32, i32
  }
  func.func @transform_1(%arg0: i32) -> (i32, i32) {
    %c0_i32 = arith.constant 0 : i32
    %c0_i32_0 = arith.constant 0 : i32
    %c0_i32_1 = arith.constant 0 : i32
    return %c0_i32, %c0_i32_0 : i32, i32
  }
  func.func @transform_2(%arg0: i32) -> (i32, i32) {
    %c0_i32 = arith.constant 0 : i32
    %c0_i32_0 = arith.constant 0 : i32
    %c0_i32_1 = arith.constant 0 : i32
    return %c0_i32, %c0_i32_0 : i32, i32
  }
  func.func @transform_3(%arg0: i32) -> (i32, i32, i32) {
    %c0_i32 = arith.constant 0 : i32
    %c0_i32_0 = arith.constant 0 : i32
    %c0_i32_1 = arith.constant 0 : i32
    return %arg0, %c0_i32, %c0_i32_0 : i32, i32, i32
  }
  func.func @transform_4(%arg0: i32) -> (i32, i32, i32) {
    %c0_i32 = arith.constant 0 : i32
    %c0_i32_0 = arith.constant 0 : i32
    %c0_i32_1 = arith.constant 0 : i32
    return %arg0, %c0_i32, %c0_i32_0 : i32, i32, i32
  }
  func.func @transform_5(%arg0: i32) -> (i32, i32, i32) {
    %c0_i32 = arith.constant 0 : i32
    %c0_i32_0 = arith.constant 0 : i32
    %c0_i32_1 = arith.constant 0 : i32
    return %arg0, %c0_i32, %c0_i32_0 : i32, i32, i32
  }
  func.func @transform_6(%arg0: i32) -> (i32, i32, i32) {
    %c0_i32 = arith.constant 0 : i32
    %c0_i32_0 = arith.constant 0 : i32
    %c0_i32_1 = arith.constant 0 : i32
    return %arg0, %c0_i32, %c0_i32_0 : i32, i32, i32
  }
  func.func @transform_7(%arg0: i32) -> (i32, i32, i32) {
    %c0_i32 = arith.constant 0 : i32
    %c0_i32_0 = arith.constant 0 : i32
    %c0_i32_1 = arith.constant 0 : i32
    return %arg0, %c0_i32, %c0_i32_0 : i32, i32, i32
  }
  func.func @transform_8(%arg0: i32) -> (i32, i32, i32) {
    %c0_i32 = arith.constant 0 : i32
    %c0_i32_0 = arith.constant 0 : i32
    %c0_i32_1 = arith.constant 0 : i32
    return %arg0, %c0_i32, %c0_i32_0 : i32, i32, i32
  }
  func.func @transform_9(%arg0: i32) -> (i32, i32, i32) {
    %c0_i32 = arith.constant 0 : i32
    %c0_i32_0 = arith.constant 0 : i32
    %c0_i32_1 = arith.constant 0 : i32
    return %arg0, %c0_i32, %c0_i32_0 : i32, i32, i32
  }
  func.func @transform_10(%arg0: i32) -> (i32, i32, i32) {
    %c0_i32 = arith.constant 0 : i32
    %c0_i32_0 = arith.constant 0 : i32
    %c0_i32_1 = arith.constant 0 : i32
    return %arg0, %c0_i32, %c0_i32_0 : i32, i32, i32
  }
  func.func @transform_11(%arg0: i32) -> (i32, i32, i32) {
    %c0_i32 = arith.constant 0 : i32
    %c0_i32_0 = arith.constant 0 : i32
    %c0_i32_1 = arith.constant 0 : i32
    return %arg0, %c0_i32, %c0_i32_0 : i32, i32, i32
  }
  func.func @transform_12(%arg0: i32) -> (i32, i32, i32) {
    %c0_i32 = arith.constant 0 : i32
    %c0_i32_0 = arith.constant 0 : i32
    %c0_i32_1 = arith.constant 0 : i32
    return %arg0, %c0_i32, %c0_i32_0 : i32, i32, i32
  }
  func.func @transform_13(%arg0: i32) -> (i32, i32, i32) {
    %c0_i32 = arith.constant 0 : i32
    %c0_i32_0 = arith.constant 0 : i32
    %c0_i32_1 = arith.constant 0 : i32
    return %arg0, %c0_i32, %c0_i32_0 : i32, i32, i32
  }
  func.func @transform_14(%arg0: i32) -> (i32, i32, i32) {
    %c0_i32 = arith.constant 0 : i32
    %c0_i32_0 = arith.constant 0 : i32
    %c0_i32_1 = arith.constant 0 : i32
    return %arg0, %c0_i32, %c0_i32_0 : i32, i32, i32
  }
  func.func @transform_15(%arg0: i32) -> (i32, i32) {
    %c0_i32 = arith.constant 0 : i32
    %c0_i32_0 = arith.constant 0 : i32
    %c0_i32_1 = arith.constant 0 : i32
    return %c0_i32, %c0_i32_0 : i32, i32
  }
  func.func @transform_16(%arg0: i32) -> (i32, i32) {
    %c0_i32 = arith.constant 0 : i32
    %c0_i32_0 = arith.constant 0 : i32
    %c0_i32_1 = arith.constant 0 : i32
    return %c0_i32, %c0_i32_0 : i32, i32
  }
  func.func @transform_17(%arg0: i32) -> (i32, i32) {
    %c0_i32 = arith.constant 0 : i32
    %c0_i32_0 = arith.constant 0 : i32
    %c0_i32_1 = arith.constant 0 : i32
    return %c0_i32, %c0_i32_0 : i32, i32
  }
  func.func @transform_18(%arg0: i32) -> (i32, i32) {
    %c0_i32 = arith.constant 0 : i32
    %c0_i32_0 = arith.constant 0 : i32
    %c0_i32_1 = arith.constant 0 : i32
    return %c0_i32, %c0_i32_0 : i32, i32
  }
  func.func @transform_19(%arg0: i32) -> (i32, i32) {
    %c0_i32 = arith.constant 0 : i32
    %c0_i32_0 = arith.constant 0 : i32
    %c0_i32_1 = arith.constant 0 : i32
    return %c0_i32, %c0_i32_0 : i32, i32
  }
}

</mosaic_0001>

<llo_original>
// kernel: tpu_custom_call.1
$region0: #{tpu_custom_call.1}
  #allocation0 [shape = 'u32[]', space=smem, size = 0x4, offset = 0x4, fixed_abs, tag = 'smem constant byte address 0x4 - core index']
  #allocation1 [shape = 'u32[144,128]{1,0:T(1,128)}', space=vmem, size = 0x12000, scoped, tag = 'internal scratch']
  #allocation2 [shape = 'f32[32,256]{1,0:T(8,128)}', space=vmem, size = 0x8000, scoped, tag = 'scratch operand']
  %s0 = inlined_call_operand.vmem [shape: s32[32,1], index: 0, kind: input, shape index: {}]
  %s1 = inlined_call_operand.hbm [shape: bf16[128,256], index: 1, kind: input, shape index: {}]
  %s2 = inlined_call_operand.vmem [shape: f32[16,256], index: 2, kind: input, shape index: {}]
  %s3 = inlined_call_operand.hbm [shape: bf16[2,256,768], index: 3, kind: input, shape index: {}]
  %s4 = inlined_call_operand.hbm [shape: f32[2,1,768], index: 4, kind: input, shape index: {}]
  %s5 = inlined_call_operand.hbm [shape: bf16[2,256,256], index: 5, kind: input, shape index: {}]
  %s6 = inlined_call_operand.vmem [shape: f32[2,1,256], index: 6, kind: input, shape index: {}]
  %s7 = inlined_call_operand.vmem [shape: f32[2,1,256], index: 7, kind: input, shape index: {}]
  %s8 = inlined_call_operand.vmem [shape: f32[2,1,256], index: 8, kind: input, shape index: {}]
  %s9 = inlined_call_operand.hbm [shape: bf16[2,256,1024], index: 9, kind: input, shape index: {}]
  %s10 = inlined_call_operand.vmem [shape: f32[2,1,1024], index: 10, kind: input, shape index: {}]
  %s11 = inlined_call_operand.hbm [shape: bf16[2,1024,256], index: 11, kind: input, shape index: {}]
  %s12 = inlined_call_operand.vmem [shape: f32[2,1,256], index: 12, kind: input, shape index: {}]
  %s13 = inlined_call_operand.vmem [shape: f32[2,1,256], index: 13, kind: input, shape index: {}]
  %s14 = inlined_call_operand.vmem [shape: f32[2,1,256], index: 14, kind: input, shape index: {}]
  %s15 = inlined_call_operand.vmem [shape: f32[1,256], index: 15, kind: input, shape index: {}]
  %s16 = inlined_call_operand.vmem [shape: f32[1,256], index: 16, kind: input, shape index: {}]
  %s17 = inlined_call_operand.hbm [shape: bf16[256,128], index: 17, kind: input, shape index: {}]
  %s18 = inlined_call_operand.vmem [shape: f32[1,128], index: 18, kind: input, shape index: {}]
  %s19 = inlined_call_operand.hbm [shape: f32[32,128], index: 19, kind: output, shape index: {}]
  %s20 = sld [smem:[#allocation0]]
  $region145: #{tpu_custom_call.1} parent=0
    _
  %s22 = ssub.s32 1, %s20
  %s23 = scalar_select 0, %s22, %s20
  $region1: #{tpu_custom_call.1} parent=0
    #allocation3 [shape = 'u8[65536]{0}', space=vmem, size = 0x10000, scoped, tag = 'input window, operand 1, single buffered']
    #allocation4 [shape = 's32[2]{0}', space=sflag, size = 0x8, scoped, tag = 'scoped memory for tpu_custom_call.1']
    #allocation5 [shape = 's32[2]{0}', space=sflag, size = 0x8, scoped, tag = 'scoped memory for tpu_custom_call.1']
    #allocation6 [shape = 'u8[786432]{0}', space=vmem, size = 0xc0000, scoped, tag = 'input window, operand 3']
    #allocation7 [shape = 's32[2]{0}', space=sflag, size = 0x8, scoped, tag = 'scoped memory for tpu_custom_call.1']
    #allocation8 [shape = 'u8[6144]{0}', space=vmem, size = 0x1800, scoped, tag = 'input window, operand 4']
    #allocation9 [shape = 'u8[262144]{0}', space=vmem, size = 0x40000, scoped, tag = 'input window, operand 5']
    #allocation10 [shape = 's32[2]{0}', space=sflag, size = 0x8, scoped, tag = 'scoped memory for tpu_custom_call.1']
    #allocation11 [shape = 'u8[1048576]{0}', space=vmem, size = 0x100000, scoped, tag = 'input window, operand 9']
    #allocation12 [shape = 'u8[1048576]{0}', space=vmem, size = 0x100000, scoped, tag = 'input window, operand 11']
    #allocation13 [shape = 's32[2]{0}', space=sflag, size = 0x8, scoped, tag = 'scoped memory for tpu_custom_call.1']
    #allocation14 [shape = 'u8[65536]{0}', space=vmem, size = 0x10000, scoped, tag = 'input window, operand 17, single buffered']
    #allocation15 [shape = 'u8[16384]{0}', space=vmem, size = 0x4000, scoped, tag = 'output window, operand 0, single buffered']
    %24 = vsyncpa [#allocation4], 0
    %25 = vsyncpa [#allocation7], 0
    %s26 = scalar_lea.sflag [#allocation7], 1
    %27 = vsyncpa %s26, 0
    %28 = vsyncpa [#allocation10], 0
    %s29 = scalar_lea.sflag [#allocation10], 1
    %30 = vsyncpa %s29, 0
    %31 = vsyncpa [#allocation13], 0
    %s32 = scalar_lea.sflag [#allocation13], 1
    %33 = vsyncpa %s32, 0
    %34 = vsyncpa [#allocation5], 0
    loop: start=0, step=1, limit=4
    $region2: #{tpu_custom_call.1} parent=1 // loop_pre_header
      _
    $region3: #{tpu_custom_call.1} parent=1 // loop_header
      %s36 = sphi 0, %s40
      %p37 = scmp.ge.s32.totalorder %s36, 4
      %s44 = sphi 0, %s44
      %s46 = sphi 0, %s44
      %s47 = sphi 0, %s46
      %s61 = sphi 0, %s47
      %s65 = sphi 0, %s65
      %s67 = sphi 0, %s65
      %s68 = sphi 0, %s67
      %s82 = sphi 0, %s68
      %s86 = sphi 0, %s86
      %s88 = sphi 0, %s86
      %s89 = sphi 0, %s88
      %s103 = sphi 0, %s89
      %s109 = sphi 0, %s111
      %s112 = sphi 0, %s109
      %s113 = sphi 0, %s112
      %s129 = sphi 0, %s113
      %s135 = sphi 0, %s137
      %s138 = sphi 0, %s135
      %s139 = sphi 0, %s138
      %s155 = sphi 0, %s139
      %s161 = sphi 0, %s163
      %s164 = sphi 0, %s161
      %s165 = sphi 0, %s164
      %s181 = sphi 0, %s165
      %s187 = sphi 0, %s189
      %s190 = sphi 0, %s187
      %s191 = sphi 0, %s190
      %s207 = sphi 0, %s191
      %s213 = sphi 0, %s215
      %s216 = sphi 0, %s213
      %s217 = sphi 0, %s216
      %s233 = sphi 0, %s217
      %s239 = sphi 0, %s241
      %s242 = sphi 0, %s239
      %s243 = sphi 0, %s242
      %s259 = sphi 0, %s243
      %s265 = sphi 0, %s267
      %s268 = sphi 0, %s265
      %s269 = sphi 0, %s268
      %s285 = sphi 0, %s269
      %s291 = sphi 0, %s293
      %s294 = sphi 0, %s291
      %s295 = sphi 0, %s294
      %s311 = sphi 0, %s295
      %s317 = sphi 0, %s319
      %s320 = sphi 0, %s317
      %s321 = sphi 0, %s320
      %s337 = sphi 0, %s321
      %s343 = sphi 0, %s345
      %s346 = sphi 0, %s343
      %s347 = sphi 0, %s346
      %s363 = sphi 0, %s347
      %s369 = sphi 0, %s371
      %s372 = sphi 0, %s369
      %s373 = sphi 0, %s372
      %s389 = sphi 0, %s373
      %s395 = sphi 0, %s397
      %s398 = sphi 0, %s395
      %s399 = sphi 0, %s398
      %s415 = sphi 0, %s399
      %s419 = sphi 0, %s419
      %s421 = sphi 0, %s419
      %s422 = sphi 0, %s421
      %s436 = sphi 0, %s422
      %s440 = sphi 0, %s440
      %s442 = sphi 0, %s440
      %s443 = sphi 0, %s442
      %s457 = sphi 0, %s443
      %s461 = sphi 0, %s461
      %s463 = sphi 0, %s461
      %s464 = sphi 0, %s463
      %s478 = sphi 0, %s464
      %s482 = sphi 0, %s482
      %s484 = sphi 0, %s482
      %s485 = sphi 0, %s484
      %s499 = sphi 0, %s485
      %s503 = sphi 0, %s503
      %s505 = sphi 0, %s503
      %s506 = sphi 0, %s505
      %s520 = sphi 0, %s506
    $region4: #{tpu_custom_call.1} parent=1 // loop_header_branch
      %39 = sbr.rel (%p37) target = $region8
    $region5: #{tpu_custom_call.1} parent=1 // loop_body
      %s41 = ssub.s32 %s36, 1
      %s42 = ssub.s32 %s36, 2
      %s43 = sadd.s32 %s36, 1
      %s45 = sadd.s32 %s44, 1
      %p48 = scmp.eq.s32.totalorder %s36, 1
      %p49 = scmp.ne.s32.totalorder %s44, %s46
      %p50 = scmp.eq.s32.totalorder %s36, 0
      %p51 = por %p49, %p50
      %p52 = scmp.ne.s32.totalorder %s44, %s46
      %p53 = scmp.eq.s32.totalorder %s41, 1
      %p54 = por %p52, %p53
      %p55 = scmp.ne.s32.totalorder %s46, %s47
      %p56 = scmp.eq.s32.totalorder %s41, 0
      %p57 = por %p55, %p56
      %p58 = scmp.ne.s32.totalorder %s46, %s47
      %p59 = scmp.eq.s32.totalorder %s42, 1
      %p60 = por %p58, %p59
      %p62 = scmp.ne.s32.totalorder %s47, %s61
      %p63 = scmp.eq.s32.totalorder %s42, 0
      %p64 = por %p62, %p63
      %s66 = sadd.s32 %s65, 1
      %p69 = scmp.eq.s32.totalorder %s36, 1
      %p70 = scmp.ne.s32.totalorder %s65, %s67
      %p71 = scmp.eq.s32.totalorder %s36, 0
      %p72 = por %p70, %p71
      %p73 = scmp.ne.s32.totalorder %s65, %s67
      %p74 = scmp.eq.s32.totalorder %s41, 1
      %p75 = por %p73, %p74
      %p76 = scmp.ne.s32.totalorder %s67, %s68
      %p77 = scmp.eq.s32.totalorder %s41, 0
      %p78 = por %p76, %p77
      %p79 = scmp.ne.s32.totalorder %s67, %s68
      %p80 = scmp.eq.s32.totalorder %s42, 1
      %p81 = por %p79, %p80
      %p83 = scmp.ne.s32.totalorder %s68, %s82
      %p84 = scmp.eq.s32.totalorder %s42, 0
      %p85 = por %p83, %p84
      %s87 = sadd.s32 %s86, 1
      %p90 = scmp.eq.s32.totalorder %s36, 1
      %p91 = scmp.ne.s32.totalorder %s86, %s88
      %p92 = scmp.eq.s32.totalorder %s36, 0
      %p93 = por %p91, %p92
      %p94 = scmp.ne.s32.totalorder %s86, %s88
      %p95 = scmp.eq.s32.totalorder %s41, 1
      %p96 = por %p94, %p95
      %p97 = scmp.ne.s32.totalorder %s88, %s89
      %p98 = scmp.eq.s32.totalorder %s41, 0
      %p99 = por %p97, %p98
      %p100 = scmp.ne.s32.totalorder %s88, %s89
      %p101 = scmp.eq.s32.totalorder %s42, 1
      %p102 = por %p100, %p101
      %p104 = scmp.ne.s32.totalorder %s89, %s103
      %p105 = scmp.eq.s32.totalorder %s42, 0
      %p106 = por %p104, %p105
      %s107 = ssub.s32 %s36, %s43
      %p108 = scmp.eq.s32.totalorder %s107, 0
      %s110 = sadd.s32 %s109, 1
      %s111 = scalar_select %p108, %s109, %s110
      %p114 = pneg %p108
      %p115 = scmp.eq.s32.totalorder %s36, 1
      %p116 = por %p114, %p115
      %p117 = scmp.ne.s32.totalorder %s109, %s112
      %p118 = scmp.eq.s32.totalorder %s36, 0
      %p119 = por %p117, %p118
      %p120 = scmp.ne.s32.totalorder %s109, %s112
      %p121 = scmp.eq.s32.totalorder %s41, 1
      %p122 = por %p120, %p121
      %p123 = scmp.ne.s32.totalorder %s112, %s113
      %p124 = scmp.eq.s32.totalorder %s41, 0
      %p125 = por %p123, %p124
      %p126 = scmp.ne.s32.totalorder %s112, %s113
      %p127 = scmp.eq.s32.totalorder %s42, 1
      %p128 = por %p126, %p127
      %p130 = scmp.ne.s32.totalorder %s113, %s129
      %p131 = scmp.eq.s32.totalorder %s42, 0
      %p132 = por %p130, %p131
      %s133 = ssub.s32 %s36, %s43
      %p134 = scmp.eq.s32.totalorder %s133, 0
      %s136 = sadd.s32 %s135, 1
      %s137 = scalar_select %p134, %s135, %s136
      %p140 = pneg %p134
      %p141 = scmp.eq.s32.totalorder %s36, 1
      %p142 = por %p140, %p141
      %p143 = scmp.ne.s32.totalorder %s135, %s138
      %p144 = scmp.eq.s32.totalorder %s36, 0
      %p145 = por %p143, %p144
      %p146 = scmp.ne.s32.totalorder %s135, %s138
      %p147 = scmp.eq.s32.totalorder %s41, 1
      %p148 = por %p146, %p147
      %p149 = scmp.ne.s32.totalorder %s138, %s139
      %p150 = scmp.eq.s32.totalorder %s41, 0
      %p151 = por %p149, %p150
      %p152 = scmp.ne.s32.totalorder %s138, %s139
      %p153 = scmp.eq.s32.totalorder %s42, 1
      %p154 = por %p152, %p153
      %p156 = scmp.ne.s32.totalorder %s139, %s155
      %p157 = scmp.eq.s32.totalorder %s42, 0
      %p158 = por %p156, %p157
      %s159 = ssub.s32 %s36, %s43
      %p160 = scmp.eq.s32.totalorder %s159, 0
      %s162 = sadd.s32 %s161, 1
      %s163 = scalar_select %p160, %s161, %s162
      %p166 = pneg %p160
      %p167 = scmp.eq.s32.totalorder %s36, 1
      %p168 = por %p166, %p167
      %p169 = scmp.ne.s32.totalorder %s161, %s164
      %p170 = scmp.eq.s32.totalorder %s36, 0
      %p171 = por %p169, %p170
      %p172 = scmp.ne.s32.totalorder %s161, %s164
      %p173 = scmp.eq.s32.totalorder %s41, 1
      %p174 = por %p172, %p173
      %p175 = scmp.ne.s32.totalorder %s164, %s165
      %p176 = scmp.eq.s32.totalorder %s41, 0
      %p177 = por %p175, %p176
      %p178 = scmp.ne.s32.totalorder %s164, %s165
      %p179 = scmp.eq.s32.totalorder %s42, 1
      %p180 = por %p178, %p179
      %p182 = scmp.ne.s32.totalorder %s165, %s181
      %p183 = scmp.eq.s32.totalorder %s42, 0
      %p184 = por %p182, %p183
      %s185 = ssub.s32 %s36, %s43
      %p186 = scmp.eq.s32.totalorder %s185, 0
      %s188 = sadd.s32 %s187, 1
      %s189 = scalar_select %p186, %s187, %s188
      %p192 = pneg %p186
      %p193 = scmp.eq.s32.totalorder %s36, 1
      %p194 = por %p192, %p193
      %p195 = scmp.ne.s32.totalorder %s187, %s190
      %p196 = scmp.eq.s32.totalorder %s36, 0
      %p197 = por %p195, %p196
      %p198 = scmp.ne.s32.totalorder %s187, %s190
      %p199 = scmp.eq.s32.totalorder %s41, 1
      %p200 = por %p198, %p199
      %p201 = scmp.ne.s32.totalorder %s190, %s191
      %p202 = scmp.eq.s32.totalorder %s41, 0
      %p203 = por %p201, %p202
      %p204 = scmp.ne.s32.totalorder %s190, %s191
      %p205 = scmp.eq.s32.totalorder %s42, 1
      %p206 = por %p204, %p205
      %p208 = scmp.ne.s32.totalorder %s191, %s207
      %p209 = scmp.eq.s32.totalorder %s42, 0
      %p210 = por %p208, %p209
      %s211 = ssub.s32 %s36, %s43
      %p212 = scmp.eq.s32.totalorder %s211, 0
      %s214 = sadd.s32 %s213, 1
      %s215 = scalar_select %p212, %s213, %s214
      %p218 = pneg %p212
      %p219 = scmp.eq.s32.totalorder %s36, 1
      %p220 = por %p218, %p219
      %p221 = scmp.ne.s32.totalorder %s213, %s216
      %p222 = scmp.eq.s32.totalorder %s36, 0
      %p223 = por %p221, %p222
      %p224 = scmp.ne.s32.totalorder %s213, %s216
      %p225 = scmp.eq.s32.totalorder %s41, 1
      %p226 = por %p224, %p225
      %p227 = scmp.ne.s32.totalorder %s216, %s217
      %p228 = scmp.eq.s32.totalorder %s41, 0
      %p229 = por %p227, %p228
      %p230 = scmp.ne.s32.totalorder %s216, %s217
      %p231 = scmp.eq.s32.totalorder %s42, 1
      %p232 = por %p230, %p231
      %p234 = scmp.ne.s32.totalorder %s217, %s233
      %p235 = scmp.eq.s32.totalorder %s42, 0
      %p236 = por %p234, %p235
      %s237 = ssub.s32 %s36, %s43
      %p238 = scmp.eq.s32.totalorder %s237, 0
      %s240 = sadd.s32 %s239, 1
      %s241 = scalar_select %p238, %s239, %s240
      %p244 = pneg %p238
      %p245 = scmp.eq.s32.totalorder %s36, 1
      %p246 = por %p244, %p245
      %p247 = scmp.ne.s32.totalorder %s239, %s242
      %p248 = scmp.eq.s32.totalorder %s36, 0
      %p249 = por %p247, %p248
      %p250 = scmp.ne.s32.totalorder %s239, %s242
      %p251 = scmp.eq.s32.totalorder %s41, 1
      %p252 = por %p250, %p251
      %p253 = scmp.ne.s32.totalorder %s242, %s243
      %p254 = scmp.eq.s32.totalorder %s41, 0
      %p255 = por %p253, %p254
      %p256 = scmp.ne.s32.totalorder %s242, %s243
      %p257 = scmp.eq.s32.totalorder %s42, 1
      %p258 = por %p256, %p257
      %p260 = scmp.ne.s32.totalorder %s243, %s259
      %p261 = scmp.eq.s32.totalorder %s42, 0
      %p262 = por %p260, %p261
      %s263 = ssub.s32 %s36, %s43
      %p264 = scmp.eq.s32.totalorder %s263, 0
      %s266 = sadd.s32 %s265, 1
      %s267 = scalar_select %p264, %s265, %s266
      %p270 = pneg %p264
      %p271 = scmp.eq.s32.totalorder %s36, 1
      %p272 = por %p270, %p271
      %p273 = scmp.ne.s32.totalorder %s265, %s268
      %p274 = scmp.eq.s32.totalorder %s36, 0
      %p275 = por %p273, %p274
      %p276 = scmp.ne.s32.totalorder %s265, %s268
      %p277 = scmp.eq.s32.totalorder %s41, 1
      %p278 = por %p276, %p277
      %p279 = scmp.ne.s32.totalorder %s268, %s269
      %p280 = scmp.eq.s32.totalorder %s41, 0
      %p281 = por %p279, %p280
      %p282 = scmp.ne.s32.totalorder %s268, %s269
      %p283 = scmp.eq.s32.totalorder %s42, 1
      %p284 = por %p282, %p283
      %p286 = scmp.ne.s32.totalorder %s269, %s285
      %p287 = scmp.eq.s32.totalorder %s42, 0
      %p288 = por %p286, %p287
      %s289 = ssub.s32 %s36, %s43
      %p290 = scmp.eq.s32.totalorder %s289, 0
      %s292 = sadd.s32 %s291, 1
      %s293 = scalar_select %p290, %s291, %s292
      %p296 = pneg %p290
      %p297 = scmp.eq.s32.totalorder %s36, 1
      %p298 = por %p296, %p297
      %p299 = scmp.ne.s32.totalorder %s291, %s294
      %p300 = scmp.eq.s32.totalorder %s36, 0
      %p301 = por %p299, %p300
      %p302 = scmp.ne.s32.totalorder %s291, %s294
      %p303 = scmp.eq.s32.totalorder %s41, 1
      %p304 = por %p302, %p303
      %p305 = scmp.ne.s32.totalorder %s294, %s295
      %p306 = scmp.eq.s32.totalorder %s41, 0
      %p307 = por %p305, %p306
      %p308 = scmp.ne.s32.totalorder %s294, %s295
      %p309 = scmp.eq.s32.totalorder %s42, 1
      %p310 = por %p308, %p309
      %p312 = scmp.ne.s32.totalorder %s295, %s311
      %p313 = scmp.eq.s32.totalorder %s42, 0
      %p314 = por %p312, %p313
      %s315 = ssub.s32 %s36, %s43
      %p316 = scmp.eq.s32.totalorder %s315, 0
      %s318 = sadd.s32 %s317, 1
      %s319 = scalar_select %p316, %s317, %s318
      %p322 = pneg %p316
      %p323 = scmp.eq.s32.totalorder %s36, 1
      %p324 = por %p322, %p323
      %p325 = scmp.ne.s32.totalorder %s317, %s320
      %p326 = scmp.eq.s32.totalorder %s36, 0
      %p327 = por %p325, %p326
      %p328 = scmp.ne.s32.totalorder %s317, %s320
      %p329 = scmp.eq.s32.totalorder %s41, 1
      %p330 = por %p328, %p329
      %p331 = scmp.ne.s32.totalorder %s320, %s321
      %p332 = scmp.eq.s32.totalorder %s41, 0
      %p333 = por %p331, %p332
      %p334 = scmp.ne.s32.totalorder %s320, %s321
      %p335 = scmp.eq.s32.totalorder %s42, 1
      %p336 = por %p334, %p335
      %p338 = scmp.ne.s32.totalorder %s321, %s337
      %p339 = scmp.eq.s32.totalorder %s42, 0
      %p340 = por %p338, %p339
      %s341 = ssub.s32 %s36, %s43
      %p342 = scmp.eq.s32.totalorder %s341, 0
      %s344 = sadd.s32 %s343, 1
      %s345 = scalar_select %p342, %s343, %s344
      %p348 = pneg %p342
      %p349 = scmp.eq.s32.totalorder %s36, 1
      %p350 = por %p348, %p349
      %p351 = scmp.ne.s32.totalorder %s343, %s346
      %p352 = scmp.eq.s32.totalorder %s36, 0
      %p353 = por %p351, %p352
      %p354 = scmp.ne.s32.totalorder %s343, %s346
      %p355 = scmp.eq.s32.totalorder %s41, 1
      %p356 = por %p354, %p355
      %p357 = scmp.ne.s32.totalorder %s346, %s347
      %p358 = scmp.eq.s32.totalorder %s41, 0
      %p359 = por %p357, %p358
      %p360 = scmp.ne.s32.totalorder %s346, %s347
      %p361 = scmp.eq.s32.totalorder %s42, 1
      %p362 = por %p360, %p361
      %p364 = scmp.ne.s32.totalorder %s347, %s363
      %p365 = scmp.eq.s32.totalorder %s42, 0
      %p366 = por %p364, %p365
      %s367 = ssub.s32 %s36, %s43
      %p368 = scmp.eq.s32.totalorder %s367, 0
      %s370 = sadd.s32 %s369, 1
      %s371 = scalar_select %p368, %s369, %s370
      %p374 = pneg %p368
      %p375 = scmp.eq.s32.totalorder %s36, 1
      %p376 = por %p374, %p375
      %p377 = scmp.ne.s32.totalorder %s369, %s372
      %p378 = scmp.eq.s32.totalorder %s36, 0
      %p379 = por %p377, %p378
      %p380 = scmp.ne.s32.totalorder %s369, %s372
      %p381 = scmp.eq.s32.totalorder %s41, 1
      %p382 = por %p380, %p381
      %p383 = scmp.ne.s32.totalorder %s372, %s373
      %p384 = scmp.eq.s32.totalorder %s41, 0
      %p385 = por %p383, %p384
      %p386 = scmp.ne.s32.totalorder %s372, %s373
      %p387 = scmp.eq.s32.totalorder %s42, 1
      %p388 = por %p386, %p387
      %p390 = scmp.ne.s32.totalorder %s373, %s389
      %p391 = scmp.eq.s32.totalorder %s42, 0
      %p392 = por %p390, %p391
      %s393 = ssub.s32 %s36, %s43
      %p394 = scmp.eq.s32.totalorder %s393, 0
      %s396 = sadd.s32 %s395, 1
      %s397 = scalar_select %p394, %s395, %s396
      %p400 = pneg %p394
      %p401 = scmp.eq.s32.totalorder %s36, 1
      %p402 = por %p400, %p401
      %p403 = scmp.ne.s32.totalorder %s395, %s398
      %p404 = scmp.eq.s32.totalorder %s36, 0
      %p405 = por %p403, %p404
      %p406 = scmp.ne.s32.totalorder %s395, %s398
      %p407 = scmp.eq.s32.totalorder %s41, 1
      %p408 = por %p406, %p407
      %p409 = scmp.ne.s32.totalorder %s398, %s399
      %p410 = scmp.eq.s32.totalorder %s41, 0
      %p411 = por %p409, %p410
      %p412 = scmp.ne.s32.totalorder %s398, %s399
      %p413 = scmp.eq.s32.totalorder %s42, 1
      %p414 = por %p412, %p413
      %p416 = scmp.ne.s32.totalorder %s399, %s415
      %p417 = scmp.eq.s32.totalorder %s42, 0
      %p418 = por %p416, %p417
      %s420 = sadd.s32 %s419, 1
      %p423 = scmp.eq.s32.totalorder %s36, 1
      %p424 = scmp.ne.s32.totalorder %s419, %s421
      %p425 = scmp.eq.s32.totalorder %s36, 0
      %p426 = por %p424, %p425
      %p427 = scmp.ne.s32.totalorder %s419, %s421
      %p428 = scmp.eq.s32.totalorder %s41, 1
      %p429 = por %p427, %p428
      %p430 = scmp.ne.s32.totalorder %s421, %s422
      %p431 = scmp.eq.s32.totalorder %s41, 0
      %p432 = por %p430, %p431
      %p433 = scmp.ne.s32.totalorder %s421, %s422
      %p434 = scmp.eq.s32.totalorder %s42, 1
      %p435 = por %p433, %p434
      %p437 = scmp.ne.s32.totalorder %s422, %s436
      %p438 = scmp.eq.s32.totalorder %s42, 0
      %p439 = por %p437, %p438
      %s441 = sadd.s32 %s440, 1
      %p444 = scmp.eq.s32.totalorder %s36, 1
      %p445 = scmp.ne.s32.totalorder %s440, %s442
      %p446 = scmp.eq.s32.totalorder %s36, 0
      %p447 = por %p445, %p446
      %p448 = scmp.ne.s32.totalorder %s440, %s442
      %p449 = scmp.eq.s32.totalorder %s41, 1
      %p450 = por %p448, %p449
      %p451 = scmp.ne.s32.totalorder %s442, %s443
      %p452 = scmp.eq.s32.totalorder %s41, 0
      %p453 = por %p451, %p452
      %p454 = scmp.ne.s32.totalorder %s442, %s443
      %p455 = scmp.eq.s32.totalorder %s42, 1
      %p456 = por %p454, %p455
      %p458 = scmp.ne.s32.totalorder %s443, %s457
      %p459 = scmp.eq.s32.totalorder %s42, 0
      %p460 = por %p458, %p459
      %s462 = sadd.s32 %s461, 1
      %p465 = scmp.eq.s32.totalorder %s36, 1
      %p466 = scmp.ne.s32.totalorder %s461, %s463
      %p467 = scmp.eq.s32.totalorder %s36, 0
      %p468 = por %p466, %p467
      %p469 = scmp.ne.s32.totalorder %s461, %s463
      %p470 = scmp.eq.s32.totalorder %s41, 1
      %p471 = por %p469, %p470
      %p472 = scmp.ne.s32.totalorder %s463, %s464
      %p473 = scmp.eq.s32.totalorder %s41, 0
      %p474 = por %p472, %p473
      %p475 = scmp.ne.s32.totalorder %s463, %s464
      %p476 = scmp.eq.s32.totalorder %s42, 1
      %p477 = por %p475, %p476
      %p479 = scmp.ne.s32.totalorder %s464, %s478
      %p480 = scmp.eq.s32.totalorder %s42, 0
      %p481 = por %p479, %p480
      %s483 = sadd.s32 %s482, 1
      %p486 = scmp.eq.s32.totalorder %s36, 1
      %p487 = scmp.ne.s32.totalorder %s482, %s484
      %p488 = scmp.eq.s32.totalorder %s36, 0
      %p489 = por %p487, %p488
      %p490 = scmp.ne.s32.totalorder %s482, %s484
      %p491 = scmp.eq.s32.totalorder %s41, 1
      %p492 = por %p490, %p491
      %p493 = scmp.ne.s32.totalorder %s484, %s485
      %p494 = scmp.eq.s32.totalorder %s41, 0
      %p495 = por %p493, %p494
      %p496 = scmp.ne.s32.totalorder %s484, %s485
      %p497 = scmp.eq.s32.totalorder %s42, 1
      %p498 = por %p496, %p497
      %p500 = scmp.ne.s32.totalorder %s485, %s499
      %p501 = scmp.eq.s32.totalorder %s42, 0
      %p502 = por %p500, %p501
      %s504 = sadd.s32 %s503, 1
      %p507 = scmp.eq.s32.totalorder %s36, 1
      %p508 = scmp.ne.s32.totalorder %s503, %s505
      %p509 = scmp.eq.s32.totalorder %s36, 0
      %p510 = por %p508, %p509
      %p511 = scmp.ne.s32.totalorder %s503, %s505
      %p512 = scmp.eq.s32.totalorder %s41, 1
      %p513 = por %p511, %p512
      %p514 = scmp.ne.s32.totalorder %s505, %s506
      %p515 = scmp.eq.s32.totalorder %s41, 0
      %p516 = por %p514, %p515
      %p517 = scmp.ne.s32.totalorder %s505, %s506
      %p518 = scmp.eq.s32.totalorder %s42, 1
      %p519 = por %p517, %p518
      %p521 = scmp.ne.s32.totalorder %s506, %s520
      %p522 = scmp.eq.s32.totalorder %s42, 0
      %p523 = por %p521, %p522
      %p524 = scmp.le.s32.totalorder 1, %s36
      %p525 = scmp.lt.s32.totalorder %s36, 3
      %p526 = pnand %p524, %p525
      %p527 = pneg %p526
      // Predicated region
      $region9: #{tpu_custom_call.1} parent=5 // pred_check
        _
      $region10: #{tpu_custom_call.1} parent=5 // pred_check_branch
        %529 = sbr.rel (%p526) target = $region12
      $region11: #{tpu_custom_call.1} parent=5 // pred_region
        %s530 = ssub.s32 %s36, 1
        // Predicated region
        $region13: #{tpu_custom_call.1} parent=11 // pred_check
          %p531 = pneg %p57
        $region14: #{tpu_custom_call.1} parent=11 // pred_check_branch
          %533 = sbr.rel (%p531) target = $region16
        $region15: #{tpu_custom_call.1} parent=11 // pred_region
          _
        $region16: #{tpu_custom_call.1} parent=11 // pred_fallthru
          _
        // Predicated region
        $region17: #{tpu_custom_call.1} parent=11 // pred_check
          %p534 = pneg %p78
        $region18: #{tpu_custom_call.1} parent=11 // pred_check_branch
          %536 = sbr.rel (%p534) target = $region20
        $region19: #{tpu_custom_call.1} parent=11 // pred_region
          %s538 = ssub.s32 2048, 2048
          %539 = vsyncadd [#allocation4], %s538
          %s540 = sshll.u32 [#allocation3], 4
          %s541 = int_to_ptr.vmem [resolvable:$true] %s540
          %546 = dma.hbm_to_vmem [thread:$0]  %s1, 2048, %s541, [#allocation4], 128, 128, 8
        $region20: #{tpu_custom_call.1} parent=11 // pred_fallthru
          _
        // Predicated region
        $region21: #{tpu_custom_call.1} parent=11 // pred_check
          %p547 = pneg %p99
        $region22: #{tpu_custom_call.1} parent=11 // pred_check_branch
          %549 = sbr.rel (%p547) target = $region24
        $region23: #{tpu_custom_call.1} parent=11 // pred_region
          _
        $region24: #{tpu_custom_call.1} parent=11 // pred_fallthru
          _
        // Predicated region
        $region25: #{tpu_custom_call.1} parent=11 // pred_check
          %p550 = pneg %p432
        $region26: #{tpu_custom_call.1} parent=11 // pred_check_branch
          %552 = sbr.rel (%p550) target = $region28
        $region27: #{tpu_custom_call.1} parent=11 // pred_region
          _
        $region28: #{tpu_custom_call.1} parent=11 // pred_fallthru
          _
        // Predicated region
        $region29: #{tpu_custom_call.1} parent=11 // pred_check
          %p553 = pneg %p453
        $region30: #{tpu_custom_call.1} parent=11 // pred_check_branch
          %555 = sbr.rel (%p553) target = $region32
        $region31: #{tpu_custom_call.1} parent=11 // pred_region
          _
        $region32: #{tpu_custom_call.1} parent=11 // pred_fallthru
          _
        // Predicated region
        $region33: #{tpu_custom_call.1} parent=11 // pred_check
          %p556 = pneg %p474
        $region34: #{tpu_custom_call.1} parent=11 // pred_check_branch
          %558 = sbr.rel (%p556) target = $region36
        $region35: #{tpu_custom_call.1} parent=11 // pred_region
          %s560 = ssub.s32 2048, 2048
          %561 = vsyncadd [#allocation13], %s560
          %s562 = sshll.u32 [#allocation14], 4
          %s563 = int_to_ptr.vmem [resolvable:$true] %s562
          %568 = dma.hbm_to_vmem [thread:$0]  %s17, 2048, %s563, [#allocation13], 64, 64, 4
        $region36: #{tpu_custom_call.1} parent=11 // pred_fallthru
          _
        // Predicated region
        $region37: #{tpu_custom_call.1} parent=11 // pred_check
          %p569 = pneg %p495
        $region38: #{tpu_custom_call.1} parent=11 // pred_check_branch
          %571 = sbr.rel (%p569) target = $region40
        $region39: #{tpu_custom_call.1} parent=11 // pred_region
          _
        $region40: #{tpu_custom_call.1} parent=11 // pred_fallthru
          _
      $region12: #{tpu_custom_call.1} parent=5 // pred_fallthru
        _
      %p572 = scmp.lt.s32.totalorder %s36, 2
      // Predicated region
      $region41: #{tpu_custom_call.1} parent=5 // pred_check
        %p573 = pneg %p572
      $region42: #{tpu_custom_call.1} parent=5 // pred_check_branch
        %575 = sbr.rel (%p573) target = $region44
      $region43: #{tpu_custom_call.1} parent=5 // pred_region
        // Predicated region
        $region45: #{tpu_custom_call.1} parent=43 // pred_check
          %p576 = pneg %p119
        $region46: #{tpu_custom_call.1} parent=43 // pred_check_branch
          %578 = sbr.rel (%p576) target = $region48
        $region47: #{tpu_custom_call.1} parent=43 // pred_region
          %s579 = sand.u32 %s36, 1
          %s580 = scalar_lea.sflag [#allocation7], %s579
          %s581 = sand.u32 %s109, 1
          %s582 = smul.addr %s581, 768
          %s583 = scalar_lea.vmem [#allocation6], %s582
          %s585 = ssub.s32 12288, 12288
          %586 = vsyncadd %s580, %s585
          %s587 = smul.addr %s36, 192
          %s588 = smul.addr %s587, 64
          %s589 = scalar_lea.hbm %s3, %s588
          %s590 = sshll.u32 %s583, 4
          %s591 = int_to_ptr.vmem [resolvable:$true] %s590
          %596 = dma.hbm_to_vmem [thread:$0]  %s589, 12288, %s591, %s580, 384, 384, 24
        $region48: #{tpu_custom_call.1} parent=43 // pred_fallthru
          _
        // Predicated region
        $region49: #{tpu_custom_call.1} parent=43 // pred_check
          %p597 = pneg %p145
        $region50: #{tpu_custom_call.1} parent=43 // pred_check_branch
          %599 = sbr.rel (%p597) target = $region52
        $region51: #{tpu_custom_call.1} parent=43 // pred_region
          %s600 = sand.u32 %s36, 1
          %s601 = scalar_lea.sflag [#allocation7], %s600
          %s602 = sand.u32 %s135, 1
          %s603 = smul.addr %s602, 6
          %s604 = scalar_lea.vmem [#allocation8], %s603
          %s606 = ssub.s32 96, 96
          %607 = vsyncadd %s601, %s606
          %s608 = smul.addr %s36, 6
          %s609 = smul.addr %s608, 16
          %s610 = scalar_lea.hbm %s4, %s609
          %s612 = sshll.u32 %s604, 4
          %s613 = int_to_ptr.vmem [resolvable:$true] %s612
          %615 = dma.hbm_to_vmem [thread:$0]  %s610, 96, %s613, %s601
        $region52: #{tpu_custom_call.1} parent=43 // pred_fallthru
          _
        // Predicated region
        $region53: #{tpu_custom_call.1} parent=43 // pred_check
          %p616 = pneg %p171
        $region54: #{tpu_custom_call.1} parent=43 // pred_check_branch
          %618 = sbr.rel (%p616) target = $region56
        $region55: #{tpu_custom_call.1} parent=43 // pred_region
          %s619 = sand.u32 %s36, 1
          %s620 = scalar_lea.sflag [#allocation10], %s619
          %s621 = sand.u32 %s161, 1
          %s622 = smul.addr %s621, 256
          %s623 = scalar_lea.vmem [#allocation9], %s622
          %s625 = ssub.s32 4096, 4096
          %626 = vsyncadd %s620, %s625
          %s627 = smul.addr %s36, 64
          %s628 = smul.addr %s627, 64
          %s629 = scalar_lea.hbm %s5, %s628
          %s630 = sshll.u32 %s623, 4
          %s631 = int_to_ptr.vmem [resolvable:$true] %s630
          %636 = dma.hbm_to_vmem [thread:$0]  %s629, 4096, %s631, %s620, 128, 128, 8
        $region56: #{tpu_custom_call.1} parent=43 // pred_fallthru
          _
        // Predicated region
        $region57: #{tpu_custom_call.1} parent=43 // pred_check
          %p637 = pneg %p197
        $region58: #{tpu_custom_call.1} parent=43 // pred_check_branch
          %639 = sbr.rel (%p637) target = $region60
        $region59: #{tpu_custom_call.1} parent=43 // pred_region
          %p640 = scmp.lt.s32.totalorder %s36, 1
          %s641 = scalar_select %p640, %s36, 1
          %s642 = smul.addr %s641, 2
          %s643 = scalar_lea.vmem %s6, %s642
        $region60: #{tpu_custom_call.1} parent=43 // pred_fallthru
          _
        // Predicated region
        $region61: #{tpu_custom_call.1} parent=43 // pred_check
          %p644 = pneg %p223
        $region62: #{tpu_custom_call.1} parent=43 // pred_check_branch
          %646 = sbr.rel (%p644) target = $region64
        $region63: #{tpu_custom_call.1} parent=43 // pred_region
          %p647 = scmp.lt.s32.totalorder %s36, 1
          %s648 = scalar_select %p647, %s36, 1
          %s649 = smul.addr %s648, 2
          %s650 = scalar_lea.vmem %s7, %s649
        $region64: #{tpu_custom_call.1} parent=43 // pred_fallthru
          _
        // Predicated region
        $region65: #{tpu_custom_call.1} parent=43 // pred_check
          %p651 = pneg %p249
        $region66: #{tpu_custom_call.1} parent=43 // pred_check_branch
          %653 = sbr.rel (%p651) target = $region68
        $region67: #{tpu_custom_call.1} parent=43 // pred_region
          %p654 = scmp.lt.s32.totalorder %s36, 1
          %s655 = scalar_select %p654, %s36, 1
          %s656 = smul.addr %s655, 2
          %s657 = scalar_lea.vmem %s8, %s656
        $region68: #{tpu_custom_call.1} parent=43 // pred_fallthru
          _
        // Predicated region
        $region69: #{tpu_custom_call.1} parent=43 // pred_check
          %p658 = pneg %p275
        $region70: #{tpu_custom_call.1} parent=43 // pred_check_branch
          %660 = sbr.rel (%p658) target = $region72
        $region71: #{tpu_custom_call.1} parent=43 // pred_region
          %s661 = sand.u32 %s36, 1
          %s662 = scalar_lea.sflag [#allocation10], %s661
          %s663 = sand.u32 %s265, 1
          %s664 = smul.addr %s663, 1024
          %s665 = scalar_lea.vmem [#allocation11], %s664
          %s667 = ssub.s32 16384, 16384
          %668 = vsyncadd %s662, %s667
          %s669 = smul.addr %s36, 256
          %s670 = smul.addr %s669, 64
          %s671 = scalar_lea.hbm %s9, %s670
          %s672 = sshll.u32 %s665, 4
          %s673 = int_to_ptr.vmem [resolvable:$true] %s672
          %678 = dma.hbm_to_vmem [thread:$0]  %s671, 16384, %s673, %s662, 512, 512, 32
        $region72: #{tpu_custom_call.1} parent=43 // pred_fallthru
          _
        // Predicated region
        $region73: #{tpu_custom_call.1} parent=43 // pred_check
          %p679 = pneg %p301
        $region74: #{tpu_custom_call.1} parent=43 // pred_check_branch
          %681 = sbr.rel (%p679) target = $region76
        $region75: #{tpu_custom_call.1} parent=43 // pred_region
          %p682 = scmp.lt.s32.totalorder %s36, 1
          %s683 = scalar_select %p682, %s36, 1
          %s684 = smul.addr %s683, 8
          %s685 = scalar_lea.vmem %s10, %s684
        $region76: #{tpu_custom_call.1} parent=43 // pred_fallthru
          _
        // Predicated region
        $region77: #{tpu_custom_call.1} parent=43 // pred_check
          %p686 = pneg %p327
        $region78: #{tpu_custom_call.1} parent=43 // pred_check_branch
          %688 = sbr.rel (%p686) target = $region80
        $region79: #{tpu_custom_call.1} parent=43 // pred_region
          %s689 = sand.u32 %s36, 1
          %s690 = scalar_lea.sflag [#allocation13], %s689
          %s691 = sand.u32 %s317, 1
          %s692 = smul.addr %s691, 1024
          %s693 = scalar_lea.vmem [#allocation12], %s692
          %s695 = ssub.s32 16384, 16384
          %696 = vsyncadd %s690, %s695
          %s697 = smul.addr %s36, 256
          %s698 = smul.addr %s697, 64
          %s699 = scalar_lea.hbm %s11, %s698
          %s700 = sshll.u32 %s693, 4
          %s701 = int_to_ptr.vmem [resolvable:$true] %s700
          %706 = dma.hbm_to_vmem [thread:$0]  %s699, 16384, %s701, %s690, 128, 128, 8
        $region80: #{tpu_custom_call.1} parent=43 // pred_fallthru
          _
        // Predicated region
        $region81: #{tpu_custom_call.1} parent=43 // pred_check
          %p707 = pneg %p353
        $region82: #{tpu_custom_call.1} parent=43 // pred_check_branch
          %709 = sbr.rel (%p707) target = $region84
        $region83: #{tpu_custom_call.1} parent=43 // pred_region
          %p710 = scmp.lt.s32.totalorder %s36, 1
          %s711 = scalar_select %p710, %s36, 1
          %s712 = smul.addr %s711, 2
          %s713 = scalar_lea.vmem %s12, %s712
        $region84: #{tpu_custom_call.1} parent=43 // pred_fallthru
          _
        // Predicated region
        $region85: #{tpu_custom_call.1} parent=43 // pred_check
          %p714 = pneg %p379
        $region86: #{tpu_custom_call.1} parent=43 // pred_check_branch
          %716 = sbr.rel (%p714) target = $region88
        $region87: #{tpu_custom_call.1} parent=43 // pred_region
          %p717 = scmp.lt.s32.totalorder %s36, 1
          %s718 = scalar_select %p717, %s36, 1
          %s719 = smul.addr %s718, 2
          %s720 = scalar_lea.vmem %s13, %s719
        $region88: #{tpu_custom_call.1} parent=43 // pred_fallthru
          _
        // Predicated region
        $region89: #{tpu_custom_call.1} parent=43 // pred_check
          %p721 = pneg %p405
        $region90: #{tpu_custom_call.1} parent=43 // pred_check_branch
          %723 = sbr.rel (%p721) target = $region92
        $region91: #{tpu_custom_call.1} parent=43 // pred_region
          %p724 = scmp.lt.s32.totalorder %s36, 1
          %s725 = scalar_select %p724, %s36, 1
          %s726 = smul.addr %s725, 2
          %s727 = scalar_lea.vmem %s14, %s726
        $region92: #{tpu_custom_call.1} parent=43 // pred_fallthru
          _
      $region44: #{tpu_custom_call.1} parent=5 // pred_fallthru
        _
      %p728 = scmp.le.s32.totalorder 1, %s36
      %p729 = scmp.lt.s32.totalorder %s36, 3
      %p730 = pnand %p728, %p729
      %p731 = pneg %p730
      // Predicated region
      $region93: #{tpu_custom_call.1} parent=5 // pred_check
        _
      $region94: #{tpu_custom_call.1} parent=5 // pred_check_branch
        %733 = sbr.rel (%p730) target = $region96
      $region95: #{tpu_custom_call.1} parent=5 // pred_region
        %s734 = ssub.s32 %s36, 1
        // Predicated region
        $region97: #{tpu_custom_call.1} parent=95 // pred_check
          %p735 = pneg %p78
        $region98: #{tpu_custom_call.1} parent=95 // pred_check_branch
          %737 = sbr.rel (%p735) target = $region100
        $region99: #{tpu_custom_call.1} parent=95 // pred_region
          %738 = dma.done [#allocation4], 2048
        $region100: #{tpu_custom_call.1} parent=95 // pred_fallthru
          _
        %s739 = sand.u32 %s41, 1
        %s740 = scalar_lea.sflag [#allocation7], %s739
        %s741 = sand.u32 %s112, 1
        %s742 = smul.addr %s741, 768
        %s743 = scalar_lea.vmem [#allocation6], %s742
        // Predicated region
        $region101: #{tpu_custom_call.1} parent=95 // pred_check
          %p744 = pneg %p125
        $region102: #{tpu_custom_call.1} parent=95 // pred_check_branch
          %746 = sbr.rel (%p744) target = $region104
        $region103: #{tpu_custom_call.1} parent=95 // pred_region
          %747 = dma.done %s740, 12288
        $region104: #{tpu_custom_call.1} parent=95 // pred_fallthru
          _
        %s748 = sand.u32 %s41, 1
        %s749 = scalar_lea.sflag [#allocation7], %s748
        %s750 = sand.u32 %s138, 1
        %s751 = smul.addr %s750, 6
        %s752 = scalar_lea.vmem [#allocation8], %s751
        // Predicated region
        $region105: #{tpu_custom_call.1} parent=95 // pred_check
          %p753 = pneg %p151
        $region106: #{tpu_custom_call.1} parent=95 // pred_check_branch
          %755 = sbr.rel (%p753) target = $region108
        $region107: #{tpu_custom_call.1} parent=95 // pred_region
          %756 = dma.done %s749, 96
        $region108: #{tpu_custom_call.1} parent=95 // pred_fallthru
          _
        %s757 = sand.u32 %s41, 1
        %s758 = scalar_lea.sflag [#allocation10], %s757
        %s759 = sand.u32 %s164, 1
        %s760 = smul.addr %s759, 256
        %s761 = scalar_lea.vmem [#allocation9], %s760
        // Predicated region
        $region109: #{tpu_custom_call.1} parent=95 // pred_check
          %p762 = pneg %p177
        $region110: #{tpu_custom_call.1} parent=95 // pred_check_branch
          %764 = sbr.rel (%p762) target = $region112
        $region111: #{tpu_custom_call.1} parent=95 // pred_region
          %765 = dma.done %s758, 4096
        $region112: #{tpu_custom_call.1} parent=95 // pred_fallthru
          _
        %s766 = sand.u32 %s41, 1
        %s767 = scalar_lea.sflag [#allocation10], %s766
        %s768 = sand.u32 %s268, 1
        %s769 = smul.addr %s768, 1024
        %s770 = scalar_lea.vmem [#allocation11], %s769
        // Predicated region
        $region113: #{tpu_custom_call.1} parent=95 // pred_check
          %p771 = pneg %p281
        $region114: #{tpu_custom_call.1} parent=95 // pred_check_branch
          %773 = sbr.rel (%p771) target = $region116
        $region115: #{tpu_custom_call.1} parent=95 // pred_region
          %774 = dma.done %s767, 16384
        $region116: #{tpu_custom_call.1} parent=95 // pred_fallthru
          _
        %s775 = sand.u32 %s41, 1
        %s776 = scalar_lea.sflag [#allocation13], %s775
        %s777 = sand.u32 %s320, 1
        %s778 = smul.addr %s777, 1024
        %s779 = scalar_lea.vmem [#allocation12], %s778
        // Predicated region
        $region117: #{tpu_custom_call.1} parent=95 // pred_check
          %p780 = pneg %p333
        $region118: #{tpu_custom_call.1} parent=95 // pred_check_branch
          %782 = sbr.rel (%p780) target = $region120
        $region119: #{tpu_custom_call.1} parent=95 // pred_region
          %783 = dma.done %s776, 16384
        $region120: #{tpu_custom_call.1} parent=95 // pred_fallthru
          _
        // Predicated region
        $region121: #{tpu_custom_call.1} parent=95 // pred_check
          %p784 = pneg %p474
        $region122: #{tpu_custom_call.1} parent=95 // pred_check_branch
          %786 = sbr.rel (%p784) target = $region124
        $region123: #{tpu_custom_call.1} parent=95 // pred_region
          %787 = dma.done [#allocation13], 2048
        $region124: #{tpu_custom_call.1} parent=95 // pred_fallthru
          _
        %p788 = pneg %p57
        %p789 = pneg %p54
        %p790 = pneg %p78
        %p791 = pneg %p75
        %p792 = pneg %p99
        %p793 = pneg %p96
        %s794 = sand.u32 %s41, 1
        %s795 = scalar_lea.sflag [#allocation7], %s794
        %s796 = sand.u32 %s112, 1
        %s797 = smul.addr %s796, 768
        %s798 = scalar_lea.vmem [#allocation6], %s797
        %p799 = pneg %p125
        %p800 = pneg %p122
        %s801 = sand.u32 %s41, 1
        %s802 = scalar_lea.sflag [#allocation7], %s801
        %s803 = sand.u32 %s138, 1
        %s804 = smul.addr %s803, 6
        %s805 = scalar_lea.vmem [#allocation8], %s804
        %p806 = pneg %p151
        %p807 = pneg %p148
        %s808 = sand.u32 %s41, 1
        %s809 = scalar_lea.sflag [#allocation10], %s808
        %s810 = sand.u32 %s164, 1
        %s811 = smul.addr %s810, 256
        %s812 = scalar_lea.vmem [#allocation9], %s811
        %p813 = pneg %p177
        %p814 = pneg %p174
        %p815 = scmp.lt.s32.totalorder %s41, 1
        %s816 = scalar_select %p815, %s41, 1
        %s817 = smul.addr %s816, 2
        %s818 = scalar_lea.vmem %s6, %s817
        %p819 = pneg %p203
        %p820 = pneg %p200
        %p821 = scmp.lt.s32.totalorder %s41, 1
        %s822 = scalar_select %p821, %s41, 1
        %s823 = smul.addr %s822, 2
        %s824 = scalar_lea.vmem %s7, %s823
        %p825 = pneg %p229
        %p826 = pneg %p226
        %p827 = scmp.lt.s32.totalorder %s41, 1
        %s828 = scalar_select %p827, %s41, 1
        %s829 = smul.addr %s828, 2
        %s830 = scalar_lea.vmem %s8, %s829
        %p831 = pneg %p255
        %p832 = pneg %p252
        %s833 = sand.u32 %s41, 1
        %s834 = scalar_lea.sflag [#allocation10], %s833
        %s835 = sand.u32 %s268, 1
        %s836 = smul.addr %s835, 1024
        %s837 = scalar_lea.vmem [#allocation11], %s836
        %p838 = pneg %p281
        %p839 = pneg %p278
        %p840 = scmp.lt.s32.totalorder %s41, 1
        %s841 = scalar_select %p840, %s41, 1
        %s842 = smul.addr %s841, 8
        %s843 = scalar_lea.vmem %s10, %s842
        %p844 = pneg %p307
        %p845 = pneg %p304
        %s846 = sand.u32 %s41, 1
        %s847 = scalar_lea.sflag [#allocation13], %s846
        %s848 = sand.u32 %s320, 1
        %s849 = smul.addr %s848, 1024
        %s850 = scalar_lea.vmem [#allocation12], %s849
        %p851 = pneg %p333
        %p852 = pneg %p330
        %p853 = scmp.lt.s32.totalorder %s41, 1
        %s854 = scalar_select %p853, %s41, 1
        %s855 = smul.addr %s854, 2
        %s856 = scalar_lea.vmem %s12, %s855
        %p857 = pneg %p359
        %p858 = pneg %p356
        %p859 = scmp.lt.s32.totalorder %s41, 1
        %s860 = scalar_select %p859, %s41, 1
        %s861 = smul.addr %s860, 2
        %s862 = scalar_lea.vmem %s13, %s861
        %p863 = pneg %p385
        %p864 = pneg %p382
        %p865 = scmp.lt.s32.totalorder %s41, 1
        %s866 = scalar_select %p865, %s41, 1
        %s867 = smul.addr %s866, 2
        %s868 = scalar_lea.vmem %s14, %s867
        %p869 = pneg %p411
        %p870 = pneg %p408
        %p871 = pneg %p432
        %p872 = pneg %p429
        %p873 = pneg %p453
        %p874 = pneg %p450
        %p875 = pneg %p474
        %p876 = pneg %p471
        %p877 = pneg %p495
        %p878 = pneg %p492
        %p879 = pneg %p516
        %p880 = pneg %p513
        %p881 = scmp.lt.s32.totalorder %s41, 1
        %s882 = scalar_select %p881, %s41, 1
        %s883 = smul.addr %s882, 2
        %s884 = scalar_lea.vmem %s6, %s883
        %p885 = scmp.lt.s32.totalorder %s41, 1
        %s886 = scalar_select %p885, %s41, 1
        %s887 = smul.addr %s886, 2
        %s888 = scalar_lea.vmem %s7, %s887
        %p889 = scmp.lt.s32.totalorder %s41, 1
        %s890 = scalar_select %p889, %s41, 1
        %s891 = smul.addr %s890, 2
        %s892 = scalar_lea.vmem %s8, %s891
        %p893 = scmp.lt.s32.totalorder %s41, 1
        %s894 = scalar_select %p893, %s41, 1
        %s895 = smul.addr %s894, 8
        %s896 = scalar_lea.vmem %s10, %s895
        %p897 = scmp.lt.s32.totalorder %s41, 1
        %s898 = scalar_select %p897, %s41, 1
        %s899 = smul.addr %s898, 2
        %s900 = scalar_lea.vmem %s12, %s899
        %p901 = scmp.lt.s32.totalorder %s41, 1
        %s902 = scalar_select %p901, %s41, 1
        %s903 = smul.addr %s902, 2
        %s904 = scalar_lea.vmem %s13, %s903
        %p905 = scmp.lt.s32.totalorder %s41, 1
        %s906 = scalar_select %p905, %s41, 1
        %s907 = smul.addr %s906, 2
        %s908 = scalar_lea.vmem %s14, %s907
        %p910 = scmp.eq.s32.totalorder %s41, 0
        // Predicated region
        $region125: #{tpu_custom_call.1} parent=95 // pred_check
          %p911 = pneg %p910
        $region126: #{tpu_custom_call.1} parent=95 // pred_check_branch
          %913 = sbr.rel (%p911) target = $region128
        $region127: #{tpu_custom_call.1} parent=95 // pred_region
          %v914 = vld [vmem:[%s0] sm:$0xff]
          %v915 = vld [vmem:[%s0 + $0x8] sm:$0xff]
          %v916 = vld [vmem:[%s0 + $0x10] sm:$0xff]
          %v917 = vld [vmem:[%s0 + $0x18] sm:$0xff]
          %v918 = vlaneseq
          %v919 = vand.u32 %v918, 127
          %920 = vset.pattern.permute.xlu0 0
          %921 = vperm.xlu0 %920, %v914
          %v922 = vpop.permute.xlu0 %921
          %923 = vset.pattern.permute.xlu0 0
          %924 = vperm.xlu0 %923, %v915
          %v925 = vpop.permute.xlu0 %924
          %926 = vset.pattern.permute.xlu0 0
          %927 = vperm.xlu0 %926, %v916
          %v928 = vpop.permute.xlu0 %927
          %929 = vset.pattern.permute.xlu0 0
          %930 = vperm.xlu0 %929, %v917
          %v931 = vpop.permute.xlu0 %930
          %vm932 = vcmp.eq.s32.totalorder %v922, %v919
          %vm933 = vcmp.eq.s32.totalorder %v925, %v919
          %vm934 = vcmp.eq.s32.totalorder %v928, %v919
          %vm935 = vcmp.eq.s32.totalorder %v931, %v919
          %v936 = vsel %vm932, 1, 0
          %v937 = vsel %vm933, 1, 0
          %v938 = vsel %vm934, 1, 0
          %v939 = vsel %vm935, 1, 0
          %v940 = vcvt.s32.f32 %v936
          %v941 = vcvt.s32.f32 %v937
          %v942 = vcvt.s32.f32 %v938
          %v943 = vcvt.s32.f32 %v939
          %v944 = vpack.c.bf16 %v941, %v940
          %v945 = vpack.c.bf16 %v943, %v942
          %v946 = vld [vmem:[#allocation3] sm:$0xff]
          %v947 = vld [vmem:[#allocation3 + $0x8] sm:$0xff]
          %v948 = vld [vmem:[#allocation3 + $0x10] sm:$0xff]
          %v949 = vld [vmem:[#allocation3 + $0x18] sm:$0xff]
          %v950 = vld [vmem:[#allocation3 + $0x20] sm:$0xff]
          %v951 = vld [vmem:[#allocation3 + $0x28] sm:$0xff]
          %v952 = vld [vmem:[#allocation3 + $0x30] sm:$0xff]
          %v953 = vld [vmem:[#allocation3 + $0x38] sm:$0xff]
          %v954 = vld [vmem:[#allocation3 + $0x40] sm:$0xff]
          %v955 = vld [vmem:[#allocation3 + $0x48] sm:$0xff]
          %v956 = vld [vmem:[#allocation3 + $0x50] sm:$0xff]
          %v957 = vld [vmem:[#allocation3 + $0x58] sm:$0xff]
          %v958 = vld [vmem:[#allocation3 + $0x60] sm:$0xff]
          %v959 = vld [vmem:[#allocation3 + $0x68] sm:$0xff]
          %v960 = vld [vmem:[#allocation3 + $0x70] sm:$0xff]
          %v961 = vld [vmem:[#allocation3 + $0x78] sm:$0xff]
          %v962 = vld [vmem:[%s2] sm:$0xff]
          %v963 = vld [vmem:[%s2 + $0x8] sm:$0xff]
          %v964 = vld [vmem:[%s2 + $0x10] sm:$0xff]
          %v965 = vld [vmem:[%s2 + $0x18] sm:$0xff]
          %v982 = vunpack.c.l.b16 %v946
          %v983 = vunpack.c.h.b16 %v946
          %v984 = vunpack.c.l.b16 %v947
          %v985 = vunpack.c.h.b16 %v947
          %v986 = vunpack.c.l.b16 %v948
          %v987 = vunpack.c.h.b16 %v948
          %v988 = vunpack.c.l.b16 %v949
          %v989 = vunpack.c.h.b16 %v949
          %v990 = vunpack.c.l.b16 %v950
          %v991 = vunpack.c.h.b16 %v950
          %v992 = vunpack.c.l.b16 %v951
          %v993 = vunpack.c.h.b16 %v951
          %v994 = vunpack.c.l.b16 %v952
          %v995 = vunpack.c.h.b16 %v952
          %v996 = vunpack.c.l.b16 %v953
          %v997 = vunpack.c.h.b16 %v953
          %v998 = vunpack.c.l.b16 %v954
          %v999 = vunpack.c.h.b16 %v954
          %v1000 = vunpack.c.l.b16 %v955
          %v1001 = vunpack.c.h.b16 %v955
          %v1002 = vunpack.c.l.b16 %v956
          %v1003 = vunpack.c.h.b16 %v956
          %v1004 = vunpack.c.l.b16 %v957
          %v1005 = vunpack.c.h.b16 %v957
          %v1006 = vunpack.c.l.b16 %v958
          %v1007 = vunpack.c.h.b16 %v958
          %v1008 = vunpack.c.l.b16 %v959
          %v1009 = vunpack.c.h.b16 %v959
          %v1010 = vunpack.c.l.b16 %v960
          %v1011 = vunpack.c.h.b16 %v960
          %v1012 = vunpack.c.l.b16 %v961
          %v1013 = vunpack.c.h.b16 %v961
          %v1014 = vpack.c.b16 %v984, %v982
          %v1015 = vpack.c.b16 %v985, %v983
          %v1016 = vpack.c.b16 %v988, %v986
          %v1017 = vpack.c.b16 %v989, %v987
          %v1018 = vpack.c.b16 %v992, %v990
          %v1019 = vpack.c.b16 %v993, %v991
          %v1020 = vpack.c.b16 %v996, %v994
          %v1021 = vpack.c.b16 %v997, %v995
          %v1022 = vpack.c.b16 %v1000, %v998
          %v1023 = vpack.c.b16 %v1001, %v999
          %v1024 = vpack.c.b16 %v1004, %v1002
          %v1025 = vpack.c.b16 %v1005, %v1003
          %v1026 = vpack.c.b16 %v1008, %v1006
          %v1027 = vpack.c.b16 %v1009, %v1007
          %v1028 = vpack.c.b16 %v1012, %v1010
          %v1029 = vpack.c.b16 %v1013, %v1011
          %1046 = vmatprep.subr.bf16.mxu0 %v1015
          %1047 = vmatpush1.bf16.msra.mxu0 %v1014
          %1048 = vmatprep.subr.bf16.mxu0 %v1017
          %1049 = vmatpush1.bf16.msra.mxu0 %v1016
          %1050 = vmatprep.subr.bf16.mxu0 %v1019
          %1051 = vmatpush1.bf16.msra.mxu0 %v1018
          %1052 = vmatprep.subr.bf16.mxu0 %v1021
          %1053 = vmatpush1.bf16.msra.mxu0 %v1020
          %1054 = vmatprep.subr.bf16.mxu0 %v1023
          %1055 = vmatpush1.bf16.msra.mxu0 %v1022
          %1056 = vmatprep.subr.bf16.mxu0 %v1025
          %1057 = vmatpush1.bf16.msra.mxu0 %v1024
          %1058 = vmatprep.subr.bf16.mxu0 %v1027
          %1059 = vmatpush1.bf16.msra.mxu0 %v1026
          %1060 = vmatprep.subr.bf16.mxu0 %v1029
          %1061 = vmatpush1.bf16.msra.mxu0 %v1028
          %1062 = vmatprep.subr.bf16.mxu0 0
          %1063 = vmatpush1.bf16.msra.mxu0 0
          %1064 = vmatprep.subr.bf16.mxu0 0
          %1065 = vmatpush1.bf16.msra.mxu0 0
          %1066 = vmatprep.subr.bf16.mxu0 0
          %1067 = vmatpush1.bf16.msra.mxu0 0
          %1068 = vmatprep.subr.bf16.mxu0 0
          %1069 = vmatpush1.bf16.msra.mxu0 0
          %1070 = vmatprep.subr.bf16.mxu0 0
          %1071 = vmatpush1.bf16.msra.mxu0 0
          %1072 = vmatprep.subr.bf16.mxu0 0
          %1073 = vmatpush1.bf16.msra.mxu0 0
          %1074 = vmatprep.subr.bf16.mxu0 0
          %1075 = vmatpush1.bf16.msra.mxu0 0
          %1076 = vmatprep.subr.bf16.mxu0 0
          %1077 = vmatpush1.bf16.msra.mxu0 0
          %1078 = vmatprep.mubr.bf16.mxu0 0
          %1079 = vmatmul.mubr.bf16.gmra.mrb[0].mxu0 %v944
          %v1080 = vpop.f32.mrb[0].mxu0
          %v1081 = vadd.f32 %v962, %v1080
          %v1082 = vpop.f32.mrb[0].mxu0
          %v1083 = vadd.f32 %v963, %v1082
          %v1084 = vpop.f32.mrb[0].mxu0
          %v1085 = vadd.f32 %v964, %v1084
          %v1086 = vpop.f32.mrb[0].mxu0
          %v1087 = vadd.f32 %v965, %v1086
          %1088 = vmatprep.mubr.bf16.mxu0 0
          %1089 = vmatmul.mubr.bf16.gmra.mrb[0].mxu0 %v945
          %v1090 = vpop.f32.mrb[0].mxu0
          %v1091 = vadd.f32 %v962, %v1090
          %v1092 = vpop.f32.mrb[0].mxu0
          %v1093 = vadd.f32 %v963, %v1092
          %v1094 = vpop.f32.mrb[0].mxu0
          %v1095 = vadd.f32 %v964, %v1094
          %v1096 = vpop.f32.mrb[0].mxu0
          %v1097 = vadd.f32 %v965, %v1096
          %1098 = vdwg.mxu0
          %1099 = vst [vmem:[#allocation2] sm:$0xff] %v1081
          %1100 = vst [vmem:[#allocation2 + $0x8] sm:$0xff] %v1083
          %1101 = vst [vmem:[#allocation2 + $0x10] sm:$0xff] %v1085
          %1102 = vst [vmem:[#allocation2 + $0x18] sm:$0xff] %v1087
          %1103 = vst [vmem:[#allocation2 + $0x20] sm:$0xff] %v1091
          %1104 = vst [vmem:[#allocation2 + $0x28] sm:$0xff] %v1093
          %1105 = vst [vmem:[#allocation2 + $0x30] sm:$0xff] %v1095
          %1106 = vst [vmem:[#allocation2 + $0x38] sm:$0xff] %v1097
        $region128: #{tpu_custom_call.1} parent=95 // pred_fallthru
          _
        %v1107 = vld [vmem:[#allocation2] sm:$0xff]
        %v1108 = vld [vmem:[#allocation2 + $0x8] sm:$0xff]
        %v1109 = vld [vmem:[#allocation2 + $0x10] sm:$0xff]
        %v1110 = vld [vmem:[#allocation2 + $0x18] sm:$0xff]
        %v1111 = vld [vmem:[#allocation2 + $0x20] sm:$0xff]
        %v1112 = vld [vmem:[#allocation2 + $0x28] sm:$0xff]
        %v1113 = vld [vmem:[#allocation2 + $0x30] sm:$0xff]
        %v1114 = vld [vmem:[#allocation2 + $0x38] sm:$0xff]
        %v1115 = vpack.c.bf16 %v1109, %v1107
        %v1116 = vpack.c.bf16 %v1110, %v1108
        %v1117 = vpack.c.bf16 %v1113, %v1111
        %v1118 = vpack.c.bf16 %v1114, %v1112
        %v1119 = vld [vmem:[%s743] sm:$0xff]
        %v1120 = vld [vmem:[%s743 + $0x8] sm:$0xff]
        %v1121 = vld [vmem:[%s743 + $0x10] sm:$0xff]
        %v1122 = vld [vmem:[%s743 + $0x18] sm:$0xff]
        %v1123 = vld [vmem:[%s743 + $0x20] sm:$0xff]
        %v1124 = vld [vmem:[%s743 + $0x28] sm:$0xff]
        %v1125 = vld [vmem:[%s743 + $0x30] sm:$0xff]
        %v1126 = vld [vmem:[%s743 + $0x38] sm:$0xff]
        %v1127 = vld [vmem:[%s743 + $0x40] sm:$0xff]
        %v1128 = vld [vmem:[%s743 + $0x48] sm:$0xff]
        %v1129 = vld [vmem:[%s743 + $0x50] sm:$0xff]
        %v1130 = vld [vmem:[%s743 + $0x58] sm:$0xff]
        %v1131 = vld [vmem:[%s743 + $0x60] sm:$0xff]
        %v1132 = vld [vmem:[%s743 + $0x68] sm:$0xff]
        %v1133 = vld [vmem:[%s743 + $0x70] sm:$0xff]
        %v1134 = vld [vmem:[%s743 + $0x78] sm:$0xff]
        %v1135 = vld [vmem:[%s743 + $0x80] sm:$0xff]
        %v1136 = vld [vmem:[%s743 + $0x88] sm:$0xff]
        %v1137 = vld [vmem:[%s743 + $0x90] sm:$0xff]
        %v1138 = vld [vmem:[%s743 + $0x98] sm:$0xff]
        %v1139 = vld [vmem:[%s743 + $0xa0] sm:$0xff]
        %v1140 = vld [vmem:[%s743 + $0xa8] sm:$0xff]
        %v1141 = vld [vmem:[%s743 + $0xb0] sm:$0xff]
        %v1142 = vld [vmem:[%s743 + $0xb8] sm:$0xff]
        %v1143 = vld [vmem:[%s743 + $0xc0] sm:$0xff]
        %v1144 = vld [vmem:[%s743 + $0xc8] sm:$0xff]
        %v1145 = vld [vmem:[%s743 + $0xd0] sm:$0xff]
        %v1146 = vld [vmem:[%s743 + $0xd8] sm:$0xff]
        %v1147 = vld [vmem:[%s743 + $0xe0] sm:$0xff]
        %v1148 = vld [vmem:[%s743 + $0xe8] sm:$0xff]
        %v1149 = vld [vmem:[%s743 + $0xf0] sm:$0xff]
        %v1150 = vld [vmem:[%s743 + $0xf8] sm:$0xff]
        %v1151 = vld [vmem:[%s743 + $0x100] sm:$0xff]
        %v1152 = vld [vmem:[%s743 + $0x108] sm:$0xff]
        %v1153 = vld [vmem:[%s743 + $0x110] sm:$0xff]
        %v1154 = vld [vmem:[%s743 + $0x118] sm:$0xff]
        %v1155 = vld [vmem:[%s743 + $0x120] sm:$0xff]
        %v1156 = vld [vmem:[%s743 + $0x128] sm:$0xff]
        %v1157 = vld [vmem:[%s743 + $0x130] sm:$0xff]
        %v1158 = vld [vmem:[%s743 + $0x138] sm:$0xff]
        %v1159 = vld [vmem:[%s743 + $0x140] sm:$0xff]
        %v1160 = vld [vmem:[%s743 + $0x148] sm:$0xff]
        %v1161 = vld [vmem:[%s743 + $0x150] sm:$0xff]
        %v1162 = vld [vmem:[%s743 + $0x158] sm:$0xff]
        %v1163 = vld [vmem:[%s743 + $0x160] sm:$0xff]
        %v1164 = vld [vmem:[%s743 + $0x168] sm:$0xff]
        %v1165 = vld [vmem:[%s743 + $0x170] sm:$0xff]
        %v1166 = vld [vmem:[%s743 + $0x178] sm:$0xff]
        %v1167 = vld [vmem:[%s743 + $0x180] sm:$0xff]
        %v1168 = vld [vmem:[%s743 + $0x188] sm:$0xff]
        %v1169 = vld [vmem:[%s743 + $0x190] sm:$0xff]
        %v1170 = vld [vmem:[%s743 + $0x198] sm:$0xff]
        %v1171 = vld [vmem:[%s743 + $0x1a0] sm:$0xff]
        %v1172 = vld [vmem:[%s743 + $0x1a8] sm:$0xff]
        %v1173 = vld [vmem:[%s743 + $0x1b0] sm:$0xff]
        %v1174 = vld [vmem:[%s743 + $0x1b8] sm:$0xff]
        %v1175 = vld [vmem:[%s743 + $0x1c0] sm:$0xff]
        %v1176 = vld [vmem:[%s743 + $0x1c8] sm:$0xff]
        %v1177 = vld [vmem:[%s743 + $0x1d0] sm:$0xff]
        %v1178 = vld [vmem:[%s743 + $0x1d8] sm:$0xff]
        %v1179 = vld [vmem:[%s743 + $0x1e0] sm:$0xff]
        %v1180 = vld [vmem:[%s743 + $0x1e8] sm:$0xff]
        %v1181 = vld [vmem:[%s743 + $0x1f0] sm:$0xff]
        %v1182 = vld [vmem:[%s743 + $0x1f8] sm:$0xff]
        %v1183 = vld [vmem:[%s743 + $0x200] sm:$0xff]
        %v1184 = vld [vmem:[%s743 + $0x208] sm:$0xff]
        %v1185 = vld [vmem:[%s743 + $0x210] sm:$0xff]
        %v1186 = vld [vmem:[%s743 + $0x218] sm:$0xff]
        %v1187 = vld [vmem:[%s743 + $0x220] sm:$0xff]
        %v1188 = vld [vmem:[%s743 + $0x228] sm:$0xff]
        %v1189 = vld [vmem:[%s743 + $0x230] sm:$0xff]
        %v1190 = vld [vmem:[%s743 + $0x238] sm:$0xff]
        %v1191 = vld [vmem:[%s743 + $0x240] sm:$0xff]
        %v1192 = vld [vmem:[%s743 + $0x248] sm:$0xff]
        %v1193 = vld [vmem:[%s743 + $0x250] sm:$0xff]
        %v1194 = vld [vmem:[%s743 + $0x258] sm:$0xff]
        %v1195 = vld [vmem:[%s743 + $0x260] sm:$0xff]
        %v1196 = vld [vmem:[%s743 + $0x268] sm:$0xff]
        %v1197 = vld [vmem:[%s743 + $0x270] sm:$0xff]
        %v1198 = vld [vmem:[%s743 + $0x278] sm:$0xff]
        %v1199 = vld [vmem:[%s743 + $0x280] sm:$0xff]
        %v1200 = vld [vmem:[%s743 + $0x288] sm:$0xff]
        %v1201 = vld [vmem:[%s743 + $0x290] sm:$0xff]
        %v1202 = vld [vmem:[%s743 + $0x298] sm:$0xff]
        %v1203 = vld [vmem:[%s743 + $0x2a0] sm:$0xff]
        %v1204 = vld [vmem:[%s743 + $0x2a8] sm:$0xff]
        %v1205 = vld [vmem:[%s743 + $0x2b0] sm:$0xff]
        %v1206 = vld [vmem:[%s743 + $0x2b8] sm:$0xff]
        %v1207 = vld [vmem:[%s743 + $0x2c0] sm:$0xff]
        %v1208 = vld [vmem:[%s743 + $0x2c8] sm:$0xff]
        %v1209 = vld [vmem:[%s743 + $0x2d0] sm:$0xff]
        %v1210 = vld [vmem:[%s743 + $0x2d8] sm:$0xff]
        %v1211 = vld [vmem:[%s743 + $0x2e0] sm:$0xff]
        %v1212 = vld [vmem:[%s743 + $0x2e8] sm:$0xff]
        %v1213 = vld [vmem:[%s743 + $0x2f0] sm:$0xff]
        %v1214 = vld [vmem:[%s743 + $0x2f8] sm:$0xff]
        %v1215 = vld [vmem:[%s752] sm:$0x3f]
        %v1217 = vlaneseq
        %v1218 = vshrl.u32 %v1217, 7
        %v1219 = vsub.s32 0, %v1218
        %v1220 = vrot.slane %v1215, %v1219
        %v1221 = vlaneseq
        %v1222 = vshrl.u32 %v1221, 7
        %v1223 = vsub.s32 1, %v1222
        %v1224 = vrot.slane %v1215, %v1223
        %v1225 = vlaneseq
        %v1226 = vshrl.u32 %v1225, 7
        %v1227 = vsub.s32 2, %v1226
        %v1228 = vrot.slane %v1215, %v1227
        %v1229 = vlaneseq
        %v1230 = vshrl.u32 %v1229, 7
        %v1231 = vsub.s32 3, %v1230
        %v1232 = vrot.slane %v1215, %v1231
        %v1233 = vlaneseq
        %v1234 = vshrl.u32 %v1233, 7
        %v1235 = vsub.s32 4, %v1234
        %v1236 = vrot.slane %v1215, %v1235
        %v1237 = vlaneseq
        %v1238 = vshrl.u32 %v1237, 7
        %v1239 = vsub.s32 5, %v1238
        %v1240 = vrot.slane %v1215, %v1239
        %v1343 = vunpack.c.l.b16 %v1119
        %v1344 = vunpack.c.h.b16 %v1119
        %v1345 = vunpack.c.l.b16 %v1120
        %v1346 = vunpack.c.h.b16 %v1120
        %v1347 = vunpack.c.l.b16 %v1121
        %v1348 = vunpack.c.h.b16 %v1121
        %v1349 = vunpack.c.l.b16 %v1122
        %v1350 = vunpack.c.h.b16 %v1122
        %v1351 = vunpack.c.l.b16 %v1123
        %v1352 = vunpack.c.h.b16 %v1123
        %v1353 = vunpack.c.l.b16 %v1124
        %v1354 = vunpack.c.h.b16 %v1124
        %v1355 = vunpack.c.l.b16 %v1125
        %v1356 = vunpack.c.h.b16 %v1125
        %v1357 = vunpack.c.l.b16 %v1126
        %v1358 = vunpack.c.h.b16 %v1126
        %v1359 = vunpack.c.l.b16 %v1127
        %v1360 = vunpack.c.h.b16 %v1127
        %v1361 = vunpack.c.l.b16 %v1128
        %v1362 = vunpack.c.h.b16 %v1128
        %v1363 = vunpack.c.l.b16 %v1129
        %v1364 = vunpack.c.h.b16 %v1129
        %v1365 = vunpack.c.l.b16 %v1130
        %v1366 = vunpack.c.h.b16 %v1130
        %v1367 = vunpack.c.l.b16 %v1131
        %v1368 = vunpack.c.h.b16 %v1131
        %v1369 = vunpack.c.l.b16 %v1132
        %v1370 = vunpack.c.h.b16 %v1132
        %v1371 = vunpack.c.l.b16 %v1133
        %v1372 = vunpack.c.h.b16 %v1133
        %v1373 = vunpack.c.l.b16 %v1134
        %v1374 = vunpack.c.h.b16 %v1134
        %v1375 = vunpack.c.l.b16 %v1135
        %v1376 = vunpack.c.h.b16 %v1135
        %v1377 = vunpack.c.l.b16 %v1136
        %v1378 = vunpack.c.h.b16 %v1136
        %v1379 = vunpack.c.l.b16 %v1137
        %v1380 = vunpack.c.h.b16 %v1137
        %v1381 = vunpack.c.l.b16 %v1138
        %v1382 = vunpack.c.h.b16 %v1138
        %v1383 = vunpack.c.l.b16 %v1139
        %v1384 = vunpack.c.h.b16 %v1139
        %v1385 = vunpack.c.l.b16 %v1140
        %v1386 = vunpack.c.h.b16 %v1140
        %v1387 = vunpack.c.l.b16 %v1141
        %v1388 = vunpack.c.h.b16 %v1141
        %v1389 = vunpack.c.l.b16 %v1142
        %v1390 = vunpack.c.h.b16 %v1142
        %v1391 = vunpack.c.l.b16 %v1143
        %v1392 = vunpack.c.h.b16 %v1143
        %v1393 = vunpack.c.l.b16 %v1144
        %v1394 = vunpack.c.h.b16 %v1144
        %v1395 = vunpack.c.l.b16 %v1145
        %v1396 = vunpack.c.h.b16 %v1145
        %v1397 = vunpack.c.l.b16 %v1146
        %v1398 = vunpack.c.h.b16 %v1146
        %v1399 = vunpack.c.l.b16 %v1147
        %v1400 = vunpack.c.h.b16 %v1147
        %v1401 = vunpack.c.l.b16 %v1148
        %v1402 = vunpack.c.h.b16 %v1148
        %v1403 = vunpack.c.l.b16 %v1149
        %v1404 = vunpack.c.h.b16 %v1149
        %v1405 = vunpack.c.l.b16 %v1150
        %v1406 = vunpack.c.h.b16 %v1150
        %v1407 = vunpack.c.l.b16 %v1151
        %v1408 = vunpack.c.h.b16 %v1151
        %v1409 = vunpack.c.l.b16 %v1152
        %v1410 = vunpack.c.h.b16 %v1152
        %v1411 = vunpack.c.l.b16 %v1153
        %v1412 = vunpack.c.h.b16 %v1153
        %v1413 = vunpack.c.l.b16 %v1154
        %v1414 = vunpack.c.h.b16 %v1154
        %v1415 = vunpack.c.l.b16 %v1155
        %v1416 = vunpack.c.h.b16 %v1155
        %v1417 = vunpack.c.l.b16 %v1156
        %v1418 = vunpack.c.h.b16 %v1156
        %v1419 = vunpack.c.l.b16 %v1157
        %v1420 = vunpack.c.h.b16 %v1157
        %v1421 = vunpack.c.l.b16 %v1158
        %v1422 = vunpack.c.h.b16 %v1158
        %v1423 = vunpack.c.l.b16 %v1159
        %v1424 = vunpack.c.h.b16 %v1159
        %v1425 = vunpack.c.l.b16 %v1160
        %v1426 = vunpack.c.h.b16 %v1160
        %v1427 = vunpack.c.l.b16 %v1161
        %v1428 = vunpack.c.h.b16 %v1161
        %v1429 = vunpack.c.l.b16 %v1162
        %v1430 = vunpack.c.h.b16 %v1162
        %v1431 = vunpack.c.l.b16 %v1163
        %v1432 = vunpack.c.h.b16 %v1163
        %v1433 = vunpack.c.l.b16 %v1164
        %v1434 = vunpack.c.h.b16 %v1164
        %v1435 = vunpack.c.l.b16 %v1165
        %v1436 = vunpack.c.h.b16 %v1165
        %v1437 = vunpack.c.l.b16 %v1166
        %v1438 = vunpack.c.h.b16 %v1166
        %v1439 = vunpack.c.l.b16 %v1167
        %v1440 = vunpack.c.h.b16 %v1167
        %v1441 = vunpack.c.l.b16 %v1168
        %v1442 = vunpack.c.h.b16 %v1168
        %v1443 = vunpack.c.l.b16 %v1169
        %v1444 = vunpack.c.h.b16 %v1169
        %v1445 = vunpack.c.l.b16 %v1170
        %v1446 = vunpack.c.h.b16 %v1170
        %v1447 = vunpack.c.l.b16 %v1171
        %v1448 = vunpack.c.h.b16 %v1171
        %v1449 = vunpack.c.l.b16 %v1172
        %v1450 = vunpack.c.h.b16 %v1172
        %v1451 = vunpack.c.l.b16 %v1173
        %v1452 = vunpack.c.h.b16 %v1173
        %v1453 = vunpack.c.l.b16 %v1174
        %v1454 = vunpack.c.h.b16 %v1174
        %v1455 = vunpack.c.l.b16 %v1175
        %v1456 = vunpack.c.h.b16 %v1175
        %v1457 = vunpack.c.l.b16 %v1176
        %v1458 = vunpack.c.h.b16 %v1176
        %v1459 = vunpack.c.l.b16 %v1177
        %v1460 = vunpack.c.h.b16 %v1177
        %v1461 = vunpack.c.l.b16 %v1178
        %v1462 = vunpack.c.h.b16 %v1178
        %v1463 = vunpack.c.l.b16 %v1179
        %v1464 = vunpack.c.h.b16 %v1179
        %v1465 = vunpack.c.l.b16 %v1180
        %v1466 = vunpack.c.h.b16 %v1180
        %v1467 = vunpack.c.l.b16 %v1181
        %v1468 = vunpack.c.h.b16 %v1181
        %v1469 = vunpack.c.l.b16 %v1182
        %v1470 = vunpack.c.h.b16 %v1182
        %v1471 = vunpack.c.l.b16 %v1183
        %v1472 = vunpack.c.h.b16 %v1183
        %v1473 = vunpack.c.l.b16 %v1184
        %v1474 = vunpack.c.h.b16 %v1184
        %v1475 = vunpack.c.l.b16 %v1185
        %v1476 = vunpack.c.h.b16 %v1185
        %v1477 = vunpack.c.l.b16 %v1186
        %v1478 = vunpack.c.h.b16 %v1186
        %v1479 = vunpack.c.l.b16 %v1187
        %v1480 = vunpack.c.h.b16 %v1187
        %v1481 = vunpack.c.l.b16 %v1188
        %v1482 = vunpack.c.h.b16 %v1188
        %v1483 = vunpack.c.l.b16 %v1189
        %v1484 = vunpack.c.h.b16 %v1189
        %v1485 = vunpack.c.l.b16 %v1190
        %v1486 = vunpack.c.h.b16 %v1190
        %v1487 = vunpack.c.l.b16 %v1191
        %v1488 = vunpack.c.h.b16 %v1191
        %v1489 = vunpack.c.l.b16 %v1192
        %v1490 = vunpack.c.h.b16 %v1192
        %v1491 = vunpack.c.l.b16 %v1193
        %v1492 = vunpack.c.h.b16 %v1193
        %v1493 = vunpack.c.l.b16 %v1194
        %v1494 = vunpack.c.h.b16 %v1194
        %v1495 = vunpack.c.l.b16 %v1195
        %v1496 = vunpack.c.h.b16 %v1195
        %v1497 = vunpack.c.l.b16 %v1196
        %v1498 = vunpack.c.h.b16 %v1196
        %v1499 = vunpack.c.l.b16 %v1197
        %v1500 = vunpack.c.h.b16 %v1197
        %v1501 = vunpack.c.l.b16 %v1198
        %v1502 = vunpack.c.h.b16 %v1198
        %v1503 = vunpack.c.l.b16 %v1199
        %v1504 = vunpack.c.h.b16 %v1199
        %v1505 = vunpack.c.l.b16 %v1200
        %v1506 = vunpack.c.h.b16 %v1200
        %v1507 = vunpack.c.l.b16 %v1201
        %v1508 = vunpack.c.h.b16 %v1201
        %v1509 = vunpack.c.l.b16 %v1202
        %v1510 = vunpack.c.h.b16 %v1202
        %v1511 = vunpack.c.l.b16 %v1203
        %v1512 = vunpack.c.h.b16 %v1203
        %v1513 = vunpack.c.l.b16 %v1204
        %v1514 = vunpack.c.h.b16 %v1204
        %v1515 = vunpack.c.l.b16 %v1205
        %v1516 = vunpack.c.h.b16 %v1205
        %v1517 = vunpack.c.l.b16 %v1206
        %v1518 = vunpack.c.h.b16 %v1206
        %v1519 = vunpack.c.l.b16 %v1207
        %v1520 = vunpack.c.h.b16 %v1207
        %v1521 = vunpack.c.l.b16 %v1208
        %v1522 = vunpack.c.h.b16 %v1208
        %v1523 = vunpack.c.l.b16 %v1209
        %v1524 = vunpack.c.h.b16 %v1209
        %v1525 = vunpack.c.l.b16 %v1210
        %v1526 = vunpack.c.h.b16 %v1210
        %v1527 = vunpack.c.l.b16 %v1211
        %v1528 = vunpack.c.h.b16 %v1211
        %v1529 = vunpack.c.l.b16 %v1212
        %v1530 = vunpack.c.h.b16 %v1212
        %v1531 = vunpack.c.l.b16 %v1213
        %v1532 = vunpack.c.h.b16 %v1213
        %v1533 = vunpack.c.l.b16 %v1214
        %v1534 = vunpack.c.h.b16 %v1214
        %v1535 = vpack.c.b16 %v1349, %v1343
        %v1536 = vpack.c.b16 %v1350, %v1344
        %v1537 = vpack.c.b16 %v1351, %v1345
        %v1538 = vpack.c.b16 %v1352, %v1346
        %v1539 = vpack.c.b16 %v1353, %v1347
        %v1540 = vpack.c.b16 %v1354, %v1348
        %v1541 = vpack.c.b16 %v1361, %v1355
        %v1542 = vpack.c.b16 %v1362, %v1356
        %v1543 = vpack.c.b16 %v1363, %v1357
        %v1544 = vpack.c.b16 %v1364, %v1358
        %v1545 = vpack.c.b16 %v1365, %v1359
        %v1546 = vpack.c.b16 %v1366, %v1360
        %v1547 = vpack.c.b16 %v1373, %v1367
        %v1548 = vpack.c.b16 %v1374, %v1368
        %v1549 = vpack.c.b16 %v1375, %v1369
        %v1550 = vpack.c.b16 %v1376, %v1370
        %v1551 = vpack.c.b16 %v1377, %v1371
        %v1552 = vpack.c.b16 %v1378, %v1372
        %v1553 = vpack.c.b16 %v1385, %v1379
        %v1554 = vpack.c.b16 %v1386, %v1380
        %v1555 = vpack.c.b16 %v1387, %v1381
        %v1556 = vpack.c.b16 %v1388, %v1382
        %v1557 = vpack.c.b16 %v1389, %v1383
        %v1558 = vpack.c.b16 %v1390, %v1384
        %v1559 = vpack.c.b16 %v1397, %v1391
        %v1560 = vpack.c.b16 %v1398, %v1392
        %v1561 = vpack.c.b16 %v1399, %v1393
        %v1562 = vpack.c.b16 %v1400, %v1394
        %v1563 = vpack.c.b16 %v1401, %v1395
        %v1564 = vpack.c.b16 %v1402, %v1396
        %v1565 = vpack.c.b16 %v1409, %v1403
        %v1566 = vpack.c.b16 %v1410, %v1404
        %v1567 = vpack.c.b16 %v1411, %v1405
        %v1568 = vpack.c.b16 %v1412, %v1406
        %v1569 = vpack.c.b16 %v1413, %v1407
        %v1570 = vpack.c.b16 %v1414, %v1408
        %v1571 = vpack.c.b16 %v1421, %v1415
        %v1572 = vpack.c.b16 %v1422, %v1416
        %v1573 = vpack.c.b16 %v1423, %v1417
        %v1574 = vpack.c.b16 %v1424, %v1418
        %v1575 = vpack.c.b16 %v1425, %v1419
        %v1576 = vpack.c.b16 %v1426, %v1420
        %v1577 = vpack.c.b16 %v1433, %v1427
        %v1578 = vpack.c.b16 %v1434, %v1428
        %v1579 = vpack.c.b16 %v1435, %v1429
        %v1580 = vpack.c.b16 %v1436, %v1430
        %v1581 = vpack.c.b16 %v1437, %v1431
        %v1582 = vpack.c.b16 %v1438, %v1432
        %v1583 = vpack.c.b16 %v1445, %v1439
        %v1584 = vpack.c.b16 %v1446, %v1440
        %v1585 = vpack.c.b16 %v1447, %v1441
        %v1586 = vpack.c.b16 %v1448, %v1442
        %v1587 = vpack.c.b16 %v1449, %v1443
        %v1588 = vpack.c.b16 %v1450, %v1444
        %v1589 = vpack.c.b16 %v1457, %v1451
        %v1590 = vpack.c.b16 %v1458, %v1452
        %v1591 = vpack.c.b16 %v1459, %v1453
        %v1592 = vpack.c.b16 %v1460, %v1454
        %v1593 = vpack.c.b16 %v1461, %v1455
        %v1594 = vpack.c.b16 %v1462, %v1456
        %v1595 = vpack.c.b16 %v1469, %v1463
        %v1596 = vpack.c.b16 %v1470, %v1464
        %v1597 = vpack.c.b16 %v1471, %v1465
        %v1598 = vpack.c.b16 %v1472, %v1466
        %v1599 = vpack.c.b16 %v1473, %v1467
        %v1600 = vpack.c.b16 %v1474, %v1468
        %v1601 = vpack.c.b16 %v1481, %v1475
        %v1602 = vpack.c.b16 %v1482, %v1476
        %v1603 = vpack.c.b16 %v1483, %v1477
        %v1604 = vpack.c.b16 %v1484, %v1478
        %v1605 = vpack.c.b16 %v1485, %v1479
        %v1606 = vpack.c.b16 %v1486, %v1480
        %v1607 = vpack.c.b16 %v1493, %v1487
        %v1608 = vpack.c.b16 %v1494, %v1488
        %v1609 = vpack.c.b16 %v1495, %v1489
        %v1610 = vpack.c.b16 %v1496, %v1490
        %v1611 = vpack.c.b16 %v1497, %v1491
        %v1612 = vpack.c.b16 %v1498, %v1492
        %v1613 = vpack.c.b16 %v1505, %v1499
        %v1614 = vpack.c.b16 %v1506, %v1500
        %v1615 = vpack.c.b16 %v1507, %v1501
        %v1616 = vpack.c.b16 %v1508, %v1502
        %v1617 = vpack.c.b16 %v1509, %v1503
        %v1618 = vpack.c.b16 %v1510, %v1504
        %v1619 = vpack.c.b16 %v1517, %v1511
        %v1620 = vpack.c.b16 %v1518, %v1512
        %v1621 = vpack.c.b16 %v1519, %v1513
        %v1622 = vpack.c.b16 %v1520, %v1514
        %v1623 = vpack.c.b16 %v1521, %v1515
        %v1624 = vpack.c.b16 %v1522, %v1516
        %v1625 = vpack.c.b16 %v1529, %v1523
        %v1626 = vpack.c.b16 %v1530, %v1524
        %v1627 = vpack.c.b16 %v1531, %v1525
        %v1628 = vpack.c.b16 %v1532, %v1526
        %v1629 = vpack.c.b16 %v1533, %v1527
        %v1630 = vpack.c.b16 %v1534, %v1528
        %1727 = vmatprep.subr.bf16.mxu0 %v1536
        %1728 = vmatpush1.bf16.msra.mxu0 %v1535
        %1729 = vmatprep.subr.bf16.mxu0 %v1542
        %1730 = vmatpush1.bf16.msra.mxu0 %v1541
        %1731 = vmatprep.subr.bf16.mxu0 %v1548
        %1732 = vmatpush1.bf16.msra.mxu0 %v1547
        %1733 = vmatprep.subr.bf16.mxu0 %v1554
        %1734 = vmatpush1.bf16.msra.mxu0 %v1553
        %1735 = vmatprep.subr.bf16.mxu0 %v1560
        %1736 = vmatpush1.bf16.msra.mxu0 %v1559
        %1737 = vmatprep.subr.bf16.mxu0 %v1566
        %1738 = vmatpush1.bf16.msra.mxu0 %v1565
        %1739 = vmatprep.subr.bf16.mxu0 %v1572
        %1740 = vmatpush1.bf16.msra.mxu0 %v1571
        %1741 = vmatprep.subr.bf16.mxu0 %v1578
        %1742 = vmatpush1.bf16.msra.mxu0 %v1577
        %1743 = vmatprep.subr.bf16.mxu0 %v1584
        %1744 = vmatpush1.bf16.msra.mxu0 %v1583
        %1745 = vmatprep.subr.bf16.mxu0 %v1590
        %1746 = vmatpush1.bf16.msra.mxu0 %v1589
        %1747 = vmatprep.subr.bf16.mxu0 %v1596
        %1748 = vmatpush1.bf16.msra.mxu0 %v1595
        %1749 = vmatprep.subr.bf16.mxu0 %v1602
        %1750 = vmatpush1.bf16.msra.mxu0 %v1601
        %1751 = vmatprep.subr.bf16.mxu0 %v1608
        %1752 = vmatpush1.bf16.msra.mxu0 %v1607
        %1753 = vmatprep.subr.bf16.mxu0 %v1614
        %1754 = vmatpush1.bf16.msra.mxu0 %v1613
        %1755 = vmatprep.subr.bf16.mxu0 %v1620
        %1756 = vmatpush1.bf16.msra.mxu0 %v1619
        %1757 = vmatprep.subr.bf16.mxu0 %v1626
        %1758 = vmatpush1.bf16.msra.mxu0 %v1625
        %1759 = vmatprep.mubr.bf16.mxu0 %v1116
        %1760 = vmatmul.mubr.bf16.gmra.mrb[0].mxu0 %v1115
        %v1761 = vpop.f32.mrb[0].mxu0
        %v1762 = vadd.f32 %v1220, %v1761
        %v1763 = vpop.f32.mrb[0].mxu0
        %v1764 = vadd.f32 %v1224, %v1763
        %v1765 = vpop.f32.mrb[0].mxu0
        %v1766 = vadd.f32 %v1220, %v1765
        %v1767 = vpop.f32.mrb[0].mxu0
        %v1768 = vadd.f32 %v1224, %v1767
        %1769 = vmatprep.mubr.bf16.mxu0 %v1118
        %1770 = vmatmul.mubr.bf16.gmra.mrb[0].mxu0 %v1117
        %v1771 = vpop.f32.mrb[0].mxu0
        %v1772 = vadd.f32 %v1220, %v1771
        %v1773 = vpop.f32.mrb[0].mxu0
        %v1774 = vadd.f32 %v1224, %v1773
        %v1775 = vpop.f32.mrb[0].mxu0
        %v1776 = vadd.f32 %v1220, %v1775
        %v1777 = vpop.f32.mrb[0].mxu0
        %v1778 = vadd.f32 %v1224, %v1777
        %1779 = vdwg.mxu0
        %1780 = vmatprep.subr.bf16.mxu0 %v1538
        %1781 = vmatpush1.bf16.msra.mxu0 %v1537
        %1782 = vmatprep.subr.bf16.mxu0 %v1544
        %1783 = vmatpush1.bf16.msra.mxu0 %v1543
        %1784 = vmatprep.subr.bf16.mxu0 %v1550
        %1785 = vmatpush1.bf16.msra.mxu0 %v1549
        %1786 = vmatprep.subr.bf16.mxu0 %v1556
        %1787 = vmatpush1.bf16.msra.mxu0 %v1555
        %1788 = vmatprep.subr.bf16.mxu0 %v1562
        %1789 = vmatpush1.bf16.msra.mxu0 %v1561
        %1790 = vmatprep.subr.bf16.mxu0 %v1568
        %1791 = vmatpush1.bf16.msra.mxu0 %v1567
        %1792 = vmatprep.subr.bf16.mxu0 %v1574
        %1793 = vmatpush1.bf16.msra.mxu0 %v1573
        %1794 = vmatprep.subr.bf16.mxu0 %v1580
        %1795 = vmatpush1.bf16.msra.mxu0 %v1579
        %1796 = vmatprep.subr.bf16.mxu0 %v1586
        %1797 = vmatpush1.bf16.msra.mxu0 %v1585
        %1798 = vmatprep.subr.bf16.mxu0 %v1592
        %1799 = vmatpush1.bf16.msra.mxu0 %v1591
        %1800 = vmatprep.subr.bf16.mxu0 %v1598
        %1801 = vmatpush1.bf16.msra.mxu0 %v1597
        %1802 = vmatprep.subr.bf16.mxu0 %v1604
        %1803 = vmatpush1.bf16.msra.mxu0 %v1603
        %1804 = vmatprep.subr.bf16.mxu0 %v1610
        %1805 = vmatpush1.bf16.msra.mxu0 %v1609
        %1806 = vmatprep.subr.bf16.mxu0 %v1616
        %1807 = vmatpush1.bf16.msra.mxu0 %v1615
        %1808 = vmatprep.subr.bf16.mxu0 %v1622
        %1809 = vmatpush1.bf16.msra.mxu0 %v1621
        %1810 = vmatprep.subr.bf16.mxu0 %v1628
        %1811 = vmatpush1.bf16.msra.mxu0 %v1627
        %1812 = vmatprep.mubr.bf16.mxu0 %v1116
        %1813 = vmatmul.mubr.bf16.gmra.mrb[0].mxu0 %v1115
        %v1814 = vpop.f32.mrb[0].mxu0
        %v1815 = vadd.f32 %v1228, %v1814
        %v1816 = vpop.f32.mrb[0].mxu0
        %v1817 = vadd.f32 %v1232, %v1816
        %v1818 = vpop.f32.mrb[0].mxu0
        %v1819 = vadd.f32 %v1228, %v1818
        %v1820 = vpop.f32.mrb[0].mxu0
        %v1821 = vadd.f32 %v1232, %v1820
        %1822 = vmatprep.mubr.bf16.mxu0 %v1118
        %1823 = vmatmul.mubr.bf16.gmra.mrb[0].mxu0 %v1117
        %v1824 = vpop.f32.mrb[0].mxu0
        %v1825 = vadd.f32 %v1228, %v1824
        %v1826 = vpop.f32.mrb[0].mxu0
        %v1827 = vadd.f32 %v1232, %v1826
        %v1828 = vpop.f32.mrb[0].mxu0
        %v1829 = vadd.f32 %v1228, %v1828
        %v1830 = vpop.f32.mrb[0].mxu0
        %v1831 = vadd.f32 %v1232, %v1830
        %1832 = vdwg.mxu0
        %1833 = vmatprep.subr.bf16.mxu0 %v1540
        %1834 = vmatpush1.bf16.msra.mxu0 %v1539
        %1835 = vmatprep.subr.bf16.mxu0 %v1546
        %1836 = vmatpush1.bf16.msra.mxu0 %v1545
        %1837 = vmatprep.subr.bf16.mxu0 %v1552
        %1838 = vmatpush1.bf16.msra.mxu0 %v1551
        %1839 = vmatprep.subr.bf16.mxu0 %v1558
        %1840 = vmatpush1.bf16.msra.mxu0 %v1557
        %1841 = vmatprep.subr.bf16.mxu0 %v1564
        %1842 = vmatpush1.bf16.msra.mxu0 %v1563
        %1843 = vmatprep.subr.bf16.mxu0 %v1570
        %1844 = vmatpush1.bf16.msra.mxu0 %v1569
        %1845 = vmatprep.subr.bf16.mxu0 %v1576
        %1846 = vmatpush1.bf16.msra.mxu0 %v1575
        %1847 = vmatprep.subr.bf16.mxu0 %v1582
        %1848 = vmatpush1.bf16.msra.mxu0 %v1581
        %1849 = vmatprep.subr.bf16.mxu0 %v1588
        %1850 = vmatpush1.bf16.msra.mxu0 %v1587
        %1851 = vmatprep.subr.bf16.mxu0 %v1594
        %1852 = vmatpush1.bf16.msra.mxu0 %v1593
        %1853 = vmatprep.subr.bf16.mxu0 %v1600
        %1854 = vmatpush1.bf16.msra.mxu0 %v1599
        %1855 = vmatprep.subr.bf16.mxu0 %v1606
        %1856 = vmatpush1.bf16.msra.mxu0 %v1605
        %1857 = vmatprep.subr.bf16.mxu0 %v1612
        %1858 = vmatpush1.bf16.msra.mxu0 %v1611
        %1859 = vmatprep.subr.bf16.mxu0 %v1618
        %1860 = vmatpush1.bf16.msra.mxu0 %v1617
        %1861 = vmatprep.subr.bf16.mxu0 %v1624
        %1862 = vmatpush1.bf16.msra.mxu0 %v1623
        %1863 = vmatprep.subr.bf16.mxu0 %v1630
        %1864 = vmatpush1.bf16.msra.mxu0 %v1629
        %1865 = vmatprep.mubr.bf16.mxu0 %v1116
        %1866 = vmatmul.mubr.bf16.gmra.mrb[0].mxu0 %v1115
        %v1867 = vpop.f32.mrb[0].mxu0
        %v1868 = vadd.f32 %v1236, %v1867
        %v1869 = vpop.f32.mrb[0].mxu0
        %v1870 = vadd.f32 %v1240, %v1869
        %v1871 = vpop.f32.mrb[0].mxu0
        %v1872 = vadd.f32 %v1236, %v1871
        %v1873 = vpop.f32.mrb[0].mxu0
        %v1874 = vadd.f32 %v1240, %v1873
        %1875 = vmatprep.mubr.bf16.mxu0 %v1118
        %1876 = vmatmul.mubr.bf16.gmra.mrb[0].mxu0 %v1117
        %v1877 = vpop.f32.mrb[0].mxu0
        %v1878 = vadd.f32 %v1236, %v1877
        %v1879 = vpop.f32.mrb[0].mxu0
        %v1880 = vadd.f32 %v1240, %v1879
        %v1881 = vpop.f32.mrb[0].mxu0
        %v1882 = vadd.f32 %v1236, %v1881
        %v1883 = vpop.f32.mrb[0].mxu0
        %v1884 = vadd.f32 %v1240, %v1883
        %1885 = vdwg.mxu0
        %v1886 = vlaneseq
        %v1887 = vshrl.u32 %v1886, 7
        %v1888 = vadd.s32 %v1887, 8
        %v1889 = vlaneseq
        %v1890 = vand.u32 %v1889, 127
        %vm1891 = vcmp.le.s32.totalorder %v1890, %v1887
        %vm1892 = vcmp.le.s32.totalorder %v1890, %v1888
        %v1893 = vpack.c.bf16 %v1766, %v1762
        %v1894 = vpack.c.bf16 %v1768, %v1764
        %v1895 = vpack.c.bf16 %v1776, %v1772
        %v1896 = vpack.c.bf16 %v1778, %v1774
        %v1897 = vpack.c.bf16 %v1819, %v1815
        %v1898 = vpack.c.bf16 %v1821, %v1817
        %v1899 = vpack.c.bf16 %v1829, %v1825
        %v1900 = vpack.c.bf16 %v1831, %v1827
        %v1901 = vpack.c.bf16 %v1872, %v1868
        %v1902 = vpack.c.bf16 %v1874, %v1870
        %v1903 = vpack.c.bf16 %v1882, %v1878
        %v1904 = vpack.c.bf16 %v1884, %v1880
        %1905 = vmatprep.subr.bf16.mxu0 0
        %1906 = vmatpush1.bf16.xpose.msra.mxu0 %v1897
        %1907 = vmatprep.subr.bf16.mxu0 0
        %1908 = vmatpush1.bf16.xpose.msra.mxu0 0
        %1909 = vmatprep.subr.bf16.mxu0 0
        %1910 = vmatpush1.bf16.xpose.msra.mxu0 0
        %1911 = vmatprep.subr.bf16.mxu0 0
        %1912 = vmatpush1.bf16.xpose.msra.mxu0 0
        %1913 = vmatprep.subr.bf16.mxu0 0
        %1914 = vmatpush1.bf16.xpose.msra.mxu0 0
        %1915 = vmatprep.subr.bf16.mxu0 0
        %1916 = vmatpush1.bf16.xpose.msra.mxu0 0
        %1917 = vmatprep.subr.bf16.mxu0 0
        %1918 = vmatpush1.bf16.xpose.msra.mxu0 0
        %1919 = vmatprep.subr.bf16.mxu0 0
        %1920 = vmatpush1.bf16.xpose.msra.mxu0 0
        %1921 = vmatprep.subr.bf16.mxu0 0
        %1922 = vmatpush1.bf16.xpose.msra.mxu0 0
        %1923 = vmatprep.subr.bf16.mxu0 0
        %1924 = vmatpush1.bf16.xpose.msra.mxu0 0
        %1925 = vmatprep.subr.bf16.mxu0 0
        %1926 = vmatpush1.bf16.xpose.msra.mxu0 0
        %1927 = vmatprep.subr.bf16.mxu0 0
        %1928 = vmatpush1.bf16.xpose.msra.mxu0 0
        %1929 = vmatprep.subr.bf16.mxu0 0
        %1930 = vmatpush1.bf16.xpose.msra.mxu0 0
        %1931 = vmatprep.subr.bf16.mxu0 0
        %1932 = vmatpush1.bf16.xpose.msra.mxu0 0
        %1933 = vmatprep.subr.bf16.mxu0 0
        %1934 = vmatpush1.bf16.xpose.msra.mxu0 0
        %1935 = vmatprep.subr.bf16.mxu0 0
        %1936 = vmatpush1.bf16.xpose.msra.mxu0 0
        %1937 = vmatprep.mubr.bf16.mxu0 0
        %1938 = vmatmul.mubr.bf16.gmra.mrb[0].mxu0 %v1893
        %v1939 = vpop.f32.mrb[0].mxu0
        %v1940 = vadd.f32 0.0, %v1939
        %v1941 = vpop.f32.mrb[0].mxu0
        %v1942 = vpop.f32.mrb[0].mxu0
        %v1943 = vadd.f32 0.0, %v1942
        %v1944 = vpop.f32.mrb[0].mxu0
        %1945 = vdwg.mxu0
        %1946 = vmatprep.subr.bf16.mxu0 0
        %1947 = vmatpush1.bf16.xpose.msra.mxu0 %v1898
        %1948 = vmatprep.subr.bf16.mxu0 0
        %1949 = vmatpush1.bf16.xpose.msra.mxu0 0
        %1950 = vmatprep.subr.bf16.mxu0 0
        %1951 = vmatpush1.bf16.xpose.msra.mxu0 0
        %1952 = vmatprep.subr.bf16.mxu0 0
        %1953 = vmatpush1.bf16.xpose.msra.mxu0 0
        %1954 = vmatprep.subr.bf16.mxu0 0
        %1955 = vmatpush1.bf16.xpose.msra.mxu0 0
        %1956 = vmatprep.subr.bf16.mxu0 0
        %1957 = vmatpush1.bf16.xpose.msra.mxu0 0
        %1958 = vmatprep.subr.bf16.mxu0 0
        %1959 = vmatpush1.bf16.xpose.msra.mxu0 0
        %1960 = vmatprep.subr.bf16.mxu0 0
        %1961 = vmatpush1.bf16.xpose.msra.mxu0 0
        %1962 = vmatprep.subr.bf16.mxu0 0
        %1963 = vmatpush1.bf16.xpose.msra.mxu0 0
        %1964 = vmatprep.subr.bf16.mxu0 0
        %1965 = vmatpush1.bf16.xpose.msra.mxu0 0
        %1966 = vmatprep.subr.bf16.mxu0 0
        %1967 = vmatpush1.bf16.xpose.msra.mxu0 0
        %1968 = vmatprep.subr.bf16.mxu0 0
        %1969 = vmatpush1.bf16.xpose.msra.mxu0 0
        %1970 = vmatprep.subr.bf16.mxu0 0
        %1971 = vmatpush1.bf16.xpose.msra.mxu0 0
        %1972 = vmatprep.subr.bf16.mxu0 0
        %1973 = vmatpush1.bf16.xpose.msra.mxu0 0
        %1974 = vmatprep.subr.bf16.mxu0 0
        %1975 = vmatpush1.bf16.xpose.msra.mxu0 0
        %1976 = vmatprep.subr.bf16.mxu0 0
        %1977 = vmatpush1.bf16.xpose.msra.mxu0 0
        %1978 = vmatprep.mubr.bf16.mxu0 0
        %1979 = vmatmul.mubr.bf16.gmra.mrb[0].mxu0 %v1894
        %v1980 = vpop.f32.mrb[0].mxu0
        %v1981 = vadd.f32 0.0, %v1980
        %v1982 = vpop.f32.mrb[0].mxu0
        %v1983 = vpop.f32.mrb[0].mxu0
        %v1984 = vadd.f32 0.0, %v1983
        %v1985 = vpop.f32.mrb[0].mxu0
        %1986 = vdwg.mxu0
        %1987 = vmatprep.subr.bf16.mxu0 0
        %1988 = vmatpush1.bf16.xpose.msra.mxu0 %v1899
        %1989 = vmatprep.subr.bf16.mxu0 0
        %1990 = vmatpush1.bf16.xpose.msra.mxu0 0
        %1991 = vmatprep.subr.bf16.mxu0 0
        %1992 = vmatpush1.bf16.xpose.msra.mxu0 0
        %1993 = vmatprep.subr.bf16.mxu0 0
        %1994 = vmatpush1.bf16.xpose.msra.mxu0 0
        %1995 = vmatprep.subr.bf16.mxu0 0
        %1996 = vmatpush1.bf16.xpose.msra.mxu0 0
        %1997 = vmatprep.subr.bf16.mxu0 0
        %1998 = vmatpush1.bf16.xpose.msra.mxu0 0
        %1999 = vmatprep.subr.bf16.mxu0 0
        %2000 = vmatpush1.bf16.xpose.msra.mxu0 0
        %2001 = vmatprep.subr.bf16.mxu0 0
        %2002 = vmatpush1.bf16.xpose.msra.mxu0 0
        %2003 = vmatprep.subr.bf16.mxu0 0
        %2004 = vmatpush1.bf16.xpose.msra.mxu0 0
        %2005 = vmatprep.subr.bf16.mxu0 0
        %2006 = vmatpush1.bf16.xpose.msra.mxu0 0
        %2007 = vmatprep.subr.bf16.mxu0 0
        %2008 = vmatpush1.bf16.xpose.msra.mxu0 0
        %2009 = vmatprep.subr.bf16.mxu0 0
        %2010 = vmatpush1.bf16.xpose.msra.mxu0 0
        %2011 = vmatprep.subr.bf16.mxu0 0
        %2012 = vmatpush1.bf16.xpose.msra.mxu0 0
        %2013 = vmatprep.subr.bf16.mxu0 0
        %2014 = vmatpush1.bf16.xpose.msra.mxu0 0
        %2015 = vmatprep.subr.bf16.mxu0 0
        %2016 = vmatpush1.bf16.xpose.msra.mxu0 0
        %2017 = vmatprep.subr.bf16.mxu0 0
        %2018 = vmatpush1.bf16.xpose.msra.mxu0 0
        %2019 = vmatprep.mubr.bf16.mxu0 0
        %2020 = vmatmul.mubr.bf16.gmra.mrb[0].mxu0 %v1895
        %v2021 = vpop.f32.mrb[0].mxu0
        %v2022 = vadd.f32 0.0, %v2021
        %v2023 = vpop.f32.mrb[0].mxu0
        %v2024 = vpop.f32.mrb[0].mxu0
        %v2025 = vadd.f32 0.0, %v2024
        %v2026 = vpop.f32.mrb[0].mxu0
        %2027 = vdwg.mxu0
        %2028 = vmatprep.subr.bf16.mxu0 0
        %2029 = vmatpush1.bf16.xpose.msra.mxu0 %v1900
        %2030 = vmatprep.subr.bf16.mxu0 0
        %2031 = vmatpush1.bf16.xpose.msra.mxu0 0
        %2032 = vmatprep.subr.bf16.mxu0 0
        %2033 = vmatpush1.bf16.xpose.msra.mxu0 0
        %2034 = vmatprep.subr.bf16.mxu0 0
        %2035 = vmatpush1.bf16.xpose.msra.mxu0 0
        %2036 = vmatprep.subr.bf16.mxu0 0
        %2037 = vmatpush1.bf16.xpose.msra.mxu0 0
        %2038 = vmatprep.subr.bf16.mxu0 0
        %2039 = vmatpush1.bf16.xpose.msra.mxu0 0
        %2040 = vmatprep.subr.bf16.mxu0 0
        %2041 = vmatpush1.bf16.xpose.msra.mxu0 0
        %2042 = vmatprep.subr.bf16.mxu0 0
        %2043 = vmatpush1.bf16.xpose.msra.mxu0 0
        %2044 = vmatprep.subr.bf16.mxu0 0
        %2045 = vmatpush1.bf16.xpose.msra.mxu0 0
        %2046 = vmatprep.subr.bf16.mxu0 0
        %2047 = vmatpush1.bf16.xpose.msra.mxu0 0
        %2048 = vmatprep.subr.bf16.mxu0 0
        %2049 = vmatpush1.bf16.xpose.msra.mxu0 0
        %2050 = vmatprep.subr.bf16.mxu0 0
        %2051 = vmatpush1.bf16.xpose.msra.mxu0 0
        %2052 = vmatprep.subr.bf16.mxu0 0
        %2053 = vmatpush1.bf16.xpose.msra.mxu0 0
        %2054 = vmatprep.subr.bf16.mxu0 0
        %2055 = vmatpush1.bf16.xpose.msra.mxu0 0
        %2056 = vmatprep.subr.bf16.mxu0 0
        %2057 = vmatpush1.bf16.xpose.msra.mxu0 0
        %2058 = vmatprep.subr.bf16.mxu0 0
        %2059 = vmatpush1.bf16.xpose.msra.mxu0 0
        %2060 = vmatprep.mubr.bf16.mxu0 0
        %2061 = vmatmul.mubr.bf16.gmra.mrb[0].mxu0 %v1896
        %v2062 = vpop.f32.mrb[0].mxu0
        %v2063 = vadd.f32 0.0, %v2062
        %v2064 = vpop.f32.mrb[0].mxu0
        %v2065 = vpop.f32.mrb[0].mxu0
        %v2066 = vadd.f32 0.0, %v2065
        %v2067 = vpop.f32.mrb[0].mxu0
        %2068 = vdwg.mxu0
        %v2069 = vmul.f32 %v1940, 0.088388346
        %v2070 = vmul.f32 %v1943, 0.088388346
        %v2071 = vmul.f32 %v1981, 0.088388346
        %v2072 = vmul.f32 %v1984, 0.088388346
        %v2073 = vmul.f32 %v2022, 0.088388346
        %v2074 = vmul.f32 %v2025, 0.088388346
        %v2075 = vmul.f32 %v2063, 0.088388346
        %v2076 = vmul.f32 %v2066, 0.088388346
        %v2077 = vsel %vm1891, 1, 0
        %v2078 = vsel %vm1892, 1, 0
        %vm2079 = vcmp.eq.s32.totalorder %v2077, 1
        %vm2080 = vcmp.eq.s32.totalorder %v2078, 1
        %v2081 = vsel %vm2079, %v2069, -1e+30
        %v2082 = vsel %vm2080, %v2070, -1e+30
        %v2083 = vsel %vm2079, %v2071, -1e+30
        %v2084 = vsel %vm2080, %v2072, -1e+30
        %v2085 = vsel %vm2079, %v2073, -1e+30
        %v2086 = vsel %vm2080, %v2074, -1e+30
        %v2087 = vsel %vm2079, %v2075, -1e+30
        %v2088 = vsel %vm2080, %v2076, -1e+30
        %vm2089 = vcmask 130048
        %v2090 = vsel %vm2089, %v2081, -inf
        %2091 = vmax.xlane.f32.xlu0 %v2090
        %v2092 = vpop.xlane.xlu0 %2091
        %v2093 = vsel %vm2089, %v2082, -inf
        %2094 = vmax.xlane.f32.xlu0 %v2093
        %v2095 = vpop.xlane.xlu0 %2094
        %v2096 = vsel %vm2089, %v2083, -inf
        %2097 = vmax.xlane.f32.xlu0 %v2096
        %v2098 = vpop.xlane.xlu0 %2097
        %v2099 = vsel %vm2089, %v2084, -inf
        %2100 = vmax.xlane.f32.xlu0 %v2099
        %v2101 = vpop.xlane.xlu0 %2100
        %v2102 = vsel %vm2089, %v2085, -inf
        %2103 = vmax.xlane.f32.xlu0 %v2102
        %v2104 = vpop.xlane.xlu0 %2103
        %v2105 = vsel %vm2089, %v2086, -inf
        %2106 = vmax.xlane.f32.xlu0 %v2105
        %v2107 = vpop.xlane.xlu0 %2106
        %v2108 = vsel %vm2089, %v2087, -inf
        %2109 = vmax.xlane.f32.xlu0 %v2108
        %v2110 = vpop.xlane.xlu0 %2109
        %v2111 = vsel %vm2089, %v2088, -inf
        %2112 = vmax.xlane.f32.xlu0 %v2111
        %v2113 = vpop.xlane.xlu0 %2112
        %v2114 = vsub.f32 %v2081, %v2092
        %v2115 = vsub.f32 %v2082, %v2095
        %v2116 = vsub.f32 %v2083, %v2098
        %v2117 = vsub.f32 %v2084, %v2101
        %v2118 = vsub.f32 %v2085, %v2104
        %v2119 = vsub.f32 %v2086, %v2107
        %v2120 = vsub.f32 %v2087, %v2110
        %v2121 = vsub.f32 %v2088, %v2113
        %v2122 = vmul.f32 %v2114, 1.442695
        %v2123 = vpow.pop %v2122
        %v2124 = vmul.f32 %v2115, 1.442695
        %v2125 = vpow.pop %v2124
        %v2126 = vmul.f32 %v2116, 1.442695
        %v2127 = vpow.pop %v2126
        %v2128 = vmul.f32 %v2117, 1.442695
        %v2129 = vpow.pop %v2128
        %v2130 = vmul.f32 %v2118, 1.442695
        %v2131 = vpow.pop %v2130
        %v2132 = vmul.f32 %v2119, 1.442695
        %v2133 = vpow.pop %v2132
        %v2134 = vmul.f32 %v2120, 1.442695
        %v2135 = vpow.pop %v2134
        %v2136 = vmul.f32 %v2121, 1.442695
        %v2137 = vpow.pop %v2136
        %v2138 = vsel %vm2089, %v2123, 0.0
        %2139 = vadd.xlane.f32.xlu0 %v2138
        %v2140 = vpop.xlane.xlu0 %2139
        %v2141 = vsel %vm2089, %v2125, 0.0
        %2142 = vadd.xlane.f32.xlu0 %v2141
        %v2143 = vpop.xlane.xlu0 %2142
        %v2144 = vsel %vm2089, %v2127, 0.0
        %2145 = vadd.xlane.f32.xlu0 %v2144
        %v2146 = vpop.xlane.xlu0 %2145
        %v2147 = vsel %vm2089, %v2129, 0.0
        %2148 = vadd.xlane.f32.xlu0 %v2147
        %v2149 = vpop.xlane.xlu0 %2148
        %v2150 = vsel %vm2089, %v2131, 0.0
        %2151 = vadd.xlane.f32.xlu0 %v2150
        %v2152 = vpop.xlane.xlu0 %2151
        %v2153 = vsel %vm2089, %v2133, 0.0
        %2154 = vadd.xlane.f32.xlu0 %v2153
        %v2155 = vpop.xlane.xlu0 %2154
        %v2156 = vsel %vm2089, %v2135, 0.0
        %2157 = vadd.xlane.f32.xlu0 %v2156
        %v2158 = vpop.xlane.xlu0 %2157
        %v2159 = vsel %vm2089, %v2137, 0.0
        %2160 = vadd.xlane.f32.xlu0 %v2159
        %v2161 = vpop.xlane.xlu0 %2160
        %v2162 = vrcp.pop %v2140
        %v2163 = vmul.f32 %v2123, %v2162
        %v2164 = vrcp.pop %v2143
        %v2165 = vmul.f32 %v2125, %v2164
        %v2166 = vrcp.pop %v2146
        %v2167 = vmul.f32 %v2127, %v2166
        %v2168 = vrcp.pop %v2149
        %v2169 = vmul.f32 %v2129, %v2168
        %v2170 = vrcp.pop %v2152
        %v2171 = vmul.f32 %v2131, %v2170
        %v2172 = vrcp.pop %v2155
        %v2173 = vmul.f32 %v2133, %v2172
        %v2174 = vrcp.pop %v2158
        %v2175 = vmul.f32 %v2135, %v2174
        %v2176 = vrcp.pop %v2161
        %v2177 = vmul.f32 %v2137, %v2176
        %v2178 = vpack.c.bf16 %v2165, %v2163
        %v2179 = vpack.c.bf16 %v2169, %v2167
        %v2180 = vpack.c.bf16 %v2173, %v2171
        %v2181 = vpack.c.bf16 %v2177, %v2175
        %v2183 = vsel %vm2089, %v2178, 0
        %2185 = vmatprep.subr.bf16.mxu0 0
        %2186 = vmatpush1.bf16.msra.mxu0 %v1901
        %2187 = vmatprep.subr.bf16.mxu0 0
        %2188 = vmatpush1.bf16.msra.mxu0 0
        %2189 = vmatprep.subr.bf16.mxu0 0
        %2190 = vmatpush1.bf16.msra.mxu0 0
        %2191 = vmatprep.subr.bf16.mxu0 0
        %2192 = vmatpush1.bf16.msra.mxu0 0
        %2193 = vmatprep.subr.bf16.mxu0 0
        %2194 = vmatpush1.bf16.msra.mxu0 0
        %2195 = vmatprep.subr.bf16.mxu0 0
        %2196 = vmatpush1.bf16.msra.mxu0 0
        %2197 = vmatprep.subr.bf16.mxu0 0
        %2198 = vmatpush1.bf16.msra.mxu0 0
        %2199 = vmatprep.subr.bf16.mxu0 0
        %2200 = vmatpush1.bf16.msra.mxu0 0
        %2201 = vmatprep.subr.bf16.mxu0 0
        %2202 = vmatpush1.bf16.msra.mxu0 0
        %2203 = vmatprep.subr.bf16.mxu0 0
        %2204 = vmatpush1.bf16.msra.mxu0 0
        %2205 = vmatprep.subr.bf16.mxu0 0
        %2206 = vmatpush1.bf16.msra.mxu0 0
        %2207 = vmatprep.subr.bf16.mxu0 0
        %2208 = vmatpush1.bf16.msra.mxu0 0
        %2209 = vmatprep.subr.bf16.mxu0 0
        %2210 = vmatpush1.bf16.msra.mxu0 0
        %2211 = vmatprep.subr.bf16.mxu0 0
        %2212 = vmatpush1.bf16.msra.mxu0 0
        %2213 = vmatprep.subr.bf16.mxu0 0
        %2214 = vmatpush1.bf16.msra.mxu0 0
        %2215 = vmatprep.subr.bf16.mxu0 0
        %2216 = vmatpush1.bf16.msra.mxu0 0
        %2217 = vmatprep.mubr.bf16.mxu0 0
        %2218 = vmatmul.mubr.bf16.gmra.mrb[0].mxu0 %v2183
        %v2219 = vpop.f32.mrb[0].mxu0
        %v2220 = vadd.f32 0.0, %v2219
        %v2221 = vpop.f32.mrb[0].mxu0
        %v2222 = vpop.f32.mrb[0].mxu0
        %v2223 = vadd.f32 0.0, %v2222
        %v2224 = vpop.f32.mrb[0].mxu0
        %2225 = vdwg.mxu0
        %v2227 = vsel %vm2089, %v2179, 0
        %2229 = vmatprep.subr.bf16.mxu0 0
        %2230 = vmatpush1.bf16.msra.mxu0 %v1902
        %2231 = vmatprep.subr.bf16.mxu0 0
        %2232 = vmatpush1.bf16.msra.mxu0 0
        %2233 = vmatprep.subr.bf16.mxu0 0
        %2234 = vmatpush1.bf16.msra.mxu0 0
        %2235 = vmatprep.subr.bf16.mxu0 0
        %2236 = vmatpush1.bf16.msra.mxu0 0
        %2237 = vmatprep.subr.bf16.mxu0 0
        %2238 = vmatpush1.bf16.msra.mxu0 0
        %2239 = vmatprep.subr.bf16.mxu0 0
        %2240 = vmatpush1.bf16.msra.mxu0 0
        %2241 = vmatprep.subr.bf16.mxu0 0
        %2242 = vmatpush1.bf16.msra.mxu0 0
        %2243 = vmatprep.subr.bf16.mxu0 0
        %2244 = vmatpush1.bf16.msra.mxu0 0
        %2245 = vmatprep.subr.bf16.mxu0 0
        %2246 = vmatpush1.bf16.msra.mxu0 0
        %2247 = vmatprep.subr.bf16.mxu0 0
        %2248 = vmatpush1.bf16.msra.mxu0 0
        %2249 = vmatprep.subr.bf16.mxu0 0
        %2250 = vmatpush1.bf16.msra.mxu0 0
        %2251 = vmatprep.subr.bf16.mxu0 0
        %2252 = vmatpush1.bf16.msra.mxu0 0
        %2253 = vmatprep.subr.bf16.mxu0 0
        %2254 = vmatpush1.bf16.msra.mxu0 0
        %2255 = vmatprep.subr.bf16.mxu0 0
        %2256 = vmatpush1.bf16.msra.mxu0 0
        %2257 = vmatprep.subr.bf16.mxu0 0
        %2258 = vmatpush1.bf16.msra.mxu0 0
        %2259 = vmatprep.subr.bf16.mxu0 0
        %2260 = vmatpush1.bf16.msra.mxu0 0
        %2261 = vmatprep.mubr.bf16.mxu0 0
        %2262 = vmatmul.mubr.bf16.gmra.mrb[0].mxu0 %v2227
        %v2263 = vpop.f32.mrb[0].mxu0
        %v2264 = vadd.f32 0.0, %v2263
        %v2265 = vpop.f32.mrb[0].mxu0
        %v2266 = vpop.f32.mrb[0].mxu0
        %v2267 = vadd.f32 0.0, %v2266
        %v2268 = vpop.f32.mrb[0].mxu0
        %2269 = vdwg.mxu0
        %v2271 = vsel %vm2089, %v2180, 0
        %2273 = vmatprep.subr.bf16.mxu0 0
        %2274 = vmatpush1.bf16.msra.mxu0 %v1903
        %2275 = vmatprep.subr.bf16.mxu0 0
        %2276 = vmatpush1.bf16.msra.mxu0 0
        %2277 = vmatprep.subr.bf16.mxu0 0
        %2278 = vmatpush1.bf16.msra.mxu0 0
        %2279 = vmatprep.subr.bf16.mxu0 0
        %2280 = vmatpush1.bf16.msra.mxu0 0
        %2281 = vmatprep.subr.bf16.mxu0 0
        %2282 = vmatpush1.bf16.msra.mxu0 0
        %2283 = vmatprep.subr.bf16.mxu0 0
        %2284 = vmatpush1.bf16.msra.mxu0 0
        %2285 = vmatprep.subr.bf16.mxu0 0
        %2286 = vmatpush1.bf16.msra.mxu0 0
        %2287 = vmatprep.subr.bf16.mxu0 0
        %2288 = vmatpush1.bf16.msra.mxu0 0
        %2289 = vmatprep.subr.bf16.mxu0 0
        %2290 = vmatpush1.bf16.msra.mxu0 0
        %2291 = vmatprep.subr.bf16.mxu0 0
        %2292 = vmatpush1.bf16.msra.mxu0 0
        %2293 = vmatprep.subr.bf16.mxu0 0
        %2294 = vmatpush1.bf16.msra.mxu0 0
        %2295 = vmatprep.subr.bf16.mxu0 0
        %2296 = vmatpush1.bf16.msra.mxu0 0
        %2297 = vmatprep.subr.bf16.mxu0 0
        %2298 = vmatpush1.bf16.msra.mxu0 0
        %2299 = vmatprep.subr.bf16.mxu0 0
        %2300 = vmatpush1.bf16.msra.mxu0 0
        %2301 = vmatprep.subr.bf16.mxu0 0
        %2302 = vmatpush1.bf16.msra.mxu0 0
        %2303 = vmatprep.subr.bf16.mxu0 0
        %2304 = vmatpush1.bf16.msra.mxu0 0
        %2305 = vmatprep.mubr.bf16.mxu0 0
        %2306 = vmatmul.mubr.bf16.gmra.mrb[0].mxu0 %v2271
        %v2307 = vpop.f32.mrb[0].mxu0
        %v2308 = vadd.f32 0.0, %v2307
        %v2309 = vpop.f32.mrb[0].mxu0
        %v2310 = vpop.f32.mrb[0].mxu0
        %v2311 = vadd.f32 0.0, %v2310
        %v2312 = vpop.f32.mrb[0].mxu0
        %2313 = vdwg.mxu0
        %v2315 = vsel %vm2089, %v2181, 0
        %2317 = vmatprep.subr.bf16.mxu0 0
        %2318 = vmatpush1.bf16.msra.mxu0 %v1904
        %2319 = vmatprep.subr.bf16.mxu0 0
        %2320 = vmatpush1.bf16.msra.mxu0 0
        %2321 = vmatprep.subr.bf16.mxu0 0
        %2322 = vmatpush1.bf16.msra.mxu0 0
        %2323 = vmatprep.subr.bf16.mxu0 0
        %2324 = vmatpush1.bf16.msra.mxu0 0
        %2325 = vmatprep.subr.bf16.mxu0 0
        %2326 = vmatpush1.bf16.msra.mxu0 0
        %2327 = vmatprep.subr.bf16.mxu0 0
        %2328 = vmatpush1.bf16.msra.mxu0 0
        %2329 = vmatprep.subr.bf16.mxu0 0
        %2330 = vmatpush1.bf16.msra.mxu0 0
        %2331 = vmatprep.subr.bf16.mxu0 0
        %2332 = vmatpush1.bf16.msra.mxu0 0
        %2333 = vmatprep.subr.bf16.mxu0 0
        %2334 = vmatpush1.bf16.msra.mxu0 0
        %2335 = vmatprep.subr.bf16.mxu0 0
        %2336 = vmatpush1.bf16.msra.mxu0 0
        %2337 = vmatprep.subr.bf16.mxu0 0
        %2338 = vmatpush1.bf16.msra.mxu0 0
        %2339 = vmatprep.subr.bf16.mxu0 0
        %2340 = vmatpush1.bf16.msra.mxu0 0
        %2341 = vmatprep.subr.bf16.mxu0 0
        %2342 = vmatpush1.bf16.msra.mxu0 0
        %2343 = vmatprep.subr.bf16.mxu0 0
        %2344 = vmatpush1.bf16.msra.mxu0 0
        %2345 = vmatprep.subr.bf16.mxu0 0
        %2346 = vmatpush1.bf16.msra.mxu0 0
        %2347 = vmatprep.subr.bf16.mxu0 0
        %2348 = vmatpush1.bf16.msra.mxu0 0
        %2349 = vmatprep.mubr.bf16.mxu0 0
        %2350 = vmatmul.mubr.bf16.gmra.mrb[0].mxu0 %v2315
        %v2351 = vpop.f32.mrb[0].mxu0
        %v2352 = vadd.f32 0.0, %v2351
        %v2353 = vpop.f32.mrb[0].mxu0
        %v2354 = vpop.f32.mrb[0].mxu0
        %v2355 = vadd.f32 0.0, %v2354
        %v2356 = vpop.f32.mrb[0].mxu0
        %2357 = vdwg.mxu0
        %v2358 = vld [vmem:[%s761] sm:$0xff]
        %v2359 = vld [vmem:[%s761 + $0x8] sm:$0xff]
        %v2360 = vld [vmem:[%s761 + $0x10] sm:$0xff]
        %v2361 = vld [vmem:[%s761 + $0x18] sm:$0xff]
        %v2362 = vld [vmem:[%s761 + $0x20] sm:$0xff]
        %v2363 = vld [vmem:[%s761 + $0x28] sm:$0xff]
        %v2364 = vld [vmem:[%s761 + $0x30] sm:$0xff]
        %v2365 = vld [vmem:[%s761 + $0x38] sm:$0xff]
        %v2366 = vld [vmem:[%s761 + $0x40] sm:$0xff]
        %v2367 = vld [vmem:[%s761 + $0x48] sm:$0xff]
        %v2368 = vld [vmem:[%s761 + $0x50] sm:$0xff]
        %v2369 = vld [vmem:[%s761 + $0x58] sm:$0xff]
        %v2370 = vld [vmem:[%s761 + $0x60] sm:$0xff]
        %v2371 = vld [vmem:[%s761 + $0x68] sm:$0xff]
        %v2372 = vld [vmem:[%s761 + $0x70] sm:$0xff]
        %v2373 = vld [vmem:[%s761 + $0x78] sm:$0xff]
        %v2374 = vld [vmem:[%s761 + $0x80] sm:$0xff]
        %v2375 = vld [vmem:[%s761 + $0x88] sm:$0xff]
        %v2376 = vld [vmem:[%s761 + $0x90] sm:$0xff]
        %v2377 = vld [vmem:[%s761 + $0x98] sm:$0xff]
        %v2378 = vld [vmem:[%s761 + $0xa0] sm:$0xff]
        %v2379 = vld [vmem:[%s761 + $0xa8] sm:$0xff]
        %v2380 = vld [vmem:[%s761 + $0xb0] sm:$0xff]
        %v2381 = vld [vmem:[%s761 + $0xb8] sm:$0xff]
        %v2382 = vld [vmem:[%s761 + $0xc0] sm:$0xff]
        %v2383 = vld [vmem:[%s761 + $0xc8] sm:$0xff]
        %v2384 = vld [vmem:[%s761 + $0xd0] sm:$0xff]
        %v2385 = vld [vmem:[%s761 + $0xd8] sm:$0xff]
        %v2386 = vld [vmem:[%s761 + $0xe0] sm:$0xff]
        %v2387 = vld [vmem:[%s761 + $0xe8] sm:$0xff]
        %v2388 = vld [vmem:[%s761 + $0xf0] sm:$0xff]
        %v2389 = vld [vmem:[%s761 + $0xf8] sm:$0xff]
        %v2390 = vpack.c.bf16 %v2223, %v2220
        %v2391 = vpack.c.bf16 %v2267, %v2264
        %v2408 = vunpack.c.l.b16 %v2374
        %v2409 = vunpack.c.h.b16 %v2374
        %v2410 = vunpack.c.l.b16 %v2375
        %v2411 = vunpack.c.h.b16 %v2375
        %v2412 = vunpack.c.l.b16 %v2376
        %v2413 = vunpack.c.h.b16 %v2376
        %v2414 = vunpack.c.l.b16 %v2377
        %v2415 = vunpack.c.h.b16 %v2377
        %v2416 = vunpack.c.l.b16 %v2378
        %v2417 = vunpack.c.h.b16 %v2378
        %v2418 = vunpack.c.l.b16 %v2379
        %v2419 = vunpack.c.h.b16 %v2379
        %v2420 = vunpack.c.l.b16 %v2380
        %v2421 = vunpack.c.h.b16 %v2380
        %v2422 = vunpack.c.l.b16 %v2381
        %v2423 = vunpack.c.h.b16 %v2381
        %v2424 = vunpack.c.l.b16 %v2382
        %v2425 = vunpack.c.h.b16 %v2382
        %v2426 = vunpack.c.l.b16 %v2383
        %v2427 = vunpack.c.h.b16 %v2383
        %v2428 = vunpack.c.l.b16 %v2384
        %v2429 = vunpack.c.h.b16 %v2384
        %v2430 = vunpack.c.l.b16 %v2385
        %v2431 = vunpack.c.h.b16 %v2385
        %v2432 = vunpack.c.l.b16 %v2386
        %v2433 = vunpack.c.h.b16 %v2386
        %v2434 = vunpack.c.l.b16 %v2387
        %v2435 = vunpack.c.h.b16 %v2387
        %v2436 = vunpack.c.l.b16 %v2388
        %v2437 = vunpack.c.h.b16 %v2388
        %v2438 = vunpack.c.l.b16 %v2389
        %v2439 = vunpack.c.h.b16 %v2389
        %v2440 = vpack.c.b16 %v2410, %v2408
        %v2441 = vpack.c.b16 %v2411, %v2409
        %v2442 = vpack.c.b16 %v2414, %v2412
        %v2443 = vpack.c.b16 %v2415, %v2413
        %v2444 = vpack.c.b16 %v2418, %v2416
        %v2445 = vpack.c.b16 %v2419, %v2417
        %v2446 = vpack.c.b16 %v2422, %v2420
        %v2447 = vpack.c.b16 %v2423, %v2421
        %v2448 = vpack.c.b16 %v2426, %v2424
        %v2449 = vpack.c.b16 %v2427, %v2425
        %v2450 = vpack.c.b16 %v2430, %v2428
        %v2451 = vpack.c.b16 %v2431, %v2429
        %v2452 = vpack.c.b16 %v2434, %v2432
        %v2453 = vpack.c.b16 %v2435, %v2433
        %v2454 = vpack.c.b16 %v2438, %v2436
        %v2455 = vpack.c.b16 %v2439, %v2437
        %2472 = vmatprep.subr.bf16.mxu0 %v2441
        %2473 = vmatpush1.bf16.msra.mxu0 %v2440
        %2474 = vmatprep.subr.bf16.mxu0 %v2443
        %2475 = vmatpush1.bf16.msra.mxu0 %v2442
        %2476 = vmatprep.subr.bf16.mxu0 %v2445
        %2477 = vmatpush1.bf16.msra.mxu0 %v2444
        %2478 = vmatprep.subr.bf16.mxu0 %v2447
        %2479 = vmatpush1.bf16.msra.mxu0 %v2446
        %2480 = vmatprep.subr.bf16.mxu0 %v2449
        %2481 = vmatpush1.bf16.msra.mxu0 %v2448
        %2482 = vmatprep.subr.bf16.mxu0 %v2451
        %2483 = vmatpush1.bf16.msra.mxu0 %v2450
        %2484 = vmatprep.subr.bf16.mxu0 %v2453
        %2485 = vmatpush1.bf16.msra.mxu0 %v2452
        %2486 = vmatprep.subr.bf16.mxu0 %v2455
        %2487 = vmatpush1.bf16.msra.mxu0 %v2454
        %2488 = vmatprep.subr.bf16.mxu0 0
        %2489 = vmatpush1.bf16.msra.mxu0 0
        %2490 = vmatprep.subr.bf16.mxu0 0
        %2491 = vmatpush1.bf16.msra.mxu0 0
        %2492 = vmatprep.subr.bf16.mxu0 0
        %2493 = vmatpush1.bf16.msra.mxu0 0
        %2494 = vmatprep.subr.bf16.mxu0 0
        %2495 = vmatpush1.bf16.msra.mxu0 0
        %2496 = vmatprep.subr.bf16.mxu0 0
        %2497 = vmatpush1.bf16.msra.mxu0 0
        %2498 = vmatprep.subr.bf16.mxu0 0
        %2499 = vmatpush1.bf16.msra.mxu0 0
        %2500 = vmatprep.subr.bf16.mxu0 0
        %2501 = vmatpush1.bf16.msra.mxu0 0
        %2502 = vmatprep.subr.bf16.mxu0 0
        %2503 = vmatpush1.bf16.msra.mxu0 0
        %2504 = vmatprep.mubr.bf16.mxu0 0
        %2505 = vmatmul.mubr.bf16.gmra.mrb[0].mxu0 %v2391
        %v2506 = vpop.f32.mrb[0].mxu0
        %v2507 = vadd.f32 0.0, %v2506
        %v2508 = vpop.f32.mrb[0].mxu0
        %v2509 = vadd.f32 0.0, %v2508
        %v2510 = vpop.f32.mrb[0].mxu0
        %v2511 = vadd.f32 0.0, %v2510
        %v2512 = vpop.f32.mrb[0].mxu0
        %v2513 = vadd.f32 0.0, %v2512
        %2514 = vdwg.mxu0
        %v2531 = vunpack.c.l.b16 %v2358
        %v2532 = vunpack.c.h.b16 %v2358
        %v2533 = vunpack.c.l.b16 %v2359
        %v2534 = vunpack.c.h.b16 %v2359
        %v2535 = vunpack.c.l.b16 %v2360
        %v2536 = vunpack.c.h.b16 %v2360
        %v2537 = vunpack.c.l.b16 %v2361
        %v2538 = vunpack.c.h.b16 %v2361
        %v2539 = vunpack.c.l.b16 %v2362
        %v2540 = vunpack.c.h.b16 %v2362
        %v2541 = vunpack.c.l.b16 %v2363
        %v2542 = vunpack.c.h.b16 %v2363
        %v2543 = vunpack.c.l.b16 %v2364
        %v2544 = vunpack.c.h.b16 %v2364
        %v2545 = vunpack.c.l.b16 %v2365
        %v2546 = vunpack.c.h.b16 %v2365
        %v2547 = vunpack.c.l.b16 %v2366
        %v2548 = vunpack.c.h.b16 %v2366
        %v2549 = vunpack.c.l.b16 %v2367
        %v2550 = vunpack.c.h.b16 %v2367
        %v2551 = vunpack.c.l.b16 %v2368
        %v2552 = vunpack.c.h.b16 %v2368
        %v2553 = vunpack.c.l.b16 %v2369
        %v2554 = vunpack.c.h.b16 %v2369
        %v2555 = vunpack.c.l.b16 %v2370
        %v2556 = vunpack.c.h.b16 %v2370
        %v2557 = vunpack.c.l.b16 %v2371
        %v2558 = vunpack.c.h.b16 %v2371
        %v2559 = vunpack.c.l.b16 %v2372
        %v2560 = vunpack.c.h.b16 %v2372
        %v2561 = vunpack.c.l.b16 %v2373
        %v2562 = vunpack.c.h.b16 %v2373
        %v2563 = vpack.c.b16 %v2533, %v2531
        %v2564 = vpack.c.b16 %v2534, %v2532
        %v2565 = vpack.c.b16 %v2537, %v2535
        %v2566 = vpack.c.b16 %v2538, %v2536
        %v2567 = vpack.c.b16 %v2541, %v2539
        %v2568 = vpack.c.b16 %v2542, %v2540
        %v2569 = vpack.c.b16 %v2545, %v2543
        %v2570 = vpack.c.b16 %v2546, %v2544
        %v2571 = vpack.c.b16 %v2549, %v2547
        %v2572 = vpack.c.b16 %v2550, %v2548
        %v2573 = vpack.c.b16 %v2553, %v2551
        %v2574 = vpack.c.b16 %v2554, %v2552
        %v2575 = vpack.c.b16 %v2557, %v2555
        %v2576 = vpack.c.b16 %v2558, %v2556
        %v2577 = vpack.c.b16 %v2561, %v2559
        %v2578 = vpack.c.b16 %v2562, %v2560
        %2595 = vmatprep.subr.bf16.mxu0 %v2564
        %2596 = vmatpush1.bf16.msra.mxu0 %v2563
        %2597 = vmatprep.subr.bf16.mxu0 %v2566
        %2598 = vmatpush1.bf16.msra.mxu0 %v2565
        %2599 = vmatprep.subr.bf16.mxu0 %v2568
        %2600 = vmatpush1.bf16.msra.mxu0 %v2567
        %2601 = vmatprep.subr.bf16.mxu0 %v2570
        %2602 = vmatpush1.bf16.msra.mxu0 %v2569
        %2603 = vmatprep.subr.bf16.mxu0 %v2572
        %2604 = vmatpush1.bf16.msra.mxu0 %v2571
        %2605 = vmatprep.subr.bf16.mxu0 %v2574
        %2606 = vmatpush1.bf16.msra.mxu0 %v2573
        %2607 = vmatprep.subr.bf16.mxu0 %v2576
        %2608 = vmatpush1.bf16.msra.mxu0 %v2575
        %2609 = vmatprep.subr.bf16.mxu0 %v2578
        %2610 = vmatpush1.bf16.msra.mxu0 %v2577
        %2611 = vmatprep.subr.bf16.mxu0 0
        %2612 = vmatpush1.bf16.msra.mxu0 0
        %2613 = vmatprep.subr.bf16.mxu0 0
        %2614 = vmatpush1.bf16.msra.mxu0 0
        %2615 = vmatprep.subr.bf16.mxu0 0
        %2616 = vmatpush1.bf16.msra.mxu0 0
        %2617 = vmatprep.subr.bf16.mxu0 0
        %2618 = vmatpush1.bf16.msra.mxu0 0
        %2619 = vmatprep.subr.bf16.mxu0 0
        %2620 = vmatpush1.bf16.msra.mxu0 0
        %2621 = vmatprep.subr.bf16.mxu0 0
        %2622 = vmatpush1.bf16.msra.mxu0 0
        %2623 = vmatprep.subr.bf16.mxu0 0
        %2624 = vmatpush1.bf16.msra.mxu0 0
        %2625 = vmatprep.subr.bf16.mxu0 0
        %2626 = vmatpush1.bf16.msra.mxu0 0
        %2627 = vmatprep.mubr.bf16.mxu0 0
        %2628 = vmatmul.mubr.bf16.gmra.mrb[0].mxu0 %v2390
        %v2629 = vpop.f32.mrb[0].mxu0
        %v2630 = vadd.f32 %v2507, %v2629
        %v2631 = vpop.f32.mrb[0].mxu0
        %v2632 = vadd.f32 %v2509, %v2631
        %v2633 = vpop.f32.mrb[0].mxu0
        %v2634 = vadd.f32 %v2511, %v2633
        %v2635 = vpop.f32.mrb[0].mxu0
        %v2636 = vadd.f32 %v2513, %v2635
        %2637 = vdwg.mxu0
        %v2638 = vpack.c.bf16 %v2311, %v2308
        %v2639 = vpack.c.bf16 %v2355, %v2352
        %2640 = vmatprep.subr.bf16.mxu0 %v2441
        %2641 = vmatpush1.bf16.msra.mxu0 %v2440
        %2642 = vmatprep.subr.bf16.mxu0 %v2443
        %2643 = vmatpush1.bf16.msra.mxu0 %v2442
        %2644 = vmatprep.subr.bf16.mxu0 %v2445
        %2645 = vmatpush1.bf16.msra.mxu0 %v2444
        %2646 = vmatprep.subr.bf16.mxu0 %v2447
        %2647 = vmatpush1.bf16.msra.mxu0 %v2446
        %2648 = vmatprep.subr.bf16.mxu0 %v2449
        %2649 = vmatpush1.bf16.msra.mxu0 %v2448
        %2650 = vmatprep.subr.bf16.mxu0 %v2451
        %2651 = vmatpush1.bf16.msra.mxu0 %v2450
        %2652 = vmatprep.subr.bf16.mxu0 %v2453
        %2653 = vmatpush1.bf16.msra.mxu0 %v2452
        %2654 = vmatprep.subr.bf16.mxu0 %v2455
        %2655 = vmatpush1.bf16.msra.mxu0 %v2454
        %2656 = vmatprep.subr.bf16.mxu0 0
        %2657 = vmatpush1.bf16.msra.mxu0 0
        %2658 = vmatprep.subr.bf16.mxu0 0
        %2659 = vmatpush1.bf16.msra.mxu0 0
        %2660 = vmatprep.subr.bf16.mxu0 0
        %2661 = vmatpush1.bf16.msra.mxu0 0
        %2662 = vmatprep.subr.bf16.mxu0 0
        %2663 = vmatpush1.bf16.msra.mxu0 0
        %2664 = vmatprep.subr.bf16.mxu0 0
        %2665 = vmatpush1.bf16.msra.mxu0 0
        %2666 = vmatprep.subr.bf16.mxu0 0
        %2667 = vmatpush1.bf16.msra.mxu0 0
        %2668 = vmatprep.subr.bf16.mxu0 0
        %2669 = vmatpush1.bf16.msra.mxu0 0
        %2670 = vmatprep.subr.bf16.mxu0 0
        %2671 = vmatpush1.bf16.msra.mxu0 0
        %2672 = vmatprep.mubr.bf16.mxu0 0
        %2673 = vmatmul.mubr.bf16.gmra.mrb[0].mxu0 %v2639
        %v2674 = vpop.f32.mrb[0].mxu0
        %v2675 = vadd.f32 0.0, %v2674
        %v2676 = vpop.f32.mrb[0].mxu0
        %v2677 = vadd.f32 0.0, %v2676
        %v2678 = vpop.f32.mrb[0].mxu0
        %v2679 = vadd.f32 0.0, %v2678
        %v2680 = vpop.f32.mrb[0].mxu0
        %v2681 = vadd.f32 0.0, %v2680
        %2682 = vdwg.mxu0
        %2683 = vmatprep.subr.bf16.mxu0 %v2564
        %2684 = vmatpush1.bf16.msra.mxu0 %v2563
        %2685 = vmatprep.subr.bf16.mxu0 %v2566
        %2686 = vmatpush1.bf16.msra.mxu0 %v2565
        %2687 = vmatprep.subr.bf16.mxu0 %v2568
        %2688 = vmatpush1.bf16.msra.mxu0 %v2567
        %2689 = vmatprep.subr.bf16.mxu0 %v2570
        %2690 = vmatpush1.bf16.msra.mxu0 %v2569
        %2691 = vmatprep.subr.bf16.mxu0 %v2572
        %2692 = vmatpush1.bf16.msra.mxu0 %v2571
        %2693 = vmatprep.subr.bf16.mxu0 %v2574
        %2694 = vmatpush1.bf16.msra.mxu0 %v2573
        %2695 = vmatprep.subr.bf16.mxu0 %v2576
        %2696 = vmatpush1.bf16.msra.mxu0 %v2575
        %2697 = vmatprep.subr.bf16.mxu0 %v2578
        %2698 = vmatpush1.bf16.msra.mxu0 %v2577
        %2699 = vmatprep.subr.bf16.mxu0 0
        %2700 = vmatpush1.bf16.msra.mxu0 0
        %2701 = vmatprep.subr.bf16.mxu0 0
        %2702 = vmatpush1.bf16.msra.mxu0 0
        %2703 = vmatprep.subr.bf16.mxu0 0
        %2704 = vmatpush1.bf16.msra.mxu0 0
        %2705 = vmatprep.subr.bf16.mxu0 0
        %2706 = vmatpush1.bf16.msra.mxu0 0
        %2707 = vmatprep.subr.bf16.mxu0 0
        %2708 = vmatpush1.bf16.msra.mxu0 0
        %2709 = vmatprep.subr.bf16.mxu0 0
        %2710 = vmatpush1.bf16.msra.mxu0 0
        %2711 = vmatprep.subr.bf16.mxu0 0
        %2712 = vmatpush1.bf16.msra.mxu0 0
        %2713 = vmatprep.subr.bf16.mxu0 0
        %2714 = vmatpush1.bf16.msra.mxu0 0
        %2715 = vmatprep.mubr.bf16.mxu0 0
        %2716 = vmatmul.mubr.bf16.gmra.mrb[0].mxu0 %v2638
        %v2717 = vpop.f32.mrb[0].mxu0
        %v2718 = vadd.f32 %v2675, %v2717
        %v2719 = vpop.f32.mrb[0].mxu0
        %v2720 = vadd.f32 %v2677, %v2719
        %v2721 = vpop.f32.mrb[0].mxu0
        %v2722 = vadd.f32 %v2679, %v2721
        %v2723 = vpop.f32.mrb[0].mxu0
        %v2724 = vadd.f32 %v2681, %v2723
        %2725 = vdwg.mxu0
        %v2726 = vld [vmem:[%s884] sm:$0x3]
        %v2728 = vlaneseq
        %v2729 = vshrl.u32 %v2728, 7
        %v2730 = vsub.s32 0, %v2729
        %v2731 = vrot.slane %v2726, %v2730
        %v2732 = vlaneseq
        %v2733 = vshrl.u32 %v2732, 7
        %v2734 = vsub.s32 1, %v2733
        %v2735 = vrot.slane %v2726, %v2734
        %v2738 = vadd.f32 %v2630, %v2731
        %v2739 = vadd.f32 %v2632, %v2735
        %v2740 = vadd.f32 %v2634, %v2731
        %v2741 = vadd.f32 %v2636, %v2735
        %v2742 = vadd.f32 %v2718, %v2731
        %v2743 = vadd.f32 %v2720, %v2735
        %v2744 = vadd.f32 %v2722, %v2731
        %v2745 = vadd.f32 %v2724, %v2735
        %v2746 = vadd.f32 %v1107, %v2738
        %v2747 = vadd.f32 %v1108, %v2739
        %v2748 = vadd.f32 %v1109, %v2740
        %v2749 = vadd.f32 %v1110, %v2741
        %v2750 = vadd.f32 %v1111, %v2742
        %v2751 = vadd.f32 %v1112, %v2743
        %v2752 = vadd.f32 %v1113, %v2744
        %v2753 = vadd.f32 %v1114, %v2745
        %v2754 = vld [vmem:[%s888] sm:$0x3]
        %v2755 = vld [vmem:[%s892] sm:$0x3]
        %v2756 = vadd.f32 %v2746, %v2747
        %2757 = vadd.xlane.f32.xlu0 %v2756
        %v2758 = vpop.xlane.xlu0 %2757
        %v2759 = vadd.f32 %v2748, %v2749
        %2760 = vadd.xlane.f32.xlu0 %v2759
        %v2761 = vpop.xlane.xlu0 %2760
        %v2762 = vadd.f32 %v2750, %v2751
        %2763 = vadd.xlane.f32.xlu0 %v2762
        %v2764 = vpop.xlane.xlu0 %2763
        %v2765 = vadd.f32 %v2752, %v2753
        %2766 = vadd.xlane.f32.xlu0 %v2765
        %v2767 = vpop.xlane.xlu0 %2766
        %v2768 = vrcp.pop 256.0
        %v2769 = vmul.f32 %v2758, %v2768
        %v2770 = vmul.f32 %v2761, %v2768
        %v2771 = vmul.f32 %v2764, %v2768
        %v2772 = vmul.f32 %v2767, %v2768
        %v2773 = vsub.f32 %v2746, %v2769
        %v2774 = vsub.f32 %v2747, %v2769
        %v2775 = vsub.f32 %v2748, %v2770
        %v2776 = vsub.f32 %v2749, %v2770
        %v2777 = vsub.f32 %v2750, %v2771
        %v2778 = vsub.f32 %v2751, %v2771
        %v2779 = vsub.f32 %v2752, %v2772
        %v2780 = vsub.f32 %v2753, %v2772
        %v2781 = vmul.f32 %v2773, %v2773
        %v2782 = vmul.f32 %v2774, %v2774
        %v2783 = vmul.f32 %v2775, %v2775
        %v2784 = vmul.f32 %v2776, %v2776
        %v2785 = vmul.f32 %v2777, %v2777
        %v2786 = vmul.f32 %v2778, %v2778
        %v2787 = vmul.f32 %v2779, %v2779
        %v2788 = vmul.f32 %v2780, %v2780
        %v2789 = vadd.f32 %v2781, %v2782
        %2790 = vadd.xlane.f32.xlu0 %v2789
        %v2791 = vpop.xlane.xlu0 %2790
        %v2792 = vadd.f32 %v2783, %v2784
        %2793 = vadd.xlane.f32.xlu0 %v2792
        %v2794 = vpop.xlane.xlu0 %2793
        %v2795 = vadd.f32 %v2785, %v2786
        %2796 = vadd.xlane.f32.xlu0 %v2795
        %v2797 = vpop.xlane.xlu0 %2796
        %v2798 = vadd.f32 %v2787, %v2788
        %2799 = vadd.xlane.f32.xlu0 %v2798
        %v2800 = vpop.xlane.xlu0 %2799
        %v2801 = vmul.f32 %v2791, %v2768
        %v2802 = vmul.f32 %v2794, %v2768
        %v2803 = vmul.f32 %v2797, %v2768
        %v2804 = vmul.f32 %v2800, %v2768
        %v2805 = vadd.f32 %v2801, 1e-05
        %v2806 = vadd.f32 %v2802, 1e-05
        %v2807 = vadd.f32 %v2803, 1e-05
        %v2808 = vadd.f32 %v2804, 1e-05
        %v2809 = vrsqrt.pop %v2805
        %v2810 = vrsqrt.pop %v2806
        %v2811 = vrsqrt.pop %v2807
        %v2812 = vrsqrt.pop %v2808
        %v2813 = vmul.f32 %v2773, %v2809
        %v2814 = vmul.f32 %v2774, %v2809
        %v2815 = vmul.f32 %v2775, %v2810
        %v2816 = vmul.f32 %v2776, %v2810
        %v2817 = vmul.f32 %v2777, %v2811
        %v2818 = vmul.f32 %v2778, %v2811
        %v2819 = vmul.f32 %v2779, %v2812
        %v2820 = vmul.f32 %v2780, %v2812
        %v2822 = vlaneseq
        %v2823 = vshrl.u32 %v2822, 7
        %v2824 = vsub.s32 0, %v2823
        %v2825 = vrot.slane %v2754, %v2824
        %v2826 = vlaneseq
        %v2827 = vshrl.u32 %v2826, 7
        %v2828 = vsub.s32 1, %v2827
        %v2829 = vrot.slane %v2754, %v2828
        %v2832 = vmul.f32 %v2813, %v2825
        %v2833 = vmul.f32 %v2814, %v2829
        %v2834 = vmul.f32 %v2815, %v2825
        %v2835 = vmul.f32 %v2816, %v2829
        %v2836 = vmul.f32 %v2817, %v2825
        %v2837 = vmul.f32 %v2818, %v2829
        %v2838 = vmul.f32 %v2819, %v2825
        %v2839 = vmul.f32 %v2820, %v2829
        %v2841 = vlaneseq
        %v2842 = vshrl.u32 %v2841, 7
        %v2843 = vsub.s32 0, %v2842
        %v2844 = vrot.slane %v2755, %v2843
        %v2845 = vlaneseq
        %v2846 = vshrl.u32 %v2845, 7
        %v2847 = vsub.s32 1, %v2846
        %v2848 = vrot.slane %v2755, %v2847
        %v2851 = vadd.f32 %v2832, %v2844
        %v2852 = vadd.f32 %v2833, %v2848
        %v2853 = vadd.f32 %v2834, %v2844
        %v2854 = vadd.f32 %v2835, %v2848
        %v2855 = vadd.f32 %v2836, %v2844
        %v2856 = vadd.f32 %v2837, %v2848
        %v2857 = vadd.f32 %v2838, %v2844
        %v2858 = vadd.f32 %v2839, %v2848
        %v2859 = vpack.c.bf16 %v2853, %v2851
        %v2860 = vpack.c.bf16 %v2854, %v2852
        %v2861 = vpack.c.bf16 %v2857, %v2855
        %v2862 = vpack.c.bf16 %v2858, %v2856
        %v2863 = vld [vmem:[%s770] sm:$0xff]
        %v2864 = vld [vmem:[%s770 + $0x8] sm:$0xff]
        %v2865 = vld [vmem:[%s770 + $0x10] sm:$0xff]
        %v2866 = vld [vmem:[%s770 + $0x18] sm:$0xff]
        %v2867 = vld [vmem:[%s770 + $0x20] sm:$0xff]
        %v2868 = vld [vmem:[%s770 + $0x28] sm:$0xff]
        %v2869 = vld [vmem:[%s770 + $0x30] sm:$0xff]
        %v2870 = vld [vmem:[%s770 + $0x38] sm:$0xff]
        %v2871 = vld [vmem:[%s770 + $0x40] sm:$0xff]
        %v2872 = vld [vmem:[%s770 + $0x48] sm:$0xff]
        %v2873 = vld [vmem:[%s770 + $0x50] sm:$0xff]
        %v2874 = vld [vmem:[%s770 + $0x58] sm:$0xff]
        %v2875 = vld [vmem:[%s770 + $0x60] sm:$0xff]
        %v2876 = vld [vmem:[%s770 + $0x68] sm:$0xff]
        %v2877 = vld [vmem:[%s770 + $0x70] sm:$0xff]
        %v2878 = vld [vmem:[%s770 + $0x78] sm:$0xff]
        %v2879 = vld [vmem:[%s770 + $0x80] sm:$0xff]
        %v2880 = vld [vmem:[%s770 + $0x88] sm:$0xff]
        %v2881 = vld [vmem:[%s770 + $0x90] sm:$0xff]
        %v2882 = vld [vmem:[%s770 + $0x98] sm:$0xff]
        %v2883 = vld [vmem:[%s770 + $0xa0] sm:$0xff]
        %v2884 = vld [vmem:[%s770 + $0xa8] sm:$0xff]
        %v2885 = vld [vmem:[%s770 + $0xb0] sm:$0xff]
        %v2886 = vld [vmem:[%s770 + $0xb8] sm:$0xff]
        %v2887 = vld [vmem:[%s770 + $0xc0] sm:$0xff]
        %v2888 = vld [vmem:[%s770 + $0xc8] sm:$0xff]
        %v2889 = vld [vmem:[%s770 + $0xd0] sm:$0xff]
        %v2890 = vld [vmem:[%s770 + $0xd8] sm:$0xff]
        %v2891 = vld [vmem:[%s770 + $0xe0] sm:$0xff]
        %v2892 = vld [vmem:[%s770 + $0xe8] sm:$0xff]
        %v2893 = vld [vmem:[%s770 + $0xf0] sm:$0xff]
        %v2894 = vld [vmem:[%s770 + $0xf8] sm:$0xff]
        %v2895 = vld [vmem:[%s770 + $0x100] sm:$0xff]
        %v2896 = vld [vmem:[%s770 + $0x108] sm:$0xff]
        %v2897 = vld [vmem:[%s770 + $0x110] sm:$0xff]
        %v2898 = vld [vmem:[%s770 + $0x118] sm:$0xff]
        %v2899 = vld [vmem:[%s770 + $0x120] sm:$0xff]
        %v2900 = vld [vmem:[%s770 + $0x128] sm:$0xff]
        %v2901 = vld [vmem:[%s770 + $0x130] sm:$0xff]
        %v2902 = vld [vmem:[%s770 + $0x138] sm:$0xff]
        %v2903 = vld [vmem:[%s770 + $0x140] sm:$0xff]
        %v2904 = vld [vmem:[%s770 + $0x148] sm:$0xff]
        %v2905 = vld [vmem:[%s770 + $0x150] sm:$0xff]
        %v2906 = vld [vmem:[%s770 + $0x158] sm:$0xff]
        %v2907 = vld [vmem:[%s770 + $0x160] sm:$0xff]
        %v2908 = vld [vmem:[%s770 + $0x168] sm:$0xff]
        %v2909 = vld [vmem:[%s770 + $0x170] sm:$0xff]
        %v2910 = vld [vmem:[%s770 + $0x178] sm:$0xff]
        %v2911 = vld [vmem:[%s770 + $0x180] sm:$0xff]
        %v2912 = vld [vmem:[%s770 + $0x188] sm:$0xff]
        %v2913 = vld [vmem:[%s770 + $0x190] sm:$0xff]
        %v2914 = vld [vmem:[%s770 + $0x198] sm:$0xff]
        %v2915 = vld [vmem:[%s770 + $0x1a0] sm:$0xff]
        %v2916 = vld [vmem:[%s770 + $0x1a8] sm:$0xff]
        %v2917 = vld [vmem:[%s770 + $0x1b0] sm:$0xff]
        %v2918 = vld [vmem:[%s770 + $0x1b8] sm:$0xff]
        %v2919 = vld [vmem:[%s770 + $0x1c0] sm:$0xff]
        %v2920 = vld [vmem:[%s770 + $0x1c8] sm:$0xff]
        %v2921 = vld [vmem:[%s770 + $0x1d0] sm:$0xff]
        %v2922 = vld [vmem:[%s770 + $0x1d8] sm:$0xff]
        %v2923 = vld [vmem:[%s770 + $0x1e0] sm:$0xff]
        %v2924 = vld [vmem:[%s770 + $0x1e8] sm:$0xff]
        %v2925 = vld [vmem:[%s770 + $0x1f0] sm:$0xff]
        %v2926 = vld [vmem:[%s770 + $0x1f8] sm:$0xff]
        %v2927 = vld [vmem:[%s770 + $0x200] sm:$0xff]
        %v2928 = vld [vmem:[%s770 + $0x208] sm:$0xff]
        %v2929 = vld [vmem:[%s770 + $0x210] sm:$0xff]
        %v2930 = vld [vmem:[%s770 + $0x218] sm:$0xff]
        %v2931 = vld [vmem:[%s770 + $0x220] sm:$0xff]
        %v2932 = vld [vmem:[%s770 + $0x228] sm:$0xff]
        %v2933 = vld [vmem:[%s770 + $0x230] sm:$0xff]
        %v2934 = vld [vmem:[%s770 + $0x238] sm:$0xff]
        %v2935 = vld [vmem:[%s770 + $0x240] sm:$0xff]
        %v2936 = vld [vmem:[%s770 + $0x248] sm:$0xff]
        %v2937 = vld [vmem:[%s770 + $0x250] sm:$0xff]
        %v2938 = vld [vmem:[%s770 + $0x258] sm:$0xff]
        %v2939 = vld [vmem:[%s770 + $0x260] sm:$0xff]
        %v2940 = vld [vmem:[%s770 + $0x268] sm:$0xff]
        %v2941 = vld [vmem:[%s770 + $0x270] sm:$0xff]
        %v2942 = vld [vmem:[%s770 + $0x278] sm:$0xff]
        %v2943 = vld [vmem:[%s770 + $0x280] sm:$0xff]
        %v2944 = vld [vmem:[%s770 + $0x288] sm:$0xff]
        %v2945 = vld [vmem:[%s770 + $0x290] sm:$0xff]
        %v2946 = vld [vmem:[%s770 + $0x298] sm:$0xff]
        %v2947 = vld [vmem:[%s770 + $0x2a0] sm:$0xff]
        %v2948 = vld [vmem:[%s770 + $0x2a8] sm:$0xff]
        %v2949 = vld [vmem:[%s770 + $0x2b0] sm:$0xff]
        %v2950 = vld [vmem:[%s770 + $0x2b8] sm:$0xff]
        %v2951 = vld [vmem:[%s770 + $0x2c0] sm:$0xff]
        %v2952 = vld [vmem:[%s770 + $0x2c8] sm:$0xff]
        %v2953 = vld [vmem:[%s770 + $0x2d0] sm:$0xff]
        %v2954 = vld [vmem:[%s770 + $0x2d8] sm:$0xff]
        %v2955 = vld [vmem:[%s770 + $0x2e0] sm:$0xff]
        %v2956 = vld [vmem:[%s770 + $0x2e8] sm:$0xff]
        %v2957 = vld [vmem:[%s770 + $0x2f0] sm:$0xff]
        %v2958 = vld [vmem:[%s770 + $0x2f8] sm:$0xff]
        %v2959 = vld [vmem:[%s770 + $0x300] sm:$0xff]
        %v2960 = vld [vmem:[%s770 + $0x308] sm:$0xff]
        %v2961 = vld [vmem:[%s770 + $0x310] sm:$0xff]
        %v2962 = vld [vmem:[%s770 + $0x318] sm:$0xff]
        %v2963 = vld [vmem:[%s770 + $0x320] sm:$0xff]
        %v2964 = vld [vmem:[%s770 + $0x328] sm:$0xff]
        %v2965 = vld [vmem:[%s770 + $0x330] sm:$0xff]
        %v2966 = vld [vmem:[%s770 + $0x338] sm:$0xff]
        %v2967 = vld [vmem:[%s770 + $0x340] sm:$0xff]
        %v2968 = vld [vmem:[%s770 + $0x348] sm:$0xff]
        %v2969 = vld [vmem:[%s770 + $0x350] sm:$0xff]
        %v2970 = vld [vmem:[%s770 + $0x358] sm:$0xff]
        %v2971 = vld [vmem:[%s770 + $0x360] sm:$0xff]
        %v2972 = vld [vmem:[%s770 + $0x368] sm:$0xff]
        %v2973 = vld [vmem:[%s770 + $0x370] sm:$0xff]
        %v2974 = vld [vmem:[%s770 + $0x378] sm:$0xff]
        %v2975 = vld [vmem:[%s770 + $0x380] sm:$0xff]
        %v2976 = vld [vmem:[%s770 + $0x388] sm:$0xff]
        %v2977 = vld [vmem:[%s770 + $0x390] sm:$0xff]
        %v2978 = vld [vmem:[%s770 + $0x398] sm:$0xff]
        %v2979 = vld [vmem:[%s770 + $0x3a0] sm:$0xff]
        %v2980 = vld [vmem:[%s770 + $0x3a8] sm:$0xff]
        %v2981 = vld [vmem:[%s770 + $0x3b0] sm:$0xff]
        %v2982 = vld [vmem:[%s770 + $0x3b8] sm:$0xff]
        %v2983 = vld [vmem:[%s770 + $0x3c0] sm:$0xff]
        %v2984 = vld [vmem:[%s770 + $0x3c8] sm:$0xff]
        %v2985 = vld [vmem:[%s770 + $0x3d0] sm:$0xff]
        %v2986 = vld [vmem:[%s770 + $0x3d8] sm:$0xff]
        %v2987 = vld [vmem:[%s770 + $0x3e0] sm:$0xff]
        %v2988 = vld [vmem:[%s770 + $0x3e8] sm:$0xff]
        %v2989 = vld [vmem:[%s770 + $0x3f0] sm:$0xff]
        %v2990 = vld [vmem:[%s770 + $0x3f8] sm:$0xff]
        %v2991 = vld [vmem:[%s896] sm:$0xff]
        %v2993 = vlaneseq
        %v2994 = vshrl.u32 %v2993, 7
        %v2995 = vsub.s32 0, %v2994
        %v2996 = vrot.slane %v2991, %v2995
        %v2997 = vlaneseq
        %v2998 = vshrl.u32 %v2997, 7
        %v2999 = vsub.s32 1, %v2998
        %v3000 = vrot.slane %v2991, %v2999
        %v3001 = vlaneseq
        %v3002 = vshrl.u32 %v3001, 7
        %v3003 = vsub.s32 2, %v3002
        %v3004 = vrot.slane %v2991, %v3003
        %v3005 = vlaneseq
        %v3006 = vshrl.u32 %v3005, 7
        %v3007 = vsub.s32 3, %v3006
        %v3008 = vrot.slane %v2991, %v3007
        %v3009 = vlaneseq
        %v3010 = vshrl.u32 %v3009, 7
        %v3011 = vsub.s32 4, %v3010
        %v3012 = vrot.slane %v2991, %v3011
        %v3013 = vlaneseq
        %v3014 = vshrl.u32 %v3013, 7
        %v3015 = vsub.s32 5, %v3014
        %v3016 = vrot.slane %v2991, %v3015
        %v3017 = vlaneseq
        %v3018 = vshrl.u32 %v3017, 7
        %v3019 = vsub.s32 6, %v3018
        %v3020 = vrot.slane %v2991, %v3019
        %v3021 = vlaneseq
        %v3022 = vshrl.u32 %v3021, 7
        %v3023 = vsub.s32 7, %v3022
        %v3024 = vrot.slane %v2991, %v3023
        %v3161 = vunpack.c.l.b16 %v2863
        %v3162 = vunpack.c.h.b16 %v2863
        %v3163 = vunpack.c.l.b16 %v2864
        %v3164 = vunpack.c.h.b16 %v2864
        %v3165 = vunpack.c.l.b16 %v2865
        %v3166 = vunpack.c.h.b16 %v2865
        %v3167 = vunpack.c.l.b16 %v2866
        %v3168 = vunpack.c.h.b16 %v2866
        %v3169 = vunpack.c.l.b16 %v2867
        %v3170 = vunpack.c.h.b16 %v2867
        %v3171 = vunpack.c.l.b16 %v2868
        %v3172 = vunpack.c.h.b16 %v2868
        %v3173 = vunpack.c.l.b16 %v2869
        %v3174 = vunpack.c.h.b16 %v2869
        %v3175 = vunpack.c.l.b16 %v2870
        %v3176 = vunpack.c.h.b16 %v2870
        %v3177 = vunpack.c.l.b16 %v2871
        %v3178 = vunpack.c.h.b16 %v2871
        %v3179 = vunpack.c.l.b16 %v2872
        %v3180 = vunpack.c.h.b16 %v2872
        %v3181 = vunpack.c.l.b16 %v2873
        %v3182 = vunpack.c.h.b16 %v2873
        %v3183 = vunpack.c.l.b16 %v2874
        %v3184 = vunpack.c.h.b16 %v2874
        %v3185 = vunpack.c.l.b16 %v2875
        %v3186 = vunpack.c.h.b16 %v2875
        %v3187 = vunpack.c.l.b16 %v2876
        %v3188 = vunpack.c.h.b16 %v2876
        %v3189 = vunpack.c.l.b16 %v2877
        %v3190 = vunpack.c.h.b16 %v2877
        %v3191 = vunpack.c.l.b16 %v2878
        %v3192 = vunpack.c.h.b16 %v2878
        %v3193 = vunpack.c.l.b16 %v2879
        %v3194 = vunpack.c.h.b16 %v2879
        %v3195 = vunpack.c.l.b16 %v2880
        %v3196 = vunpack.c.h.b16 %v2880
        %v3197 = vunpack.c.l.b16 %v2881
        %v3198 = vunpack.c.h.b16 %v2881
        %v3199 = vunpack.c.l.b16 %v2882
        %v3200 = vunpack.c.h.b16 %v2882
        %v3201 = vunpack.c.l.b16 %v2883
        %v3202 = vunpack.c.h.b16 %v2883
        %v3203 = vunpack.c.l.b16 %v2884
        %v3204 = vunpack.c.h.b16 %v2884
        %v3205 = vunpack.c.l.b16 %v2885
        %v3206 = vunpack.c.h.b16 %v2885
        %v3207 = vunpack.c.l.b16 %v2886
        %v3208 = vunpack.c.h.b16 %v2886
        %v3209 = vunpack.c.l.b16 %v2887
        %v3210 = vunpack.c.h.b16 %v2887
        %v3211 = vunpack.c.l.b16 %v2888
        %v3212 = vunpack.c.h.b16 %v2888
        %v3213 = vunpack.c.l.b16 %v2889
        %v3214 = vunpack.c.h.b16 %v2889
        %v3215 = vunpack.c.l.b16 %v2890
        %v3216 = vunpack.c.h.b16 %v2890
        %v3217 = vunpack.c.l.b16 %v2891
        %v3218 = vunpack.c.h.b16 %v2891
        %v3219 = vunpack.c.l.b16 %v2892
        %v3220 = vunpack.c.h.b16 %v2892
        %v3221 = vunpack.c.l.b16 %v2893
        %v3222 = vunpack.c.h.b16 %v2893
        %v3223 = vunpack.c.l.b16 %v2894
        %v3224 = vunpack.c.h.b16 %v2894
        %v3225 = vunpack.c.l.b16 %v2895
        %v3226 = vunpack.c.h.b16 %v2895
        %v3227 = vunpack.c.l.b16 %v2896
        %v3228 = vunpack.c.h.b16 %v2896
        %v3229 = vunpack.c.l.b16 %v2897
        %v3230 = vunpack.c.h.b16 %v2897
        %v3231 = vunpack.c.l.b16 %v2898
        %v3232 = vunpack.c.h.b16 %v2898
        %v3233 = vunpack.c.l.b16 %v2899
        %v3234 = vunpack.c.h.b16 %v2899
        %v3235 = vunpack.c.l.b16 %v2900
        %v3236 = vunpack.c.h.b16 %v2900
        %v3237 = vunpack.c.l.b16 %v2901
        %v3238 = vunpack.c.h.b16 %v2901
        %v3239 = vunpack.c.l.b16 %v2902
        %v3240 = vunpack.c.h.b16 %v2902
        %v3241 = vunpack.c.l.b16 %v2903
        %v3242 = vunpack.c.h.b16 %v2903
        %v3243 = vunpack.c.l.b16 %v2904
        %v3244 = vunpack.c.h.b16 %v2904
        %v3245 = vunpack.c.l.b16 %v2905
        %v3246 = vunpack.c.h.b16 %v2905
        %v3247 = vunpack.c.l.b16 %v2906
        %v3248 = vunpack.c.h.b16 %v2906
        %v3249 = vunpack.c.l.b16 %v2907
        %v3250 = vunpack.c.h.b16 %v2907
        %v3251 = vunpack.c.l.b16 %v2908
        %v3252 = vunpack.c.h.b16 %v2908
        %v3253 = vunpack.c.l.b16 %v2909
        %v3254 = vunpack.c.h.b16 %v2909
        %v3255 = vunpack.c.l.b16 %v2910
        %v3256 = vunpack.c.h.b16 %v2910
        %v3257 = vunpack.c.l.b16 %v2911
        %v3258 = vunpack.c.h.b16 %v2911
        %v3259 = vunpack.c.l.b16 %v2912
        %v3260 = vunpack.c.h.b16 %v2912
        %v3261 = vunpack.c.l.b16 %v2913
        %v3262 = vunpack.c.h.b16 %v2913
        %v3263 = vunpack.c.l.b16 %v2914
        %v3264 = vunpack.c.h.b16 %v2914
        %v3265 = vunpack.c.l.b16 %v2915
        %v3266 = vunpack.c.h.b16 %v2915
        %v3267 = vunpack.c.l.b16 %v2916
        %v3268 = vunpack.c.h.b16 %v2916
        %v3269 = vunpack.c.l.b16 %v2917
        %v3270 = vunpack.c.h.b16 %v2917
        %v3271 = vunpack.c.l.b16 %v2918
        %v3272 = vunpack.c.h.b16 %v2918
        %v3273 = vunpack.c.l.b16 %v2919
        %v3274 = vunpack.c.h.b16 %v2919
        %v3275 = vunpack.c.l.b16 %v2920
        %v3276 = vunpack.c.h.b16 %v2920
        %v3277 = vunpack.c.l.b16 %v2921
        %v3278 = vunpack.c.h.b16 %v2921
        %v3279 = vunpack.c.l.b16 %v2922
        %v3280 = vunpack.c.h.b16 %v2922
        %v3281 = vunpack.c.l.b16 %v2923
        %v3282 = vunpack.c.h.b16 %v2923
        %v3283 = vunpack.c.l.b16 %v2924
        %v3284 = vunpack.c.h.b16 %v2924
        %v3285 = vunpack.c.l.b16 %v2925
        %v3286 = vunpack.c.h.b16 %v2925
        %v3287 = vunpack.c.l.b16 %v2926
        %v3288 = vunpack.c.h.b16 %v2926
        %v3289 = vunpack.c.l.b16 %v2927
        %v3290 = vunpack.c.h.b16 %v2927
        %v3291 = vunpack.c.l.b16 %v2928
        %v3292 = vunpack.c.h.b16 %v2928
        %v3293 = vunpack.c.l.b16 %v2929
        %v3294 = vunpack.c.h.b16 %v2929
        %v3295 = vunpack.c.l.b16 %v2930
        %v3296 = vunpack.c.h.b16 %v2930
        %v3297 = vunpack.c.l.b16 %v2931
        %v3298 = vunpack.c.h.b16 %v2931
        %v3299 = vunpack.c.l.b16 %v2932
        %v3300 = vunpack.c.h.b16 %v2932
        %v3301 = vunpack.c.l.b16 %v2933
        %v3302 = vunpack.c.h.b16 %v2933
        %v3303 = vunpack.c.l.b16 %v2934
        %v3304 = vunpack.c.h.b16 %v2934
        %v3305 = vunpack.c.l.b16 %v2935
        %v3306 = vunpack.c.h.b16 %v2935
        %v3307 = vunpack.c.l.b16 %v2936
        %v3308 = vunpack.c.h.b16 %v2936
        %v3309 = vunpack.c.l.b16 %v2937
        %v3310 = vunpack.c.h.b16 %v2937
        %v3311 = vunpack.c.l.b16 %v2938
        %v3312 = vunpack.c.h.b16 %v2938
        %v3313 = vunpack.c.l.b16 %v2939
        %v3314 = vunpack.c.h.b16 %v2939
        %v3315 = vunpack.c.l.b16 %v2940
        %v3316 = vunpack.c.h.b16 %v2940
        %v3317 = vunpack.c.l.b16 %v2941
        %v3318 = vunpack.c.h.b16 %v2941
        %v3319 = vunpack.c.l.b16 %v2942
        %v3320 = vunpack.c.h.b16 %v2942
        %v3321 = vunpack.c.l.b16 %v2943
        %v3322 = vunpack.c.h.b16 %v2943
        %v3323 = vunpack.c.l.b16 %v2944
        %v3324 = vunpack.c.h.b16 %v2944
        %v3325 = vunpack.c.l.b16 %v2945
        %v3326 = vunpack.c.h.b16 %v2945
        %v3327 = vunpack.c.l.b16 %v2946
        %v3328 = vunpack.c.h.b16 %v2946
        %v3329 = vunpack.c.l.b16 %v2947
        %v3330 = vunpack.c.h.b16 %v2947
        %v3331 = vunpack.c.l.b16 %v2948
        %v3332 = vunpack.c.h.b16 %v2948
        %v3333 = vunpack.c.l.b16 %v2949
        %v3334 = vunpack.c.h.b16 %v2949
        %v3335 = vunpack.c.l.b16 %v2950
        %v3336 = vunpack.c.h.b16 %v2950
        %v3337 = vunpack.c.l.b16 %v2951
        %v3338 = vunpack.c.h.b16 %v2951
        %v3339 = vunpack.c.l.b16 %v2952
        %v3340 = vunpack.c.h.b16 %v2952
        %v3341 = vunpack.c.l.b16 %v2953
        %v3342 = vunpack.c.h.b16 %v2953
        %v3343 = vunpack.c.l.b16 %v2954
        %v3344 = vunpack.c.h.b16 %v2954
        %v3345 = vunpack.c.l.b16 %v2955
        %v3346 = vunpack.c.h.b16 %v2955
        %v3347 = vunpack.c.l.b16 %v2956
        %v3348 = vunpack.c.h.b16 %v2956
        %v3349 = vunpack.c.l.b16 %v2957
        %v3350 = vunpack.c.h.b16 %v2957
        %v3351 = vunpack.c.l.b16 %v2958
        %v3352 = vunpack.c.h.b16 %v2958
        %v3353 = vunpack.c.l.b16 %v2959
        %v3354 = vunpack.c.h.b16 %v2959
        %v3355 = vunpack.c.l.b16 %v2960
        %v3356 = vunpack.c.h.b16 %v2960
        %v3357 = vunpack.c.l.b16 %v2961
        %v3358 = vunpack.c.h.b16 %v2961
        %v3359 = vunpack.c.l.b16 %v2962
        %v3360 = vunpack.c.h.b16 %v2962
        %v3361 = vunpack.c.l.b16 %v2963
        %v3362 = vunpack.c.h.b16 %v2963
        %v3363 = vunpack.c.l.b16 %v2964
        %v3364 = vunpack.c.h.b16 %v2964
        %v3365 = vunpack.c.l.b16 %v2965
        %v3366 = vunpack.c.h.b16 %v2965
        %v3367 = vunpack.c.l.b16 %v2966
        %v3368 = vunpack.c.h.b16 %v2966
        %v3369 = vunpack.c.l.b16 %v2967
        %v3370 = vunpack.c.h.b16 %v2967
        %v3371 = vunpack.c.l.b16 %v2968
        %v3372 = vunpack.c.h.b16 %v2968
        %v3373 = vunpack.c.l.b16 %v2969
        %v3374 = vunpack.c.h.b16 %v2969
        %v3375 = vunpack.c.l.b16 %v2970
        %v3376 = vunpack.c.h.b16 %v2970
        %v3377 = vunpack.c.l.b16 %v2971
        %v3378 = vunpack.c.h.b16 %v2971
        %v3379 = vunpack.c.l.b16 %v2972
        %v3380 = vunpack.c.h.b16 %v2972
        %v3381 = vunpack.c.l.b16 %v2973
        %v3382 = vunpack.c.h.b16 %v2973
        %v3383 = vunpack.c.l.b16 %v2974
        %v3384 = vunpack.c.h.b16 %v2974
        %v3385 = vunpack.c.l.b16 %v2975
        %v3386 = vunpack.c.h.b16 %v2975
        %v3387 = vunpack.c.l.b16 %v2976
        %v3388 = vunpack.c.h.b16 %v2976
        %v3389 = vunpack.c.l.b16 %v2977
        %v3390 = vunpack.c.h.b16 %v2977
        %v3391 = vunpack.c.l.b16 %v2978
        %v3392 = vunpack.c.h.b16 %v2978
        %v3393 = vunpack.c.l.b16 %v2979
        %v3394 = vunpack.c.h.b16 %v2979
        %v3395 = vunpack.c.l.b16 %v2980
        %v3396 = vunpack.c.h.b16 %v2980
        %v3397 = vunpack.c.l.b16 %v2981
        %v3398 = vunpack.c.h.b16 %v2981
        %v3399 = vunpack.c.l.b16 %v2982
        %v3400 = vunpack.c.h.b16 %v2982
        %v3401 = vunpack.c.l.b16 %v2983
        %v3402 = vunpack.c.h.b16 %v2983
        %v3403 = vunpack.c.l.b16 %v2984
        %v3404 = vunpack.c.h.b16 %v2984
        %v3405 = vunpack.c.l.b16 %v2985
        %v3406 = vunpack.c.h.b16 %v2985
        %v3407 = vunpack.c.l.b16 %v2986
        %v3408 = vunpack.c.h.b16 %v2986
        %v3409 = vunpack.c.l.b16 %v2987
        %v3410 = vunpack.c.h.b16 %v2987
        %v3411 = vunpack.c.l.b16 %v2988
        %v3412 = vunpack.c.h.b16 %v2988
        %v3413 = vunpack.c.l.b16 %v2989
        %v3414 = vunpack.c.h.b16 %v2989
        %v3415 = vunpack.c.l.b16 %v2990
        %v3416 = vunpack.c.h.b16 %v2990
        %v3417 = vpack.c.b16 %v3169, %v3161
        %v3418 = vpack.c.b16 %v3170, %v3162
        %v3419 = vpack.c.b16 %v3171, %v3163
        %v3420 = vpack.c.b16 %v3172, %v3164
        %v3421 = vpack.c.b16 %v3173, %v3165
        %v3422 = vpack.c.b16 %v3174, %v3166
        %v3423 = vpack.c.b16 %v3175, %v3167
        %v3424 = vpack.c.b16 %v3176, %v3168
        %v3425 = vpack.c.b16 %v3185, %v3177
        %v3426 = vpack.c.b16 %v3186, %v3178
        %v3427 = vpack.c.b16 %v3187, %v3179
        %v3428 = vpack.c.b16 %v3188, %v3180
        %v3429 = vpack.c.b16 %v3189, %v3181
        %v3430 = vpack.c.b16 %v3190, %v3182
        %v3431 = vpack.c.b16 %v3191, %v3183
        %v3432 = vpack.c.b16 %v3192, %v3184
        %v3433 = vpack.c.b16 %v3201, %v3193
        %v3434 = vpack.c.b16 %v3202, %v3194
        %v3435 = vpack.c.b16 %v3203, %v3195
        %v3436 = vpack.c.b16 %v3204, %v3196
        %v3437 = vpack.c.b16 %v3205, %v3197
        %v3438 = vpack.c.b16 %v3206, %v3198
        %v3439 = vpack.c.b16 %v3207, %v3199
        %v3440 = vpack.c.b16 %v3208, %v3200
        %v3441 = vpack.c.b16 %v3217, %v3209
        %v3442 = vpack.c.b16 %v3218, %v3210
        %v3443 = vpack.c.b16 %v3219, %v3211
        %v3444 = vpack.c.b16 %v3220, %v3212
        %v3445 = vpack.c.b16 %v3221, %v3213
        %v3446 = vpack.c.b16 %v3222, %v3214
        %v3447 = vpack.c.b16 %v3223, %v3215
        %v3448 = vpack.c.b16 %v3224, %v3216
        %v3449 = vpack.c.b16 %v3233, %v3225
        %v3450 = vpack.c.b16 %v3234, %v3226
        %v3451 = vpack.c.b16 %v3235, %v3227
        %v3452 = vpack.c.b16 %v3236, %v3228
        %v3453 = vpack.c.b16 %v3237, %v3229
        %v3454 = vpack.c.b16 %v3238, %v3230
        %v3455 = vpack.c.b16 %v3239, %v3231
        %v3456 = vpack.c.b16 %v3240, %v3232
        %v3457 = vpack.c.b16 %v3249, %v3241
        %v3458 = vpack.c.b16 %v3250, %v3242
        %v3459 = vpack.c.b16 %v3251, %v3243
        %v3460 = vpack.c.b16 %v3252, %v3244
        %v3461 = vpack.c.b16 %v3253, %v3245
        %v3462 = vpack.c.b16 %v3254, %v3246
        %v3463 = vpack.c.b16 %v3255, %v3247
        %v3464 = vpack.c.b16 %v3256, %v3248
        %v3465 = vpack.c.b16 %v3265, %v3257
        %v3466 = vpack.c.b16 %v3266, %v3258
        %v3467 = vpack.c.b16 %v3267, %v3259
        %v3468 = vpack.c.b16 %v3268, %v3260
        %v3469 = vpack.c.b16 %v3269, %v3261
        %v3470 = vpack.c.b16 %v3270, %v3262
        %v3471 = vpack.c.b16 %v3271, %v3263
        %v3472 = vpack.c.b16 %v3272, %v3264
        %v3473 = vpack.c.b16 %v3281, %v3273
        %v3474 = vpack.c.b16 %v3282, %v3274
        %v3475 = vpack.c.b16 %v3283, %v3275
        %v3476 = vpack.c.b16 %v3284, %v3276
        %v3477 = vpack.c.b16 %v3285, %v3277
        %v3478 = vpack.c.b16 %v3286, %v3278
        %v3479 = vpack.c.b16 %v3287, %v3279
        %v3480 = vpack.c.b16 %v3288, %v3280
        %v3481 = vpack.c.b16 %v3297, %v3289
        %v3482 = vpack.c.b16 %v3298, %v3290
        %v3483 = vpack.c.b16 %v3299, %v3291
        %v3484 = vpack.c.b16 %v3300, %v3292
        %v3485 = vpack.c.b16 %v3301, %v3293
        %v3486 = vpack.c.b16 %v3302, %v3294
        %v3487 = vpack.c.b16 %v3303, %v3295
        %v3488 = vpack.c.b16 %v3304, %v3296
        %v3489 = vpack.c.b16 %v3313, %v3305
        %v3490 = vpack.c.b16 %v3314, %v3306
        %v3491 = vpack.c.b16 %v3315, %v3307
        %v3492 = vpack.c.b16 %v3316, %v3308
        %v3493 = vpack.c.b16 %v3317, %v3309
        %v3494 = vpack.c.b16 %v3318, %v3310
        %v3495 = vpack.c.b16 %v3319, %v3311
        %v3496 = vpack.c.b16 %v3320, %v3312
        %v3497 = vpack.c.b16 %v3329, %v3321
        %v3498 = vpack.c.b16 %v3330, %v3322
        %v3499 = vpack.c.b16 %v3331, %v3323
        %v3500 = vpack.c.b16 %v3332, %v3324
        %v3501 = vpack.c.b16 %v3333, %v3325
        %v3502 = vpack.c.b16 %v3334, %v3326
        %v3503 = vpack.c.b16 %v3335, %v3327
        %v3504 = vpack.c.b16 %v3336, %v3328
        %v3505 = vpack.c.b16 %v3345, %v3337
        %v3506 = vpack.c.b16 %v3346, %v3338
        %v3507 = vpack.c.b16 %v3347, %v3339
        %v3508 = vpack.c.b16 %v3348, %v3340
        %v3509 = vpack.c.b16 %v3349, %v3341
        %v3510 = vpack.c.b16 %v3350, %v3342
        %v3511 = vpack.c.b16 %v3351, %v3343
        %v3512 = vpack.c.b16 %v3352, %v3344
        %v3513 = vpack.c.b16 %v3361, %v3353
        %v3514 = vpack.c.b16 %v3362, %v3354
        %v3515 = vpack.c.b16 %v3363, %v3355
        %v3516 = vpack.c.b16 %v3364, %v3356
        %v3517 = vpack.c.b16 %v3365, %v3357
        %v3518 = vpack.c.b16 %v3366, %v3358
        %v3519 = vpack.c.b16 %v3367, %v3359
        %v3520 = vpack.c.b16 %v3368, %v3360
        %v3521 = vpack.c.b16 %v3377, %v3369
        %v3522 = vpack.c.b16 %v3378, %v3370
        %v3523 = vpack.c.b16 %v3379, %v3371
        %v3524 = vpack.c.b16 %v3380, %v3372
        %v3525 = vpack.c.b16 %v3381, %v3373
        %v3526 = vpack.c.b16 %v3382, %v3374
        %v3527 = vpack.c.b16 %v3383, %v3375
        %v3528 = vpack.c.b16 %v3384, %v3376
        %v3529 = vpack.c.b16 %v3393, %v3385
        %v3530 = vpack.c.b16 %v3394, %v3386
        %v3531 = vpack.c.b16 %v3395, %v3387
        %v3532 = vpack.c.b16 %v3396, %v3388
        %v3533 = vpack.c.b16 %v3397, %v3389
        %v3534 = vpack.c.b16 %v3398, %v3390
        %v3535 = vpack.c.b16 %v3399, %v3391
        %v3536 = vpack.c.b16 %v3400, %v3392
        %v3537 = vpack.c.b16 %v3409, %v3401
        %v3538 = vpack.c.b16 %v3410, %v3402
        %v3539 = vpack.c.b16 %v3411, %v3403
        %v3540 = vpack.c.b16 %v3412, %v3404
        %v3541 = vpack.c.b16 %v3413, %v3405
        %v3542 = vpack.c.b16 %v3414, %v3406
        %v3543 = vpack.c.b16 %v3415, %v3407
        %v3544 = vpack.c.b16 %v3416, %v3408
        %3673 = vmatprep.subr.bf16.mxu0 %v3418
        %3674 = vmatpush1.bf16.msra.mxu0 %v3417
        %3675 = vmatprep.subr.bf16.mxu0 %v3426
        %3676 = vmatpush1.bf16.msra.mxu0 %v3425
        %3677 = vmatprep.subr.bf16.mxu0 %v3434
        %3678 = vmatpush1.bf16.msra.mxu0 %v3433
        %3679 = vmatprep.subr.bf16.mxu0 %v3442
        %3680 = vmatpush1.bf16.msra.mxu0 %v3441
        %3681 = vmatprep.subr.bf16.mxu0 %v3450
        %3682 = vmatpush1.bf16.msra.mxu0 %v3449
        %3683 = vmatprep.subr.bf16.mxu0 %v3458
        %3684 = vmatpush1.bf16.msra.mxu0 %v3457
        %3685 = vmatprep.subr.bf16.mxu0 %v3466
        %3686 = vmatpush1.bf16.msra.mxu0 %v3465
        %3687 = vmatprep.subr.bf16.mxu0 %v3474
        %3688 = vmatpush1.bf16.msra.mxu0 %v3473
        %3689 = vmatprep.subr.bf16.mxu0 %v3482
        %3690 = vmatpush1.bf16.msra.mxu0 %v3481
        %3691 = vmatprep.subr.bf16.mxu0 %v3490
        %3692 = vmatpush1.bf16.msra.mxu0 %v3489
        %3693 = vmatprep.subr.bf16.mxu0 %v3498
        %3694 = vmatpush1.bf16.msra.mxu0 %v3497
        %3695 = vmatprep.subr.bf16.mxu0 %v3506
        %3696 = vmatpush1.bf16.msra.mxu0 %v3505
        %3697 = vmatprep.subr.bf16.mxu0 %v3514
        %3698 = vmatpush1.bf16.msra.mxu0 %v3513
        %3699 = vmatprep.subr.bf16.mxu0 %v3522
        %3700 = vmatpush1.bf16.msra.mxu0 %v3521
        %3701 = vmatprep.subr.bf16.mxu0 %v3530
        %3702 = vmatpush1.bf16.msra.mxu0 %v3529
        %3703 = vmatprep.subr.bf16.mxu0 %v3538
        %3704 = vmatpush1.bf16.msra.mxu0 %v3537
        %3705 = vmatprep.mubr.bf16.mxu0 %v2860
        %3706 = vmatmul.mubr.bf16.gmra.mrb[0].mxu0 %v2859
        %v3707 = vpop.f32.mrb[0].mxu0
        %v3708 = vadd.f32 %v2996, %v3707
        %v3709 = vpop.f32.mrb[0].mxu0
        %v3710 = vadd.f32 %v3000, %v3709
        %v3711 = vpop.f32.mrb[0].mxu0
        %v3712 = vadd.f32 %v2996, %v3711
        %v3713 = vpop.f32.mrb[0].mxu0
        %v3714 = vadd.f32 %v3000, %v3713
        %3715 = vmatprep.mubr.bf16.mxu0 %v2862
        %3716 = vmatmul.mubr.bf16.gmra.mrb[0].mxu0 %v2861
        %v3717 = vpop.f32.mrb[0].mxu0
        %v3718 = vadd.f32 %v2996, %v3717
        %v3719 = vpop.f32.mrb[0].mxu0
        %v3720 = vadd.f32 %v3000, %v3719
        %v3721 = vpop.f32.mrb[0].mxu0
        %v3722 = vadd.f32 %v2996, %v3721
        %v3723 = vpop.f32.mrb[0].mxu0
        %v3724 = vadd.f32 %v3000, %v3723
        %3725 = vdwg.mxu0
        %3726 = vmatprep.subr.bf16.mxu0 %v3420
        %3727 = vmatpush1.bf16.msra.mxu0 %v3419
        %3728 = vmatprep.subr.bf16.mxu0 %v3428
        %3729 = vmatpush1.bf16.msra.mxu0 %v3427
        %3730 = vmatprep.subr.bf16.mxu0 %v3436
        %3731 = vmatpush1.bf16.msra.mxu0 %v3435
        %3732 = vmatprep.subr.bf16.mxu0 %v3444
        %3733 = vmatpush1.bf16.msra.mxu0 %v3443
        %3734 = vmatprep.subr.bf16.mxu0 %v3452
        %3735 = vmatpush1.bf16.msra.mxu0 %v3451
        %3736 = vmatprep.subr.bf16.mxu0 %v3460
        %3737 = vmatpush1.bf16.msra.mxu0 %v3459
        %3738 = vmatprep.subr.bf16.mxu0 %v3468
        %3739 = vmatpush1.bf16.msra.mxu0 %v3467
        %3740 = vmatprep.subr.bf16.mxu0 %v3476
        %3741 = vmatpush1.bf16.msra.mxu0 %v3475
        %3742 = vmatprep.subr.bf16.mxu0 %v3484
        %3743 = vmatpush1.bf16.msra.mxu0 %v3483
        %3744 = vmatprep.subr.bf16.mxu0 %v3492
        %3745 = vmatpush1.bf16.msra.mxu0 %v3491
        %3746 = vmatprep.subr.bf16.mxu0 %v3500
        %3747 = vmatpush1.bf16.msra.mxu0 %v3499
        %3748 = vmatprep.subr.bf16.mxu0 %v3508
        %3749 = vmatpush1.bf16.msra.mxu0 %v3507
        %3750 = vmatprep.subr.bf16.mxu0 %v3516
        %3751 = vmatpush1.bf16.msra.mxu0 %v3515
        %3752 = vmatprep.subr.bf16.mxu0 %v3524
        %3753 = vmatpush1.bf16.msra.mxu0 %v3523
        %3754 = vmatprep.subr.bf16.mxu0 %v3532
        %3755 = vmatpush1.bf16.msra.mxu0 %v3531
        %3756 = vmatprep.subr.bf16.mxu0 %v3540
        %3757 = vmatpush1.bf16.msra.mxu0 %v3539
        %3758 = vmatprep.mubr.bf16.mxu0 %v2860
        %3759 = vmatmul.mubr.bf16.gmra.mrb[0].mxu0 %v2859
        %v3760 = vpop.f32.mrb[0].mxu0
        %v3761 = vadd.f32 %v3004, %v3760
        %v3762 = vpop.f32.mrb[0].mxu0
        %v3763 = vadd.f32 %v3008, %v3762
        %v3764 = vpop.f32.mrb[0].mxu0
        %v3765 = vadd.f32 %v3004, %v3764
        %v3766 = vpop.f32.mrb[0].mxu0
        %v3767 = vadd.f32 %v3008, %v3766
        %3768 = vmatprep.mubr.bf16.mxu0 %v2862
        %3769 = vmatmul.mubr.bf16.gmra.mrb[0].mxu0 %v2861
        %v3770 = vpop.f32.mrb[0].mxu0
        %v3771 = vadd.f32 %v3004, %v3770
        %v3772 = vpop.f32.mrb[0].mxu0
        %v3773 = vadd.f32 %v3008, %v3772
        %v3774 = vpop.f32.mrb[0].mxu0
        %v3775 = vadd.f32 %v3004, %v3774
        %v3776 = vpop.f32.mrb[0].mxu0
        %v3777 = vadd.f32 %v3008, %v3776
        %3778 = vdwg.mxu0
        %3779 = vmatprep.subr.bf16.mxu0 %v3422
        %3780 = vmatpush1.bf16.msra.mxu0 %v3421
        %3781 = vmatprep.subr.bf16.mxu0 %v3430
        %3782 = vmatpush1.bf16.msra.mxu0 %v3429
        %3783 = vmatprep.subr.bf16.mxu0 %v3438
        %3784 = vmatpush1.bf16.msra.mxu0 %v3437
        %3785 = vmatprep.subr.bf16.mxu0 %v3446
        %3786 = vmatpush1.bf16.msra.mxu0 %v3445
        %3787 = vmatprep.subr.bf16.mxu0 %v3454
        %3788 = vmatpush1.bf16.msra.mxu0 %v3453
        %3789 = vmatprep.subr.bf16.mxu0 %v3462
        %3790 = vmatpush1.bf16.msra.mxu0 %v3461
        %3791 = vmatprep.subr.bf16.mxu0 %v3470
        %3792 = vmatpush1.bf16.msra.mxu0 %v3469
        %3793 = vmatprep.subr.bf16.mxu0 %v3478
        %3794 = vmatpush1.bf16.msra.mxu0 %v3477
        %3795 = vmatprep.subr.bf16.mxu0 %v3486
        %3796 = vmatpush1.bf16.msra.mxu0 %v3485
        %3797 = vmatprep.subr.bf16.mxu0 %v3494
        %3798 = vmatpush1.bf16.msra.mxu0 %v3493
        %3799 = vmatprep.subr.bf16.mxu0 %v3502
        %3800 = vmatpush1.bf16.msra.mxu0 %v3501
        %3801 = vmatprep.subr.bf16.mxu0 %v3510
        %3802 = vmatpush1.bf16.msra.mxu0 %v3509
        %3803 = vmatprep.subr.bf16.mxu0 %v3518
        %3804 = vmatpush1.bf16.msra.mxu0 %v3517
        %3805 = vmatprep.subr.bf16.mxu0 %v3526
        %3806 = vmatpush1.bf16.msra.mxu0 %v3525
        %3807 = vmatprep.subr.bf16.mxu0 %v3534
        %3808 = vmatpush1.bf16.msra.mxu0 %v3533
        %3809 = vmatprep.subr.bf16.mxu0 %v3542
        %3810 = vmatpush1.bf16.msra.mxu0 %v3541
        %3811 = vmatprep.mubr.bf16.mxu0 %v2860
        %3812 = vmatmul.mubr.bf16.gmra.mrb[0].mxu0 %v2859
        %v3813 = vpop.f32.mrb[0].mxu0
        %v3814 = vadd.f32 %v3012, %v3813
        %v3815 = vpop.f32.mrb[0].mxu0
        %v3816 = vadd.f32 %v3016, %v3815
        %v3817 = vpop.f32.mrb[0].mxu0
        %v3818 = vadd.f32 %v3012, %v3817
        %v3819 = vpop.f32.mrb[0].mxu0
        %v3820 = vadd.f32 %v3016, %v3819
        %3821 = vmatprep.mubr.bf16.mxu0 %v2862
        %3822 = vmatmul.mubr.bf16.gmra.mrb[0].mxu0 %v2861
        %v3823 = vpop.f32.mrb[0].mxu0
        %v3824 = vadd.f32 %v3012, %v3823
        %v3825 = vpop.f32.mrb[0].mxu0
        %v3826 = vadd.f32 %v3016, %v3825
        %v3827 = vpop.f32.mrb[0].mxu0
        %v3828 = vadd.f32 %v3012, %v3827
        %v3829 = vpop.f32.mrb[0].mxu0
        %v3830 = vadd.f32 %v3016, %v3829
        %3831 = vdwg.mxu0
        %3832 = vmatprep.subr.bf16.mxu0 %v3424
        %3833 = vmatpush1.bf16.msra.mxu0 %v3423
        %3834 = vmatprep.subr.bf16.mxu0 %v3432
        %3835 = vmatpush1.bf16.msra.mxu0 %v3431
        %3836 = vmatprep.subr.bf16.mxu0 %v3440
        %3837 = vmatpush1.bf16.msra.mxu0 %v3439
        %3838 = vmatprep.subr.bf16.mxu0 %v3448
        %3839 = vmatpush1.bf16.msra.mxu0 %v3447
        %3840 = vmatprep.subr.bf16.mxu0 %v3456
        %3841 = vmatpush1.bf16.msra.mxu0 %v3455
        %3842 = vmatprep.subr.bf16.mxu0 %v3464
        %3843 = vmatpush1.bf16.msra.mxu0 %v3463
        %3844 = vmatprep.subr.bf16.mxu0 %v3472
        %3845 = vmatpush1.bf16.msra.mxu0 %v3471
        %3846 = vmatprep.subr.bf16.mxu0 %v3480
        %3847 = vmatpush1.bf16.msra.mxu0 %v3479
        %3848 = vmatprep.subr.bf16.mxu0 %v3488
        %3849 = vmatpush1.bf16.msra.mxu0 %v3487
        %3850 = vmatprep.subr.bf16.mxu0 %v3496
        %3851 = vmatpush1.bf16.msra.mxu0 %v3495
        %3852 = vmatprep.subr.bf16.mxu0 %v3504
        %3853 = vmatpush1.bf16.msra.mxu0 %v3503
        %3854 = vmatprep.subr.bf16.mxu0 %v3512
        %3855 = vmatpush1.bf16.msra.mxu0 %v3511
        %3856 = vmatprep.subr.bf16.mxu0 %v3520
        %3857 = vmatpush1.bf16.msra.mxu0 %v3519
        %3858 = vmatprep.subr.bf16.mxu0 %v3528
        %3859 = vmatpush1.bf16.msra.mxu0 %v3527
        %3860 = vmatprep.subr.bf16.mxu0 %v3536
        %3861 = vmatpush1.bf16.msra.mxu0 %v3535
        %3862 = vmatprep.subr.bf16.mxu0 %v3544
        %3863 = vmatpush1.bf16.msra.mxu0 %v3543
        %3864 = vmatprep.mubr.bf16.mxu0 %v2860
        %3865 = vmatmul.mubr.bf16.gmra.mrb[0].mxu0 %v2859
        %v3866 = vpop.f32.mrb[0].mxu0
        %v3867 = vadd.f32 %v3020, %v3866
        %v3868 = vpop.f32.mrb[0].mxu0
        %v3869 = vadd.f32 %v3024, %v3868
        %v3870 = vpop.f32.mrb[0].mxu0
        %v3871 = vadd.f32 %v3020, %v3870
        %v3872 = vpop.f32.mrb[0].mxu0
        %v3873 = vadd.f32 %v3024, %v3872
        %3874 = vmatprep.mubr.bf16.mxu0 %v2862
        %3875 = vmatmul.mubr.bf16.gmra.mrb[0].mxu0 %v2861
        %v3876 = vpop.f32.mrb[0].mxu0
        %v3877 = vadd.f32 %v3020, %v3876
        %v3878 = vpop.f32.mrb[0].mxu0
        %v3879 = vadd.f32 %v3024, %v3878
        %v3880 = vpop.f32.mrb[0].mxu0
        %v3881 = vadd.f32 %v3020, %v3880
        %v3882 = vpop.f32.mrb[0].mxu0
        %v3883 = vadd.f32 %v3024, %v3882
        %3884 = vdwg.mxu0
        %v3885 = vmul.f32 %v3708, 0.5
        %v3886 = vmul.f32 %v3710, 0.5
        %v3887 = vmul.f32 %v3761, 0.5
        %v3888 = vmul.f32 %v3763, 0.5
        %v3889 = vmul.f32 %v3814, 0.5
        %v3890 = vmul.f32 %v3816, 0.5
        %v3891 = vmul.f32 %v3867, 0.5
        %v3892 = vmul.f32 %v3869, 0.5
        %v3893 = vmul.f32 %v3712, 0.5
        %v3894 = vmul.f32 %v3714, 0.5
        %v3895 = vmul.f32 %v3765, 0.5
        %v3896 = vmul.f32 %v3767, 0.5
        %v3897 = vmul.f32 %v3818, 0.5
        %v3898 = vmul.f32 %v3820, 0.5
        %v3899 = vmul.f32 %v3871, 0.5
        %v3900 = vmul.f32 %v3873, 0.5
        %v3901 = vmul.f32 %v3718, 0.5
        %v3902 = vmul.f32 %v3720, 0.5
        %v3903 = vmul.f32 %v3771, 0.5
        %v3904 = vmul.f32 %v3773, 0.5
        %v3905 = vmul.f32 %v3824, 0.5
        %v3906 = vmul.f32 %v3826, 0.5
        %v3907 = vmul.f32 %v3877, 0.5
        %v3908 = vmul.f32 %v3879, 0.5
        %v3909 = vmul.f32 %v3722, 0.5
        %v3910 = vmul.f32 %v3724, 0.5
        %v3911 = vmul.f32 %v3775, 0.5
        %v3912 = vmul.f32 %v3777, 0.5
        %v3913 = vmul.f32 %v3828, 0.5
        %v3914 = vmul.f32 %v3830, 0.5
        %v3915 = vmul.f32 %v3881, 0.5
        %v3916 = vmul.f32 %v3883, 0.5
        %v3917 = vmul.f32 %v3708, 0.70710677
        %v3918 = vmul.f32 %v3710, 0.70710677
        %v3919 = vmul.f32 %v3761, 0.70710677
        %v3920 = vmul.f32 %v3763, 0.70710677
        %v3921 = vmul.f32 %v3814, 0.70710677
        %v3922 = vmul.f32 %v3816, 0.70710677
        %v3923 = vmul.f32 %v3867, 0.70710677
        %v3924 = vmul.f32 %v3869, 0.70710677
        %v3925 = vmul.f32 %v3712, 0.70710677
        %v3926 = vmul.f32 %v3714, 0.70710677
        %v3927 = vmul.f32 %v3765, 0.70710677
        %v3928 = vmul.f32 %v3767, 0.70710677
        %v3929 = vmul.f32 %v3818, 0.70710677
        %v3930 = vmul.f32 %v3820, 0.70710677
        %v3931 = vmul.f32 %v3871, 0.70710677
        %v3932 = vmul.f32 %v3873, 0.70710677
        %v3933 = vmul.f32 %v3718, 0.70710677
        %v3934 = vmul.f32 %v3720, 0.70710677
        %v3935 = vmul.f32 %v3771, 0.70710677
        %v3936 = vmul.f32 %v3773, 0.70710677
        %v3937 = vmul.f32 %v3824, 0.70710677
        %v3938 = vmul.f32 %v3826, 0.70710677
        %v3939 = vmul.f32 %v3877, 0.70710677
        %v3940 = vmul.f32 %v3879, 0.70710677
        %v3941 = vmul.f32 %v3722, 0.70710677
        %v3942 = vmul.f32 %v3724, 0.70710677
        %v3943 = vmul.f32 %v3775, 0.70710677
        %v3944 = vmul.f32 %v3777, 0.70710677
        %v3945 = vmul.f32 %v3828, 0.70710677
        %v3946 = vmul.f32 %v3830, 0.70710677
        %v3947 = vmul.f32 %v3881, 0.70710677
        %v3948 = vmul.f32 %v3883, 0.70710677
        %v3949 = vand.u32 2147483647, %v3917
        %v3950 = vand.u32 2147483647, %v3918
        %v3951 = vand.u32 2147483647, %v3919
        %v3952 = vand.u32 2147483647, %v3920
        %v3953 = vand.u32 2147483647, %v3921
        %v3954 = vand.u32 2147483647, %v3922
        %v3955 = vand.u32 2147483647, %v3923
        %v3956 = vand.u32 2147483647, %v3924
        %v3957 = vand.u32 2147483647, %v3925
        %v3958 = vand.u32 2147483647, %v3926
        %v3959 = vand.u32 2147483647, %v3927
        %v3960 = vand.u32 2147483647, %v3928
        %v3961 = vand.u32 2147483647, %v3929
        %v3962 = vand.u32 2147483647, %v3930
        %v3963 = vand.u32 2147483647, %v3931
        %v3964 = vand.u32 2147483647, %v3932
        %v3965 = vand.u32 2147483647, %v3933
        %v3966 = vand.u32 2147483647, %v3934
        %v3967 = vand.u32 2147483647, %v3935
        %v3968 = vand.u32 2147483647, %v3936
        %v3969 = vand.u32 2147483647, %v3937
        %v3970 = vand.u32 2147483647, %v3938
        %v3971 = vand.u32 2147483647, %v3939
        %v3972 = vand.u32 2147483647, %v3940
        %v3973 = vand.u32 2147483647, %v3941
        %v3974 = vand.u32 2147483647, %v3942
        %v3975 = vand.u32 2147483647, %v3943
        %v3976 = vand.u32 2147483647, %v3944
        %v3977 = vand.u32 2147483647, %v3945
        %v3978 = vand.u32 2147483647, %v3946
        %v3979 = vand.u32 2147483647, %v3947
        %v3980 = vand.u32 2147483647, %v3948
        %v3981 = vmul.f32 %v3949, 0.3275911
        %v3982 = vmul.f32 %v3950, 0.3275911
        %v3983 = vmul.f32 %v3951, 0.3275911
        %v3984 = vmul.f32 %v3952, 0.3275911
        %v3985 = vmul.f32 %v3953, 0.3275911
        %v3986 = vmul.f32 %v3954, 0.3275911
        %v3987 = vmul.f32 %v3955, 0.3275911
        %v3988 = vmul.f32 %v3956, 0.3275911
        %v3989 = vmul.f32 %v3957, 0.3275911
        %v3990 = vmul.f32 %v3958, 0.3275911
        %v3991 = vmul.f32 %v3959, 0.3275911
        %v3992 = vmul.f32 %v3960, 0.3275911
        %v3993 = vmul.f32 %v3961, 0.3275911
        %v3994 = vmul.f32 %v3962, 0.3275911
        %v3995 = vmul.f32 %v3963, 0.3275911
        %v3996 = vmul.f32 %v3964, 0.3275911
        %v3997 = vmul.f32 %v3965, 0.3275911
        %v3998 = vmul.f32 %v3966, 0.3275911
        %v3999 = vmul.f32 %v3967, 0.3275911
        %v4000 = vmul.f32 %v3968, 0.3275911
        %v4001 = vmul.f32 %v3969, 0.3275911
        %v4002 = vmul.f32 %v3970, 0.3275911
        %v4003 = vmul.f32 %v3971, 0.3275911
        %v4004 = vmul.f32 %v3972, 0.3275911
        %v4005 = vmul.f32 %v3973, 0.3275911
        %v4006 = vmul.f32 %v3974, 0.3275911
        %v4007 = vmul.f32 %v3975, 0.3275911
        %v4008 = vmul.f32 %v3976, 0.3275911
        %v4009 = vmul.f32 %v3977, 0.3275911
        %v4010 = vmul.f32 %v3978, 0.3275911
        %v4011 = vmul.f32 %v3979, 0.3275911
        %v4012 = vmul.f32 %v3980, 0.3275911
        %v4013 = vadd.f32 %v3981, 1.0
        %v4014 = vadd.f32 %v3982, 1.0
        %v4015 = vadd.f32 %v3983, 1.0
        %v4016 = vadd.f32 %v3984, 1.0
        %v4017 = vadd.f32 %v3985, 1.0
        %v4018 = vadd.f32 %v3986, 1.0
        %v4019 = vadd.f32 %v3987, 1.0
        %v4020 = vadd.f32 %v3988, 1.0
        %v4021 = vadd.f32 %v3989, 1.0
        %v4022 = vadd.f32 %v3990, 1.0
        %v4023 = vadd.f32 %v3991, 1.0
        %v4024 = vadd.f32 %v3992, 1.0
        %v4025 = vadd.f32 %v3993, 1.0
        %v4026 = vadd.f32 %v3994, 1.0
        %v4027 = vadd.f32 %v3995, 1.0
        %v4028 = vadd.f32 %v3996, 1.0
        %v4029 = vadd.f32 %v3997, 1.0
        %v4030 = vadd.f32 %v3998, 1.0
        %v4031 = vadd.f32 %v3999, 1.0
        %v4032 = vadd.f32 %v4000, 1.0
        %v4033 = vadd.f32 %v4001, 1.0
        %v4034 = vadd.f32 %v4002, 1.0
        %v4035 = vadd.f32 %v4003, 1.0
        %v4036 = vadd.f32 %v4004, 1.0
        %v4037 = vadd.f32 %v4005, 1.0
        %v4038 = vadd.f32 %v4006, 1.0
        %v4039 = vadd.f32 %v4007, 1.0
        %v4040 = vadd.f32 %v4008, 1.0
        %v4041 = vadd.f32 %v4009, 1.0
        %v4042 = vadd.f32 %v4010, 1.0
        %v4043 = vadd.f32 %v4011, 1.0
        %v4044 = vadd.f32 %v4012, 1.0
        %v4045 = vrcp.pop %v4013
        %v4046 = vmul.f32 1.0, %v4045
        %v4047 = vrcp.pop %v4014
        %v4048 = vmul.f32 1.0, %v4047
        %v4049 = vrcp.pop %v4015
        %v4050 = vmul.f32 1.0, %v4049
        %v4051 = vrcp.pop %v4016
        %v4052 = vmul.f32 1.0, %v4051
        %v4053 = vrcp.pop %v4017
        %v4054 = vmul.f32 1.0, %v4053
        %v4055 = vrcp.pop %v4018
        %v4056 = vmul.f32 1.0, %v4055
        %v4057 = vrcp.pop %v4019
        %v4058 = vmul.f32 1.0, %v4057
        %v4059 = vrcp.pop %v4020
        %v4060 = vmul.f32 1.0, %v4059
        %v4061 = vrcp.pop %v4021
        %v4062 = vmul.f32 1.0, %v4061
        %v4063 = vrcp.pop %v4022
        %v4064 = vmul.f32 1.0, %v4063
        %v4065 = vrcp.pop %v4023
        %v4066 = vmul.f32 1.0, %v4065
        %v4067 = vrcp.pop %v4024
        %v4068 = vmul.f32 1.0, %v4067
        %v4069 = vrcp.pop %v4025
        %v4070 = vmul.f32 1.0, %v4069
        %v4071 = vrcp.pop %v4026
        %v4072 = vmul.f32 1.0, %v4071
        %v4073 = vrcp.pop %v4027
        %v4074 = vmul.f32 1.0, %v4073
        %v4075 = vrcp.pop %v4028
        %v4076 = vmul.f32 1.0, %v4075
        %v4077 = vrcp.pop %v4029
        %v4078 = vmul.f32 1.0, %v4077
        %v4079 = vrcp.pop %v4030
        %v4080 = vmul.f32 1.0, %v4079
        %v4081 = vrcp.pop %v4031
        %v4082 = vmul.f32 1.0, %v4081
        %v4083 = vrcp.pop %v4032
        %v4084 = vmul.f32 1.0, %v4083
        %v4085 = vrcp.pop %v4033
        %v4086 = vmul.f32 1.0, %v4085
        %v4087 = vrcp.pop %v4034
        %v4088 = vmul.f32 1.0, %v4087
        %v4089 = vrcp.pop %v4035
        %v4090 = vmul.f32 1.0, %v4089
        %v4091 = vrcp.pop %v4036
        %v4092 = vmul.f32 1.0, %v4091
        %v4093 = vrcp.pop %v4037
        %v4094 = vmul.f32 1.0, %v4093
        %v4095 = vrcp.pop %v4038
        %v4096 = vmul.f32 1.0, %v4095
        %v4097 = vrcp.pop %v4039
        %v4098 = vmul.f32 1.0, %v4097
        %v4099 = vrcp.pop %v4040
        %v4100 = vmul.f32 1.0, %v4099
        %v4101 = vrcp.pop %v4041
        %v4102 = vmul.f32 1.0, %v4101
        %v4103 = vrcp.pop %v4042
        %v4104 = vmul.f32 1.0, %v4103
        %v4105 = vrcp.pop %v4043
        %v4106 = vmul.f32 1.0, %v4105
        %v4107 = vrcp.pop %v4044
        %v4108 = vmul.f32 1.0, %v4107
        %v4109 = vmul.f32 %v4046, 1.0614054
        %v4110 = vmul.f32 %v4048, 1.0614054
        %v4111 = vmul.f32 %v4050, 1.0614054
        %v4112 = vmul.f32 %v4052, 1.0614054
        %v4113 = vmul.f32 %v4054, 1.0614054
        %v4114 = vmul.f32 %v4056, 1.0614054
        %v4115 = vmul.f32 %v4058, 1.0614054
        %v4116 = vmul.f32 %v4060, 1.0614054
        %v4117 = vmul.f32 %v4062, 1.0614054
        %v4118 = vmul.f32 %v4064, 1.0614054
        %v4119 = vmul.f32 %v4066, 1.0614054
        %v4120 = vmul.f32 %v4068, 1.0614054
        %v4121 = vmul.f32 %v4070, 1.0614054
        %v4122 = vmul.f32 %v4072, 1.0614054
        %v4123 = vmul.f32 %v4074, 1.0614054
        %v4124 = vmul.f32 %v4076, 1.0614054
        %v4125 = vmul.f32 %v4078, 1.0614054
        %v4126 = vmul.f32 %v4080, 1.0614054
        %v4127 = vmul.f32 %v4082, 1.0614054
        %v4128 = vmul.f32 %v4084, 1.0614054
        %v4129 = vmul.f32 %v4086, 1.0614054
        %v4130 = vmul.f32 %v4088, 1.0614054
        %v4131 = vmul.f32 %v4090, 1.0614054
        %v4132 = vmul.f32 %v4092, 1.0614054
        %v4133 = vmul.f32 %v4094, 1.0614054
        %v4134 = vmul.f32 %v4096, 1.0614054
        %v4135 = vmul.f32 %v4098, 1.0614054
        %v4136 = vmul.f32 %v4100, 1.0614054
        %v4137 = vmul.f32 %v4102, 1.0614054
        %v4138 = vmul.f32 %v4104, 1.0614054
        %v4139 = vmul.f32 %v4106, 1.0614054
        %v4140 = vmul.f32 %v4108, 1.0614054
        %v4141 = vadd.f32 %v4109, -1.4531521
        %v4142 = vadd.f32 %v4110, -1.4531521
        %v4143 = vadd.f32 %v4111, -1.4531521
        %v4144 = vadd.f32 %v4112, -1.4531521
        %v4145 = vadd.f32 %v4113, -1.4531521
        %v4146 = vadd.f32 %v4114, -1.4531521
        %v4147 = vadd.f32 %v4115, -1.4531521
        %v4148 = vadd.f32 %v4116, -1.4531521
        %v4149 = vadd.f32 %v4117, -1.4531521
        %v4150 = vadd.f32 %v4118, -1.4531521
        %v4151 = vadd.f32 %v4119, -1.4531521
        %v4152 = vadd.f32 %v4120, -1.4531521
        %v4153 = vadd.f32 %v4121, -1.4531521
        %v4154 = vadd.f32 %v4122, -1.4531521
        %v4155 = vadd.f32 %v4123, -1.4531521
        %v4156 = vadd.f32 %v4124, -1.4531521
        %v4157 = vadd.f32 %v4125, -1.4531521
        %v4158 = vadd.f32 %v4126, -1.4531521
        %v4159 = vadd.f32 %v4127, -1.4531521
        %v4160 = vadd.f32 %v4128, -1.4531521
        %v4161 = vadd.f32 %v4129, -1.4531521
        %v4162 = vadd.f32 %v4130, -1.4531521
        %v4163 = vadd.f32 %v4131, -1.4531521
        %v4164 = vadd.f32 %v4132, -1.4531521
        %v4165 = vadd.f32 %v4133, -1.4531521
        %v4166 = vadd.f32 %v4134, -1.4531521
        %v4167 = vadd.f32 %v4135, -1.4531521
        %v4168 = vadd.f32 %v4136, -1.4531521
        %v4169 = vadd.f32 %v4137, -1.4531521
        %v4170 = vadd.f32 %v4138, -1.4531521
        %v4171 = vadd.f32 %v4139, -1.4531521
        %v4172 = vadd.f32 %v4140, -1.4531521
        %v4173 = vmul.f32 %v4141, %v4046
        %v4174 = vmul.f32 %v4142, %v4048
        %v4175 = vmul.f32 %v4143, %v4050
        %v4176 = vmul.f32 %v4144, %v4052
        %v4177 = vmul.f32 %v4145, %v4054
        %v4178 = vmul.f32 %v4146, %v4056
        %v4179 = vmul.f32 %v4147, %v4058
        %v4180 = vmul.f32 %v4148, %v4060
        %v4181 = vmul.f32 %v4149, %v4062
        %v4182 = vmul.f32 %v4150, %v4064
        %v4183 = vmul.f32 %v4151, %v4066
        %v4184 = vmul.f32 %v4152, %v4068
        %v4185 = vmul.f32 %v4153, %v4070
        %v4186 = vmul.f32 %v4154, %v4072
        %v4187 = vmul.f32 %v4155, %v4074
        %v4188 = vmul.f32 %v4156, %v4076
        %v4189 = vmul.f32 %v4157, %v4078
        %v4190 = vmul.f32 %v4158, %v4080
        %v4191 = vmul.f32 %v4159, %v4082
        %v4192 = vmul.f32 %v4160, %v4084
        %v4193 = vmul.f32 %v4161, %v4086
        %v4194 = vmul.f32 %v4162, %v4088
        %v4195 = vmul.f32 %v4163, %v4090
        %v4196 = vmul.f32 %v4164, %v4092
        %v4197 = vmul.f32 %v4165, %v4094
        %v4198 = vmul.f32 %v4166, %v4096
        %v4199 = vmul.f32 %v4167, %v4098
        %v4200 = vmul.f32 %v4168, %v4100
        %v4201 = vmul.f32 %v4169, %v4102
        %v4202 = vmul.f32 %v4170, %v4104
        %v4203 = vmul.f32 %v4171, %v4106
        %v4204 = vmul.f32 %v4172, %v4108
        %v4205 = vadd.f32 %v4173, 1.4214138
        %v4206 = vadd.f32 %v4174, 1.4214138
        %v4207 = vadd.f32 %v4175, 1.4214138
        %v4208 = vadd.f32 %v4176, 1.4214138
        %v4209 = vadd.f32 %v4177, 1.4214138
        %v4210 = vadd.f32 %v4178, 1.4214138
        %v4211 = vadd.f32 %v4179, 1.4214138
        %v4212 = vadd.f32 %v4180, 1.4214138
        %v4213 = vadd.f32 %v4181, 1.4214138
        %v4214 = vadd.f32 %v4182, 1.4214138
        %v4215 = vadd.f32 %v4183, 1.4214138
        %v4216 = vadd.f32 %v4184, 1.4214138
        %v4217 = vadd.f32 %v4185, 1.4214138
        %v4218 = vadd.f32 %v4186, 1.4214138
        %v4219 = vadd.f32 %v4187, 1.4214138
        %v4220 = vadd.f32 %v4188, 1.4214138
        %v4221 = vadd.f32 %v4189, 1.4214138
        %v4222 = vadd.f32 %v4190, 1.4214138
        %v4223 = vadd.f32 %v4191, 1.4214138
        %v4224 = vadd.f32 %v4192, 1.4214138
        %v4225 = vadd.f32 %v4193, 1.4214138
        %v4226 = vadd.f32 %v4194, 1.4214138
        %v4227 = vadd.f32 %v4195, 1.4214138
        %v4228 = vadd.f32 %v4196, 1.4214138
        %v4229 = vadd.f32 %v4197, 1.4214138
        %v4230 = vadd.f32 %v4198, 1.4214138
        %v4231 = vadd.f32 %v4199, 1.4214138
        %v4232 = vadd.f32 %v4200, 1.4214138
        %v4233 = vadd.f32 %v4201, 1.4214138
        %v4234 = vadd.f32 %v4202, 1.4214138
        %v4235 = vadd.f32 %v4203, 1.4214138
        %v4236 = vadd.f32 %v4204, 1.4214138
        %v4237 = vmul.f32 %v4205, %v4046
        %v4238 = vmul.f32 %v4206, %v4048
        %v4239 = vmul.f32 %v4207, %v4050
        %v4240 = vmul.f32 %v4208, %v4052
        %v4241 = vmul.f32 %v4209, %v4054
        %v4242 = vmul.f32 %v4210, %v4056
        %v4243 = vmul.f32 %v4211, %v4058
        %v4244 = vmul.f32 %v4212, %v4060
        %v4245 = vmul.f32 %v4213, %v4062
        %v4246 = vmul.f32 %v4214, %v4064
        %v4247 = vmul.f32 %v4215, %v4066
        %v4248 = vmul.f32 %v4216, %v4068
        %v4249 = vmul.f32 %v4217, %v4070
        %v4250 = vmul.f32 %v4218, %v4072
        %v4251 = vmul.f32 %v4219, %v4074
        %v4252 = vmul.f32 %v4220, %v4076
        %v4253 = vmul.f32 %v4221, %v4078
        %v4254 = vmul.f32 %v4222, %v4080
        %v4255 = vmul.f32 %v4223, %v4082
        %v4256 = vmul.f32 %v4224, %v4084
        %v4257 = vmul.f32 %v4225, %v4086
        %v4258 = vmul.f32 %v4226, %v4088
        %v4259 = vmul.f32 %v4227, %v4090
        %v4260 = vmul.f32 %v4228, %v4092
        %v4261 = vmul.f32 %v4229, %v4094
        %v4262 = vmul.f32 %v4230, %v4096
        %v4263 = vmul.f32 %v4231, %v4098
        %v4264 = vmul.f32 %v4232, %v4100
        %v4265 = vmul.f32 %v4233, %v4102
        %v4266 = vmul.f32 %v4234, %v4104
        %v4267 = vmul.f32 %v4235, %v4106
        %v4268 = vmul.f32 %v4236, %v4108
        %v4269 = vadd.f32 %v4237, -0.28449672
        %v4270 = vadd.f32 %v4238, -0.28449672
        %v4271 = vadd.f32 %v4239, -0.28449672
        %v4272 = vadd.f32 %v4240, -0.28449672
        %v4273 = vadd.f32 %v4241, -0.28449672
        %v4274 = vadd.f32 %v4242, -0.28449672
        %v4275 = vadd.f32 %v4243, -0.28449672
        %v4276 = vadd.f32 %v4244, -0.28449672
        %v4277 = vadd.f32 %v4245, -0.28449672
        %v4278 = vadd.f32 %v4246, -0.28449672
        %v4279 = vadd.f32 %v4247, -0.28449672
        %v4280 = vadd.f32 %v4248, -0.28449672
        %v4281 = vadd.f32 %v4249, -0.28449672
        %v4282 = vadd.f32 %v4250, -0.28449672
        %v4283 = vadd.f32 %v4251, -0.28449672
        %v4284 = vadd.f32 %v4252, -0.28449672
        %v4285 = vadd.f32 %v4253, -0.28449672
        %v4286 = vadd.f32 %v4254, -0.28449672
        %v4287 = vadd.f32 %v4255, -0.28449672
        %v4288 = vadd.f32 %v4256, -0.28449672
        %v4289 = vadd.f32 %v4257, -0.28449672
        %v4290 = vadd.f32 %v4258, -0.28449672
        %v4291 = vadd.f32 %v4259, -0.28449672
        %v4292 = vadd.f32 %v4260, -0.28449672
        %v4293 = vadd.f32 %v4261, -0.28449672
        %v4294 = vadd.f32 %v4262, -0.28449672
        %v4295 = vadd.f32 %v4263, -0.28449672
        %v4296 = vadd.f32 %v4264, -0.28449672
        %v4297 = vadd.f32 %v4265, -0.28449672
        %v4298 = vadd.f32 %v4266, -0.28449672
        %v4299 = vadd.f32 %v4267, -0.28449672
        %v4300 = vadd.f32 %v4268, -0.28449672
        %v4301 = vmul.f32 %v4269, %v4046
        %v4302 = vmul.f32 %v4270, %v4048
        %v4303 = vmul.f32 %v4271, %v4050
        %v4304 = vmul.f32 %v4272, %v4052
        %v4305 = vmul.f32 %v4273, %v4054
        %v4306 = vmul.f32 %v4274, %v4056
        %v4307 = vmul.f32 %v4275, %v4058
        %v4308 = vmul.f32 %v4276, %v4060
        %v4309 = vmul.f32 %v4277, %v4062
        %v4310 = vmul.f32 %v4278, %v4064
        %v4311 = vmul.f32 %v4279, %v4066
        %v4312 = vmul.f32 %v4280, %v4068
        %v4313 = vmul.f32 %v4281, %v4070
        %v4314 = vmul.f32 %v4282, %v4072
        %v4315 = vmul.f32 %v4283, %v4074
        %v4316 = vmul.f32 %v4284, %v4076
        %v4317 = vmul.f32 %v4285, %v4078
        %v4318 = vmul.f32 %v4286, %v4080
        %v4319 = vmul.f32 %v4287, %v4082
        %v4320 = vmul.f32 %v4288, %v4084
        %v4321 = vmul.f32 %v4289, %v4086
        %v4322 = vmul.f32 %v4290, %v4088
        %v4323 = vmul.f32 %v4291, %v4090
        %v4324 = vmul.f32 %v4292, %v4092
        %v4325 = vmul.f32 %v4293, %v4094
        %v4326 = vmul.f32 %v4294, %v4096
        %v4327 = vmul.f32 %v4295, %v4098
        %v4328 = vmul.f32 %v4296, %v4100
        %v4329 = vmul.f32 %v4297, %v4102
        %v4330 = vmul.f32 %v4298, %v4104
        %v4331 = vmul.f32 %v4299, %v4106
        %v4332 = vmul.f32 %v4300, %v4108
        %v4333 = vadd.f32 %v4301, 0.2548296
        %v4334 = vadd.f32 %v4302, 0.2548296
        %v4335 = vadd.f32 %v4303, 0.2548296
        %v4336 = vadd.f32 %v4304, 0.2548296
        %v4337 = vadd.f32 %v4305, 0.2548296
        %v4338 = vadd.f32 %v4306, 0.2548296
        %v4339 = vadd.f32 %v4307, 0.2548296
        %v4340 = vadd.f32 %v4308, 0.2548296
        %v4341 = vadd.f32 %v4309, 0.2548296
        %v4342 = vadd.f32 %v4310, 0.2548296
        %v4343 = vadd.f32 %v4311, 0.2548296
        %v4344 = vadd.f32 %v4312, 0.2548296
        %v4345 = vadd.f32 %v4313, 0.2548296
        %v4346 = vadd.f32 %v4314, 0.2548296
        %v4347 = vadd.f32 %v4315, 0.2548296
        %v4348 = vadd.f32 %v4316, 0.2548296
        %v4349 = vadd.f32 %v4317, 0.2548296
        %v4350 = vadd.f32 %v4318, 0.2548296
        %v4351 = vadd.f32 %v4319, 0.2548296
        %v4352 = vadd.f32 %v4320, 0.2548296
        %v4353 = vadd.f32 %v4321, 0.2548296
        %v4354 = vadd.f32 %v4322, 0.2548296
        %v4355 = vadd.f32 %v4323, 0.2548296
        %v4356 = vadd.f32 %v4324, 0.2548296
        %v4357 = vadd.f32 %v4325, 0.2548296
        %v4358 = vadd.f32 %v4326, 0.2548296
        %v4359 = vadd.f32 %v4327, 0.2548296
        %v4360 = vadd.f32 %v4328, 0.2548296
        %v4361 = vadd.f32 %v4329, 0.2548296
        %v4362 = vadd.f32 %v4330, 0.2548296
        %v4363 = vadd.f32 %v4331, 0.2548296
        %v4364 = vadd.f32 %v4332, 0.2548296
        %v4365 = vmul.f32 %v4333, %v4046
        %v4366 = vmul.f32 %v4334, %v4048
        %v4367 = vmul.f32 %v4335, %v4050
        %v4368 = vmul.f32 %v4336, %v4052
        %v4369 = vmul.f32 %v4337, %v4054
        %v4370 = vmul.f32 %v4338, %v4056
        %v4371 = vmul.f32 %v4339, %v4058
        %v4372 = vmul.f32 %v4340, %v4060
        %v4373 = vmul.f32 %v4341, %v4062
        %v4374 = vmul.f32 %v4342, %v4064
        %v4375 = vmul.f32 %v4343, %v4066
        %v4376 = vmul.f32 %v4344, %v4068
        %v4377 = vmul.f32 %v4345, %v4070
        %v4378 = vmul.f32 %v4346, %v4072
        %v4379 = vmul.f32 %v4347, %v4074
        %v4380 = vmul.f32 %v4348, %v4076
        %v4381 = vmul.f32 %v4349, %v4078
        %v4382 = vmul.f32 %v4350, %v4080
        %v4383 = vmul.f32 %v4351, %v4082
        %v4384 = vmul.f32 %v4352, %v4084
        %v4385 = vmul.f32 %v4353, %v4086
        %v4386 = vmul.f32 %v4354, %v4088
        %v4387 = vmul.f32 %v4355, %v4090
        %v4388 = vmul.f32 %v4356, %v4092
        %v4389 = vmul.f32 %v4357, %v4094
        %v4390 = vmul.f32 %v4358, %v4096
        %v4391 = vmul.f32 %v4359, %v4098
        %v4392 = vmul.f32 %v4360, %v4100
        %v4393 = vmul.f32 %v4361, %v4102
        %v4394 = vmul.f32 %v4362, %v4104
        %v4395 = vmul.f32 %v4363, %v4106
        %v4396 = vmul.f32 %v4364, %v4108
        %v4397 = vsub.f32 0.0, %v3949
        %v4398 = vsub.f32 0.0, %v3950
        %v4399 = vsub.f32 0.0, %v3951
        %v4400 = vsub.f32 0.0, %v3952
        %v4401 = vsub.f32 0.0, %v3953
        %v4402 = vsub.f32 0.0, %v3954
        %v4403 = vsub.f32 0.0, %v3955
        %v4404 = vsub.f32 0.0, %v3956
        %v4405 = vsub.f32 0.0, %v3957
        %v4406 = vsub.f32 0.0, %v3958
        %v4407 = vsub.f32 0.0, %v3959
        %v4408 = vsub.f32 0.0, %v3960
        %v4409 = vsub.f32 0.0, %v3961
        %v4410 = vsub.f32 0.0, %v3962
        %v4411 = vsub.f32 0.0, %v3963
        %v4412 = vsub.f32 0.0, %v3964
        %v4413 = vsub.f32 0.0, %v3965
        %v4414 = vsub.f32 0.0, %v3966
        %v4415 = vsub.f32 0.0, %v3967
        %v4416 = vsub.f32 0.0, %v3968
        %v4417 = vsub.f32 0.0, %v3969
        %v4418 = vsub.f32 0.0, %v3970
        %v4419 = vsub.f32 0.0, %v3971
        %v4420 = vsub.f32 0.0, %v3972
        %v4421 = vsub.f32 0.0, %v3973
        %v4422 = vsub.f32 0.0, %v3974
        %v4423 = vsub.f32 0.0, %v3975
        %v4424 = vsub.f32 0.0, %v3976
        %v4425 = vsub.f32 0.0, %v3977
        %v4426 = vsub.f32 0.0, %v3978
        %v4427 = vsub.f32 0.0, %v3979
        %v4428 = vsub.f32 0.0, %v3980
        %v4429 = vmul.f32 %v4397, %v3949
        %v4430 = vmul.f32 %v4398, %v3950
        %v4431 = vmul.f32 %v4399, %v3951
        %v4432 = vmul.f32 %v4400, %v3952
        %v4433 = vmul.f32 %v4401, %v3953
        %v4434 = vmul.f32 %v4402, %v3954
        %v4435 = vmul.f32 %v4403, %v3955
        %v4436 = vmul.f32 %v4404, %v3956
        %v4437 = vmul.f32 %v4405, %v3957
        %v4438 = vmul.f32 %v4406, %v3958
        %v4439 = vmul.f32 %v4407, %v3959
        %v4440 = vmul.f32 %v4408, %v3960
        %v4441 = vmul.f32 %v4409, %v3961
        %v4442 = vmul.f32 %v4410, %v3962
        %v4443 = vmul.f32 %v4411, %v3963
        %v4444 = vmul.f32 %v4412, %v3964
        %v4445 = vmul.f32 %v4413, %v3965
        %v4446 = vmul.f32 %v4414, %v3966
        %v4447 = vmul.f32 %v4415, %v3967
        %v4448 = vmul.f32 %v4416, %v3968
        %v4449 = vmul.f32 %v4417, %v3969
        %v4450 = vmul.f32 %v4418, %v3970
        %v4451 = vmul.f32 %v4419, %v3971
        %v4452 = vmul.f32 %v4420, %v3972
        %v4453 = vmul.f32 %v4421, %v3973
        %v4454 = vmul.f32 %v4422, %v3974
        %v4455 = vmul.f32 %v4423, %v3975
        %v4456 = vmul.f32 %v4424, %v3976
        %v4457 = vmul.f32 %v4425, %v3977
        %v4458 = vmul.f32 %v4426, %v3978
        %v4459 = vmul.f32 %v4427, %v3979
        %v4460 = vmul.f32 %v4428, %v3980
        %v4461 = vmul.f32 %v4429, 1.442695
        %v4462 = vpow.pop %v4461
        %v4463 = vmul.f32 %v4430, 1.442695
        %v4464 = vpow.pop %v4463
        %v4465 = vmul.f32 %v4431, 1.442695
        %v4466 = vpow.pop %v4465
        %v4467 = vmul.f32 %v4432, 1.442695
        %v4468 = vpow.pop %v4467
        %v4469 = vmul.f32 %v4433, 1.442695
        %v4470 = vpow.pop %v4469
        %v4471 = vmul.f32 %v4434, 1.442695
        %v4472 = vpow.pop %v4471
        %v4473 = vmul.f32 %v4435, 1.442695
        %v4474 = vpow.pop %v4473
        %v4475 = vmul.f32 %v4436, 1.442695
        %v4476 = vpow.pop %v4475
        %v4477 = vmul.f32 %v4437, 1.442695
        %v4478 = vpow.pop %v4477
        %v4479 = vmul.f32 %v4438, 1.442695
        %v4480 = vpow.pop %v4479
        %v4481 = vmul.f32 %v4439, 1.442695
        %v4482 = vpow.pop %v4481
        %v4483 = vmul.f32 %v4440, 1.442695
        %v4484 = vpow.pop %v4483
        %v4485 = vmul.f32 %v4441, 1.442695
        %v4486 = vpow.pop %v4485
        %v4487 = vmul.f32 %v4442, 1.442695
        %v4488 = vpow.pop %v4487
        %v4489 = vmul.f32 %v4443, 1.442695
        %v4490 = vpow.pop %v4489
        %v4491 = vmul.f32 %v4444, 1.442695
        %v4492 = vpow.pop %v4491
        %v4493 = vmul.f32 %v4445, 1.442695
        %v4494 = vpow.pop %v4493
        %v4495 = vmul.f32 %v4446, 1.442695
        %v4496 = vpow.pop %v4495
        %v4497 = vmul.f32 %v4447, 1.442695
        %v4498 = vpow.pop %v4497
        %v4499 = vmul.f32 %v4448, 1.442695
        %v4500 = vpow.pop %v4499
        %v4501 = vmul.f32 %v4449, 1.442695
        %v4502 = vpow.pop %v4501
        %v4503 = vmul.f32 %v4450, 1.442695
        %v4504 = vpow.pop %v4503
        %v4505 = vmul.f32 %v4451, 1.442695
        %v4506 = vpow.pop %v4505
        %v4507 = vmul.f32 %v4452, 1.442695
        %v4508 = vpow.pop %v4507
        %v4509 = vmul.f32 %v4453, 1.442695
        %v4510 = vpow.pop %v4509
        %v4511 = vmul.f32 %v4454, 1.442695
        %v4512 = vpow.pop %v4511
        %v4513 = vmul.f32 %v4455, 1.442695
        %v4514 = vpow.pop %v4513
        %v4515 = vmul.f32 %v4456, 1.442695
        %v4516 = vpow.pop %v4515
        %v4517 = vmul.f32 %v4457, 1.442695
        %v4518 = vpow.pop %v4517
        %v4519 = vmul.f32 %v4458, 1.442695
        %v4520 = vpow.pop %v4519
        %v4521 = vmul.f32 %v4459, 1.442695
        %v4522 = vpow.pop %v4521
        %v4523 = vmul.f32 %v4460, 1.442695
        %v4524 = vpow.pop %v4523
        %v4525 = vmul.f32 %v4365, %v4462
        %v4526 = vmul.f32 %v4366, %v4464
        %v4527 = vmul.f32 %v4367, %v4466
        %v4528 = vmul.f32 %v4368, %v4468
        %v4529 = vmul.f32 %v4369, %v4470
        %v4530 = vmul.f32 %v4370, %v4472
        %v4531 = vmul.f32 %v4371, %v4474
        %v4532 = vmul.f32 %v4372, %v4476
        %v4533 = vmul.f32 %v4373, %v4478
        %v4534 = vmul.f32 %v4374, %v4480
        %v4535 = vmul.f32 %v4375, %v4482
        %v4536 = vmul.f32 %v4376, %v4484
        %v4537 = vmul.f32 %v4377, %v4486
        %v4538 = vmul.f32 %v4378, %v4488
        %v4539 = vmul.f32 %v4379, %v4490
        %v4540 = vmul.f32 %v4380, %v4492
        %v4541 = vmul.f32 %v4381, %v4494
        %v4542 = vmul.f32 %v4382, %v4496
        %v4543 = vmul.f32 %v4383, %v4498
        %v4544 = vmul.f32 %v4384, %v4500
        %v4545 = vmul.f32 %v4385, %v4502
        %v4546 = vmul.f32 %v4386, %v4504
        %v4547 = vmul.f32 %v4387, %v4506
        %v4548 = vmul.f32 %v4388, %v4508
        %v4549 = vmul.f32 %v4389, %v4510
        %v4550 = vmul.f32 %v4390, %v4512
        %v4551 = vmul.f32 %v4391, %v4514
        %v4552 = vmul.f32 %v4392, %v4516
        %v4553 = vmul.f32 %v4393, %v4518
        %v4554 = vmul.f32 %v4394, %v4520
        %v4555 = vmul.f32 %v4395, %v4522
        %v4556 = vmul.f32 %v4396, %v4524
        %v4557 = vsub.f32 1.0, %v4525
        %v4558 = vsub.f32 1.0, %v4526
        %v4559 = vsub.f32 1.0, %v4527
        %v4560 = vsub.f32 1.0, %v4528
        %v4561 = vsub.f32 1.0, %v4529
        %v4562 = vsub.f32 1.0, %v4530
        %v4563 = vsub.f32 1.0, %v4531
        %v4564 = vsub.f32 1.0, %v4532
        %v4565 = vsub.f32 1.0, %v4533
        %v4566 = vsub.f32 1.0, %v4534
        %v4567 = vsub.f32 1.0, %v4535
        %v4568 = vsub.f32 1.0, %v4536
        %v4569 = vsub.f32 1.0, %v4537
        %v4570 = vsub.f32 1.0, %v4538
        %v4571 = vsub.f32 1.0, %v4539
        %v4572 = vsub.f32 1.0, %v4540
        %v4573 = vsub.f32 1.0, %v4541
        %v4574 = vsub.f32 1.0, %v4542
        %v4575 = vsub.f32 1.0, %v4543
        %v4576 = vsub.f32 1.0, %v4544
        %v4577 = vsub.f32 1.0, %v4545
        %v4578 = vsub.f32 1.0, %v4546
        %v4579 = vsub.f32 1.0, %v4547
        %v4580 = vsub.f32 1.0, %v4548
        %v4581 = vsub.f32 1.0, %v4549
        %v4582 = vsub.f32 1.0, %v4550
        %v4583 = vsub.f32 1.0, %v4551
        %v4584 = vsub.f32 1.0, %v4552
        %v4585 = vsub.f32 1.0, %v4553
        %v4586 = vsub.f32 1.0, %v4554
        %v4587 = vsub.f32 1.0, %v4555
        %v4588 = vsub.f32 1.0, %v4556
        %vm4589 = vcmp.ge.f32.partialorder %v3917, 0.0
        %vm4590 = vcmp.ge.f32.partialorder %v3918, 0.0
        %vm4591 = vcmp.ge.f32.partialorder %v3919, 0.0
        %vm4592 = vcmp.ge.f32.partialorder %v3920, 0.0
        %vm4593 = vcmp.ge.f32.partialorder %v3921, 0.0
        %vm4594 = vcmp.ge.f32.partialorder %v3922, 0.0
        %vm4595 = vcmp.ge.f32.partialorder %v3923, 0.0
        %vm4596 = vcmp.ge.f32.partialorder %v3924, 0.0
        %vm4597 = vcmp.ge.f32.partialorder %v3925, 0.0
        %vm4598 = vcmp.ge.f32.partialorder %v3926, 0.0
        %vm4599 = vcmp.ge.f32.partialorder %v3927, 0.0
        %vm4600 = vcmp.ge.f32.partialorder %v3928, 0.0
        %vm4601 = vcmp.ge.f32.partialorder %v3929, 0.0
        %vm4602 = vcmp.ge.f32.partialorder %v3930, 0.0
        %vm4603 = vcmp.ge.f32.partialorder %v3931, 0.0
        %vm4604 = vcmp.ge.f32.partialorder %v3932, 0.0
        %vm4605 = vcmp.ge.f32.partialorder %v3933, 0.0
        %vm4606 = vcmp.ge.f32.partialorder %v3934, 0.0
        %vm4607 = vcmp.ge.f32.partialorder %v3935, 0.0
        %vm4608 = vcmp.ge.f32.partialorder %v3936, 0.0
        %vm4609 = vcmp.ge.f32.partialorder %v3937, 0.0
        %vm4610 = vcmp.ge.f32.partialorder %v3938, 0.0
        %vm4611 = vcmp.ge.f32.partialorder %v3939, 0.0
        %vm4612 = vcmp.ge.f32.partialorder %v3940, 0.0
        %vm4613 = vcmp.ge.f32.partialorder %v3941, 0.0
        %vm4614 = vcmp.ge.f32.partialorder %v3942, 0.0
        %vm4615 = vcmp.ge.f32.partialorder %v3943, 0.0
        %vm4616 = vcmp.ge.f32.partialorder %v3944, 0.0
        %vm4617 = vcmp.ge.f32.partialorder %v3945, 0.0
        %vm4618 = vcmp.ge.f32.partialorder %v3946, 0.0
        %vm4619 = vcmp.ge.f32.partialorder %v3947, 0.0
        %vm4620 = vcmp.ge.f32.partialorder %v3948, 0.0
        %v4621 = vsub.f32 0.0, %v4557
        %v4622 = vsub.f32 0.0, %v4558
        %v4623 = vsub.f32 0.0, %v4559
        %v4624 = vsub.f32 0.0, %v4560
        %v4625 = vsub.f32 0.0, %v4561
        %v4626 = vsub.f32 0.0, %v4562
        %v4627 = vsub.f32 0.0, %v4563
        %v4628 = vsub.f32 0.0, %v4564
        %v4629 = vsub.f32 0.0, %v4565
        %v4630 = vsub.f32 0.0, %v4566
        %v4631 = vsub.f32 0.0, %v4567
        %v4632 = vsub.f32 0.0, %v4568
        %v4633 = vsub.f32 0.0, %v4569
        %v4634 = vsub.f32 0.0, %v4570
        %v4635 = vsub.f32 0.0, %v4571
        %v4636 = vsub.f32 0.0, %v4572
        %v4637 = vsub.f32 0.0, %v4573
        %v4638 = vsub.f32 0.0, %v4574
        %v4639 = vsub.f32 0.0, %v4575
        %v4640 = vsub.f32 0.0, %v4576
        %v4641 = vsub.f32 0.0, %v4577
        %v4642 = vsub.f32 0.0, %v4578
        %v4643 = vsub.f32 0.0, %v4579
        %v4644 = vsub.f32 0.0, %v4580
        %v4645 = vsub.f32 0.0, %v4581
        %v4646 = vsub.f32 0.0, %v4582
        %v4647 = vsub.f32 0.0, %v4583
        %v4648 = vsub.f32 0.0, %v4584
        %v4649 = vsub.f32 0.0, %v4585
        %v4650 = vsub.f32 0.0, %v4586
        %v4651 = vsub.f32 0.0, %v4587
        %v4652 = vsub.f32 0.0, %v4588
        %v4653 = vsel %vm4589, %v4557, %v4621
        %v4654 = vsel %vm4590, %v4558, %v4622
        %v4655 = vsel %vm4591, %v4559, %v4623
        %v4656 = vsel %vm4592, %v4560, %v4624
        %v4657 = vsel %vm4593, %v4561, %v4625
        %v4658 = vsel %vm4594, %v4562, %v4626
        %v4659 = vsel %vm4595, %v4563, %v4627
        %v4660 = vsel %vm4596, %v4564, %v4628
        %v4661 = vsel %vm4597, %v4565, %v4629
        %v4662 = vsel %vm4598, %v4566, %v4630
        %v4663 = vsel %vm4599, %v4567, %v4631
        %v4664 = vsel %vm4600, %v4568, %v4632
        %v4665 = vsel %vm4601, %v4569, %v4633
        %v4666 = vsel %vm4602, %v4570, %v4634
        %v4667 = vsel %vm4603, %v4571, %v4635
        %v4668 = vsel %vm4604, %v4572, %v4636
        %v4669 = vsel %vm4605, %v4573, %v4637
        %v4670 = vsel %vm4606, %v4574, %v4638
        %v4671 = vsel %vm4607, %v4575, %v4639
        %v4672 = vsel %vm4608, %v4576, %v4640
        %v4673 = vsel %vm4609, %v4577, %v4641
        %v4674 = vsel %vm4610, %v4578, %v4642
        %v4675 = vsel %vm4611, %v4579, %v4643
        %v4676 = vsel %vm4612, %v4580, %v4644
        %v4677 = vsel %vm4613, %v4581, %v4645
        %v4678 = vsel %vm4614, %v4582, %v4646
        %v4679 = vsel %vm4615, %v4583, %v4647
        %v4680 = vsel %vm4616, %v4584, %v4648
        %v4681 = vsel %vm4617, %v4585, %v4649
        %v4682 = vsel %vm4618, %v4586, %v4650
        %v4683 = vsel %vm4619, %v4587, %v4651
        %v4684 = vsel %vm4620, %v4588, %v4652
        %v4685 = vadd.f32 %v4653, 1.0
        %v4686 = vadd.f32 %v4654, 1.0
        %v4687 = vadd.f32 %v4655, 1.0
        %v4688 = vadd.f32 %v4656, 1.0
        %v4689 = vadd.f32 %v4657, 1.0
        %v4690 = vadd.f32 %v4658, 1.0
        %v4691 = vadd.f32 %v4659, 1.0
        %v4692 = vadd.f32 %v4660, 1.0
        %v4693 = vadd.f32 %v4661, 1.0
        %v4694 = vadd.f32 %v4662, 1.0
        %v4695 = vadd.f32 %v4663, 1.0
        %v4696 = vadd.f32 %v4664, 1.0
        %v4697 = vadd.f32 %v4665, 1.0
        %v4698 = vadd.f32 %v4666, 1.0
        %v4699 = vadd.f32 %v4667, 1.0
        %v4700 = vadd.f32 %v4668, 1.0
        %v4701 = vadd.f32 %v4669, 1.0
        %v4702 = vadd.f32 %v4670, 1.0
        %v4703 = vadd.f32 %v4671, 1.0
        %v4704 = vadd.f32 %v4672, 1.0
        %v4705 = vadd.f32 %v4673, 1.0
        %v4706 = vadd.f32 %v4674, 1.0
        %v4707 = vadd.f32 %v4675, 1.0
        %v4708 = vadd.f32 %v4676, 1.0
        %v4709 = vadd.f32 %v4677, 1.0
        %v4710 = vadd.f32 %v4678, 1.0
        %v4711 = vadd.f32 %v4679, 1.0
        %v4712 = vadd.f32 %v4680, 1.0
        %v4713 = vadd.f32 %v4681, 1.0
        %v4714 = vadd.f32 %v4682, 1.0
        %v4715 = vadd.f32 %v4683, 1.0
        %v4716 = vadd.f32 %v4684, 1.0
        %v4717 = vmul.f32 %v3885, %v4685
        %v4718 = vmul.f32 %v3886, %v4686
        %v4719 = vmul.f32 %v3887, %v4687
        %v4720 = vmul.f32 %v3888, %v4688
        %v4721 = vmul.f32 %v3889, %v4689
        %v4722 = vmul.f32 %v3890, %v4690
        %v4723 = vmul.f32 %v3891, %v4691
        %v4724 = vmul.f32 %v3892, %v4692
        %v4725 = vmul.f32 %v3893, %v4693
        %v4726 = vmul.f32 %v3894, %v4694
        %v4727 = vmul.f32 %v3895, %v4695
        %v4728 = vmul.f32 %v3896, %v4696
        %v4729 = vmul.f32 %v3897, %v4697
        %v4730 = vmul.f32 %v3898, %v4698
        %v4731 = vmul.f32 %v3899, %v4699
        %v4732 = vmul.f32 %v3900, %v4700
        %v4733 = vmul.f32 %v3901, %v4701
        %v4734 = vmul.f32 %v3902, %v4702
        %v4735 = vmul.f32 %v3903, %v4703
        %v4736 = vmul.f32 %v3904, %v4704
        %v4737 = vmul.f32 %v3905, %v4705
        %v4738 = vmul.f32 %v3906, %v4706
        %v4739 = vmul.f32 %v3907, %v4707
        %v4740 = vmul.f32 %v3908, %v4708
        %v4741 = vmul.f32 %v3909, %v4709
        %v4742 = vmul.f32 %v3910, %v4710
        %v4743 = vmul.f32 %v3911, %v4711
        %v4744 = vmul.f32 %v3912, %v4712
        %v4745 = vmul.f32 %v3913, %v4713
        %v4746 = vmul.f32 %v3914, %v4714
        %v4747 = vmul.f32 %v3915, %v4715
        %v4748 = vmul.f32 %v3916, %v4716
        %v4749 = vpack.c.bf16 %v4725, %v4717
        %v4750 = vpack.c.bf16 %v4726, %v4718
        %v4751 = vpack.c.bf16 %v4727, %v4719
        %v4752 = vpack.c.bf16 %v4728, %v4720
        %v4753 = vpack.c.bf16 %v4729, %v4721
        %v4754 = vpack.c.bf16 %v4730, %v4722
        %v4755 = vpack.c.bf16 %v4731, %v4723
        %v4756 = vpack.c.bf16 %v4732, %v4724
        %v4757 = vpack.c.bf16 %v4741, %v4733
        %v4758 = vpack.c.bf16 %v4742, %v4734
        %v4759 = vpack.c.bf16 %v4743, %v4735
        %v4760 = vpack.c.bf16 %v4744, %v4736
        %v4761 = vpack.c.bf16 %v4745, %v4737
        %v4762 = vpack.c.bf16 %v4746, %v4738
        %v4763 = vpack.c.bf16 %v4747, %v4739
        %v4764 = vpack.c.bf16 %v4748, %v4740
        %v4765 = vld [vmem:[%s779] sm:$0xff]
        %v4766 = vld [vmem:[%s779 + $0x8] sm:$0xff]
        %v4767 = vld [vmem:[%s779 + $0x10] sm:$0xff]
        %v4768 = vld [vmem:[%s779 + $0x18] sm:$0xff]
        %v4769 = vld [vmem:[%s779 + $0x20] sm:$0xff]
        %v4770 = vld [vmem:[%s779 + $0x28] sm:$0xff]
        %v4771 = vld [vmem:[%s779 + $0x30] sm:$0xff]
        %v4772 = vld [vmem:[%s779 + $0x38] sm:$0xff]
        %v4773 = vld [vmem:[%s779 + $0x40] sm:$0xff]
        %v4774 = vld [vmem:[%s779 + $0x48] sm:$0xff]
        %v4775 = vld [vmem:[%s779 + $0x50] sm:$0xff]
        %v4776 = vld [vmem:[%s779 + $0x58] sm:$0xff]
        %v4777 = vld [vmem:[%s779 + $0x60] sm:$0xff]
        %v4778 = vld [vmem:[%s779 + $0x68] sm:$0xff]
        %v4779 = vld [vmem:[%s779 + $0x70] sm:$0xff]
        %v4780 = vld [vmem:[%s779 + $0x78] sm:$0xff]
        %v4781 = vld [vmem:[%s779 + $0x80] sm:$0xff]
        %v4782 = vld [vmem:[%s779 + $0x88] sm:$0xff]
        %v4783 = vld [vmem:[%s779 + $0x90] sm:$0xff]
        %v4784 = vld [vmem:[%s779 + $0x98] sm:$0xff]
        %v4785 = vld [vmem:[%s779 + $0xa0] sm:$0xff]
        %v4786 = vld [vmem:[%s779 + $0xa8] sm:$0xff]
        %v4787 = vld [vmem:[%s779 + $0xb0] sm:$0xff]
        %v4788 = vld [vmem:[%s779 + $0xb8] sm:$0xff]
        %v4789 = vld [vmem:[%s779 + $0xc0] sm:$0xff]
        %v4790 = vld [vmem:[%s779 + $0xc8] sm:$0xff]
        %v4791 = vld [vmem:[%s779 + $0xd0] sm:$0xff]
        %v4792 = vld [vmem:[%s779 + $0xd8] sm:$0xff]
        %v4793 = vld [vmem:[%s779 + $0xe0] sm:$0xff]
        %v4794 = vld [vmem:[%s779 + $0xe8] sm:$0xff]
        %v4795 = vld [vmem:[%s779 + $0xf0] sm:$0xff]
        %v4796 = vld [vmem:[%s779 + $0xf8] sm:$0xff]
        %v4797 = vld [vmem:[%s779 + $0x100] sm:$0xff]
        %v4798 = vld [vmem:[%s779 + $0x108] sm:$0xff]
        %v4799 = vld [vmem:[%s779 + $0x110] sm:$0xff]
        %v4800 = vld [vmem:[%s779 + $0x118] sm:$0xff]
        %v4801 = vld [vmem:[%s779 + $0x120] sm:$0xff]
        %v4802 = vld [vmem:[%s779 + $0x128] sm:$0xff]
        %v4803 = vld [vmem:[%s779 + $0x130] sm:$0xff]
        %v4804 = vld [vmem:[%s779 + $0x138] sm:$0xff]
        %v4805 = vld [vmem:[%s779 + $0x140] sm:$0xff]
        %v4806 = vld [vmem:[%s779 + $0x148] sm:$0xff]
        %v4807 = vld [vmem:[%s779 + $0x150] sm:$0xff]
        %v4808 = vld [vmem:[%s779 + $0x158] sm:$0xff]
        %v4809 = vld [vmem:[%s779 + $0x160] sm:$0xff]
        %v4810 = vld [vmem:[%s779 + $0x168] sm:$0xff]
        %v4811 = vld [vmem:[%s779 + $0x170] sm:$0xff]
        %v4812 = vld [vmem:[%s779 + $0x178] sm:$0xff]
        %v4813 = vld [vmem:[%s779 + $0x180] sm:$0xff]
        %v4814 = vld [vmem:[%s779 + $0x188] sm:$0xff]
        %v4815 = vld [vmem:[%s779 + $0x190] sm:$0xff]
        %v4816 = vld [vmem:[%s779 + $0x198] sm:$0xff]
        %v4817 = vld [vmem:[%s779 + $0x1a0] sm:$0xff]
        %v4818 = vld [vmem:[%s779 + $0x1a8] sm:$0xff]
        %v4819 = vld [vmem:[%s779 + $0x1b0] sm:$0xff]
        %v4820 = vld [vmem:[%s779 + $0x1b8] sm:$0xff]
        %v4821 = vld [vmem:[%s779 + $0x1c0] sm:$0xff]
        %v4822 = vld [vmem:[%s779 + $0x1c8] sm:$0xff]
        %v4823 = vld [vmem:[%s779 + $0x1d0] sm:$0xff]
        %v4824 = vld [vmem:[%s779 + $0x1d8] sm:$0xff]
        %v4825 = vld [vmem:[%s779 + $0x1e0] sm:$0xff]
        %v4826 = vld [vmem:[%s779 + $0x1e8] sm:$0xff]
        %v4827 = vld [vmem:[%s779 + $0x1f0] sm:$0xff]
        %v4828 = vld [vmem:[%s779 + $0x1f8] sm:$0xff]
        %v4829 = vld [vmem:[%s779 + $0x200] sm:$0xff]
        %v4830 = vld [vmem:[%s779 + $0x208] sm:$0xff]
        %v4831 = vld [vmem:[%s779 + $0x210] sm:$0xff]
        %v4832 = vld [vmem:[%s779 + $0x218] sm:$0xff]
        %v4833 = vld [vmem:[%s779 + $0x220] sm:$0xff]
        %v4834 = vld [vmem:[%s779 + $0x228] sm:$0xff]
        %v4835 = vld [vmem:[%s779 + $0x230] sm:$0xff]
        %v4836 = vld [vmem:[%s779 + $0x238] sm:$0xff]
        %v4837 = vld [vmem:[%s779 + $0x240] sm:$0xff]
        %v4838 = vld [vmem:[%s779 + $0x248] sm:$0xff]
        %v4839 = vld [vmem:[%s779 + $0x250] sm:$0xff]
        %v4840 = vld [vmem:[%s779 + $0x258] sm:$0xff]
        %v4841 = vld [vmem:[%s779 + $0x260] sm:$0xff]
        %v4842 = vld [vmem:[%s779 + $0x268] sm:$0xff]
        %v4843 = vld [vmem:[%s779 + $0x270] sm:$0xff]
        %v4844 = vld [vmem:[%s779 + $0x278] sm:$0xff]
        %v4845 = vld [vmem:[%s779 + $0x280] sm:$0xff]
        %v4846 = vld [vmem:[%s779 + $0x288] sm:$0xff]
        %v4847 = vld [vmem:[%s779 + $0x290] sm:$0xff]
        %v4848 = vld [vmem:[%s779 + $0x298] sm:$0xff]
        %v4849 = vld [vmem:[%s779 + $0x2a0] sm:$0xff]
        %v4850 = vld [vmem:[%s779 + $0x2a8] sm:$0xff]
        %v4851 = vld [vmem:[%s779 + $0x2b0] sm:$0xff]
        %v4852 = vld [vmem:[%s779 + $0x2b8] sm:$0xff]
        %v4853 = vld [vmem:[%s779 + $0x2c0] sm:$0xff]
        %v4854 = vld [vmem:[%s779 + $0x2c8] sm:$0xff]
        %v4855 = vld [vmem:[%s779 + $0x2d0] sm:$0xff]
        %v4856 = vld [vmem:[%s779 + $0x2d8] sm:$0xff]
        %v4857 = vld [vmem:[%s779 + $0x2e0] sm:$0xff]
        %v4858 = vld [vmem:[%s779 + $0x2e8] sm:$0xff]
        %v4859 = vld [vmem:[%s779 + $0x2f0] sm:$0xff]
        %v4860 = vld [vmem:[%s779 + $0x2f8] sm:$0xff]
        %v4861 = vld [vmem:[%s779 + $0x300] sm:$0xff]
        %v4862 = vld [vmem:[%s779 + $0x308] sm:$0xff]
        %v4863 = vld [vmem:[%s779 + $0x310] sm:$0xff]
        %v4864 = vld [vmem:[%s779 + $0x318] sm:$0xff]
        %v4865 = vld [vmem:[%s779 + $0x320] sm:$0xff]
        %v4866 = vld [vmem:[%s779 + $0x328] sm:$0xff]
        %v4867 = vld [vmem:[%s779 + $0x330] sm:$0xff]
        %v4868 = vld [vmem:[%s779 + $0x338] sm:$0xff]
        %v4869 = vld [vmem:[%s779 + $0x340] sm:$0xff]
        %v4870 = vld [vmem:[%s779 + $0x348] sm:$0xff]
        %v4871 = vld [vmem:[%s779 + $0x350] sm:$0xff]
        %v4872 = vld [vmem:[%s779 + $0x358] sm:$0xff]
        %v4873 = vld [vmem:[%s779 + $0x360] sm:$0xff]
        %v4874 = vld [vmem:[%s779 + $0x368] sm:$0xff]
        %v4875 = vld [vmem:[%s779 + $0x370] sm:$0xff]
        %v4876 = vld [vmem:[%s779 + $0x378] sm:$0xff]
        %v4877 = vld [vmem:[%s779 + $0x380] sm:$0xff]
        %v4878 = vld [vmem:[%s779 + $0x388] sm:$0xff]
        %v4879 = vld [vmem:[%s779 + $0x390] sm:$0xff]
        %v4880 = vld [vmem:[%s779 + $0x398] sm:$0xff]
        %v4881 = vld [vmem:[%s779 + $0x3a0] sm:$0xff]
        %v4882 = vld [vmem:[%s779 + $0x3a8] sm:$0xff]
        %v4883 = vld [vmem:[%s779 + $0x3b0] sm:$0xff]
        %v4884 = vld [vmem:[%s779 + $0x3b8] sm:$0xff]
        %v4885 = vld [vmem:[%s779 + $0x3c0] sm:$0xff]
        %v4886 = vld [vmem:[%s779 + $0x3c8] sm:$0xff]
        %v4887 = vld [vmem:[%s779 + $0x3d0] sm:$0xff]
        %v4888 = vld [vmem:[%s779 + $0x3d8] sm:$0xff]
        %v4889 = vld [vmem:[%s779 + $0x3e0] sm:$0xff]
        %v4890 = vld [vmem:[%s779 + $0x3e8] sm:$0xff]
        %v4891 = vld [vmem:[%s779 + $0x3f0] sm:$0xff]
        %v4892 = vld [vmem:[%s779 + $0x3f8] sm:$0xff]
        %v4893 = vld [vmem:[%s900] sm:$0x3]
        %v4895 = vlaneseq
        %v4896 = vshrl.u32 %v4895, 7
        %v4897 = vsub.s32 0, %v4896
        %v4898 = vrot.slane %v4893, %v4897
        %v4899 = vlaneseq
        %v4900 = vshrl.u32 %v4899, 7
        %v4901 = vsub.s32 1, %v4900
        %v4902 = vrot.slane %v4893, %v4901
        %v5033 = vunpack.c.l.b16 %v4765
        %v5034 = vunpack.c.h.b16 %v4765
        %v5035 = vunpack.c.l.b16 %v4766
        %v5036 = vunpack.c.h.b16 %v4766
        %v5037 = vunpack.c.l.b16 %v4767
        %v5038 = vunpack.c.h.b16 %v4767
        %v5039 = vunpack.c.l.b16 %v4768
        %v5040 = vunpack.c.h.b16 %v4768
        %v5041 = vunpack.c.l.b16 %v4769
        %v5042 = vunpack.c.h.b16 %v4769
        %v5043 = vunpack.c.l.b16 %v4770
        %v5044 = vunpack.c.h.b16 %v4770
        %v5045 = vunpack.c.l.b16 %v4771
        %v5046 = vunpack.c.h.b16 %v4771
        %v5047 = vunpack.c.l.b16 %v4772
        %v5048 = vunpack.c.h.b16 %v4772
        %v5049 = vunpack.c.l.b16 %v4773
        %v5050 = vunpack.c.h.b16 %v4773
        %v5051 = vunpack.c.l.b16 %v4774
        %v5052 = vunpack.c.h.b16 %v4774
        %v5053 = vunpack.c.l.b16 %v4775
        %v5054 = vunpack.c.h.b16 %v4775
        %v5055 = vunpack.c.l.b16 %v4776
        %v5056 = vunpack.c.h.b16 %v4776
        %v5057 = vunpack.c.l.b16 %v4777
        %v5058 = vunpack.c.h.b16 %v4777
        %v5059 = vunpack.c.l.b16 %v4778
        %v5060 = vunpack.c.h.b16 %v4778
        %v5061 = vunpack.c.l.b16 %v4779
        %v5062 = vunpack.c.h.b16 %v4779
        %v5063 = vunpack.c.l.b16 %v4780
        %v5064 = vunpack.c.h.b16 %v4780
        %v5065 = vunpack.c.l.b16 %v4781
        %v5066 = vunpack.c.h.b16 %v4781
        %v5067 = vunpack.c.l.b16 %v4782
        %v5068 = vunpack.c.h.b16 %v4782
        %v5069 = vunpack.c.l.b16 %v4783
        %v5070 = vunpack.c.h.b16 %v4783
        %v5071 = vunpack.c.l.b16 %v4784
        %v5072 = vunpack.c.h.b16 %v4784
        %v5073 = vunpack.c.l.b16 %v4785
        %v5074 = vunpack.c.h.b16 %v4785
        %v5075 = vunpack.c.l.b16 %v4786
        %v5076 = vunpack.c.h.b16 %v4786
        %v5077 = vunpack.c.l.b16 %v4787
        %v5078 = vunpack.c.h.b16 %v4787
        %v5079 = vunpack.c.l.b16 %v4788
        %v5080 = vunpack.c.h.b16 %v4788
        %v5081 = vunpack.c.l.b16 %v4789
        %v5082 = vunpack.c.h.b16 %v4789
        %v5083 = vunpack.c.l.b16 %v4790
        %v5084 = vunpack.c.h.b16 %v4790
        %v5085 = vunpack.c.l.b16 %v4791
        %v5086 = vunpack.c.h.b16 %v4791
        %v5087 = vunpack.c.l.b16 %v4792
        %v5088 = vunpack.c.h.b16 %v4792
        %v5089 = vunpack.c.l.b16 %v4793
        %v5090 = vunpack.c.h.b16 %v4793
        %v5091 = vunpack.c.l.b16 %v4794
        %v5092 = vunpack.c.h.b16 %v4794
        %v5093 = vunpack.c.l.b16 %v4795
        %v5094 = vunpack.c.h.b16 %v4795
        %v5095 = vunpack.c.l.b16 %v4796
        %v5096 = vunpack.c.h.b16 %v4796
        %v5097 = vunpack.c.l.b16 %v4797
        %v5098 = vunpack.c.h.b16 %v4797
        %v5099 = vunpack.c.l.b16 %v4798
        %v5100 = vunpack.c.h.b16 %v4798
        %v5101 = vunpack.c.l.b16 %v4799
        %v5102 = vunpack.c.h.b16 %v4799
        %v5103 = vunpack.c.l.b16 %v4800
        %v5104 = vunpack.c.h.b16 %v4800
        %v5105 = vunpack.c.l.b16 %v4801
        %v5106 = vunpack.c.h.b16 %v4801
        %v5107 = vunpack.c.l.b16 %v4802
        %v5108 = vunpack.c.h.b16 %v4802
        %v5109 = vunpack.c.l.b16 %v4803
        %v5110 = vunpack.c.h.b16 %v4803
        %v5111 = vunpack.c.l.b16 %v4804
        %v5112 = vunpack.c.h.b16 %v4804
        %v5113 = vunpack.c.l.b16 %v4805
        %v5114 = vunpack.c.h.b16 %v4805
        %v5115 = vunpack.c.l.b16 %v4806
        %v5116 = vunpack.c.h.b16 %v4806
        %v5117 = vunpack.c.l.b16 %v4807
        %v5118 = vunpack.c.h.b16 %v4807
        %v5119 = vunpack.c.l.b16 %v4808
        %v5120 = vunpack.c.h.b16 %v4808
        %v5121 = vunpack.c.l.b16 %v4809
        %v5122 = vunpack.c.h.b16 %v4809
        %v5123 = vunpack.c.l.b16 %v4810
        %v5124 = vunpack.c.h.b16 %v4810
        %v5125 = vunpack.c.l.b16 %v4811
        %v5126 = vunpack.c.h.b16 %v4811
        %v5127 = vunpack.c.l.b16 %v4812
        %v5128 = vunpack.c.h.b16 %v4812
        %v5129 = vunpack.c.l.b16 %v4813
        %v5130 = vunpack.c.h.b16 %v4813
        %v5131 = vunpack.c.l.b16 %v4814
        %v5132 = vunpack.c.h.b16 %v4814
        %v5133 = vunpack.c.l.b16 %v4815
        %v5134 = vunpack.c.h.b16 %v4815
        %v5135 = vunpack.c.l.b16 %v4816
        %v5136 = vunpack.c.h.b16 %v4816
        %v5137 = vunpack.c.l.b16 %v4817
        %v5138 = vunpack.c.h.b16 %v4817
        %v5139 = vunpack.c.l.b16 %v4818
        %v5140 = vunpack.c.h.b16 %v4818
        %v5141 = vunpack.c.l.b16 %v4819
        %v5142 = vunpack.c.h.b16 %v4819
        %v5143 = vunpack.c.l.b16 %v4820
        %v5144 = vunpack.c.h.b16 %v4820
        %v5145 = vunpack.c.l.b16 %v4821
        %v5146 = vunpack.c.h.b16 %v4821
        %v5147 = vunpack.c.l.b16 %v4822
        %v5148 = vunpack.c.h.b16 %v4822
        %v5149 = vunpack.c.l.b16 %v4823
        %v5150 = vunpack.c.h.b16 %v4823
        %v5151 = vunpack.c.l.b16 %v4824
        %v5152 = vunpack.c.h.b16 %v4824
        %v5153 = vunpack.c.l.b16 %v4825
        %v5154 = vunpack.c.h.b16 %v4825
        %v5155 = vunpack.c.l.b16 %v4826
        %v5156 = vunpack.c.h.b16 %v4826
        %v5157 = vunpack.c.l.b16 %v4827
        %v5158 = vunpack.c.h.b16 %v4827
        %v5159 = vunpack.c.l.b16 %v4828
        %v5160 = vunpack.c.h.b16 %v4828
        %v5161 = vunpack.c.l.b16 %v4829
        %v5162 = vunpack.c.h.b16 %v4829
        %v5163 = vunpack.c.l.b16 %v4830
        %v5164 = vunpack.c.h.b16 %v4830
        %v5165 = vunpack.c.l.b16 %v4831
        %v5166 = vunpack.c.h.b16 %v4831
        %v5167 = vunpack.c.l.b16 %v4832
        %v5168 = vunpack.c.h.b16 %v4832
        %v5169 = vunpack.c.l.b16 %v4833
        %v5170 = vunpack.c.h.b16 %v4833
        %v5171 = vunpack.c.l.b16 %v4834
        %v5172 = vunpack.c.h.b16 %v4834
        %v5173 = vunpack.c.l.b16 %v4835
        %v5174 = vunpack.c.h.b16 %v4835
        %v5175 = vunpack.c.l.b16 %v4836
        %v5176 = vunpack.c.h.b16 %v4836
        %v5177 = vunpack.c.l.b16 %v4837
        %v5178 = vunpack.c.h.b16 %v4837
        %v5179 = vunpack.c.l.b16 %v4838
        %v5180 = vunpack.c.h.b16 %v4838
        %v5181 = vunpack.c.l.b16 %v4839
        %v5182 = vunpack.c.h.b16 %v4839
        %v5183 = vunpack.c.l.b16 %v4840
        %v5184 = vunpack.c.h.b16 %v4840
        %v5185 = vunpack.c.l.b16 %v4841
        %v5186 = vunpack.c.h.b16 %v4841
        %v5187 = vunpack.c.l.b16 %v4842
        %v5188 = vunpack.c.h.b16 %v4842
        %v5189 = vunpack.c.l.b16 %v4843
        %v5190 = vunpack.c.h.b16 %v4843
        %v5191 = vunpack.c.l.b16 %v4844
        %v5192 = vunpack.c.h.b16 %v4844
        %v5193 = vunpack.c.l.b16 %v4845
        %v5194 = vunpack.c.h.b16 %v4845
        %v5195 = vunpack.c.l.b16 %v4846
        %v5196 = vunpack.c.h.b16 %v4846
        %v5197 = vunpack.c.l.b16 %v4847
        %v5198 = vunpack.c.h.b16 %v4847
        %v5199 = vunpack.c.l.b16 %v4848
        %v5200 = vunpack.c.h.b16 %v4848
        %v5201 = vunpack.c.l.b16 %v4849
        %v5202 = vunpack.c.h.b16 %v4849
        %v5203 = vunpack.c.l.b16 %v4850
        %v5204 = vunpack.c.h.b16 %v4850
        %v5205 = vunpack.c.l.b16 %v4851
        %v5206 = vunpack.c.h.b16 %v4851
        %v5207 = vunpack.c.l.b16 %v4852
        %v5208 = vunpack.c.h.b16 %v4852
        %v5209 = vunpack.c.l.b16 %v4853
        %v5210 = vunpack.c.h.b16 %v4853
        %v5211 = vunpack.c.l.b16 %v4854
        %v5212 = vunpack.c.h.b16 %v4854
        %v5213 = vunpack.c.l.b16 %v4855
        %v5214 = vunpack.c.h.b16 %v4855
        %v5215 = vunpack.c.l.b16 %v4856
        %v5216 = vunpack.c.h.b16 %v4856
        %v5217 = vunpack.c.l.b16 %v4857
        %v5218 = vunpack.c.h.b16 %v4857
        %v5219 = vunpack.c.l.b16 %v4858
        %v5220 = vunpack.c.h.b16 %v4858
        %v5221 = vunpack.c.l.b16 %v4859
        %v5222 = vunpack.c.h.b16 %v4859
        %v5223 = vunpack.c.l.b16 %v4860
        %v5224 = vunpack.c.h.b16 %v4860
        %v5225 = vunpack.c.l.b16 %v4861
        %v5226 = vunpack.c.h.b16 %v4861
        %v5227 = vunpack.c.l.b16 %v4862
        %v5228 = vunpack.c.h.b16 %v4862
        %v5229 = vunpack.c.l.b16 %v4863
        %v5230 = vunpack.c.h.b16 %v4863
        %v5231 = vunpack.c.l.b16 %v4864
        %v5232 = vunpack.c.h.b16 %v4864
        %v5233 = vunpack.c.l.b16 %v4865
        %v5234 = vunpack.c.h.b16 %v4865
        %v5235 = vunpack.c.l.b16 %v4866
        %v5236 = vunpack.c.h.b16 %v4866
        %v5237 = vunpack.c.l.b16 %v4867
        %v5238 = vunpack.c.h.b16 %v4867
        %v5239 = vunpack.c.l.b16 %v4868
        %v5240 = vunpack.c.h.b16 %v4868
        %v5241 = vunpack.c.l.b16 %v4869
        %v5242 = vunpack.c.h.b16 %v4869
        %v5243 = vunpack.c.l.b16 %v4870
        %v5244 = vunpack.c.h.b16 %v4870
        %v5245 = vunpack.c.l.b16 %v4871
        %v5246 = vunpack.c.h.b16 %v4871
        %v5247 = vunpack.c.l.b16 %v4872
        %v5248 = vunpack.c.h.b16 %v4872
        %v5249 = vunpack.c.l.b16 %v4873
        %v5250 = vunpack.c.h.b16 %v4873
        %v5251 = vunpack.c.l.b16 %v4874
        %v5252 = vunpack.c.h.b16 %v4874
        %v5253 = vunpack.c.l.b16 %v4875
        %v5254 = vunpack.c.h.b16 %v4875
        %v5255 = vunpack.c.l.b16 %v4876
        %v5256 = vunpack.c.h.b16 %v4876
        %v5257 = vunpack.c.l.b16 %v4877
        %v5258 = vunpack.c.h.b16 %v4877
        %v5259 = vunpack.c.l.b16 %v4878
        %v5260 = vunpack.c.h.b16 %v4878
        %v5261 = vunpack.c.l.b16 %v4879
        %v5262 = vunpack.c.h.b16 %v4879
        %v5263 = vunpack.c.l.b16 %v4880
        %v5264 = vunpack.c.h.b16 %v4880
        %v5265 = vunpack.c.l.b16 %v4881
        %v5266 = vunpack.c.h.b16 %v4881
        %v5267 = vunpack.c.l.b16 %v4882
        %v5268 = vunpack.c.h.b16 %v4882
        %v5269 = vunpack.c.l.b16 %v4883
        %v5270 = vunpack.c.h.b16 %v4883
        %v5271 = vunpack.c.l.b16 %v4884
        %v5272 = vunpack.c.h.b16 %v4884
        %v5273 = vunpack.c.l.b16 %v4885
        %v5274 = vunpack.c.h.b16 %v4885
        %v5275 = vunpack.c.l.b16 %v4886
        %v5276 = vunpack.c.h.b16 %v4886
        %v5277 = vunpack.c.l.b16 %v4887
        %v5278 = vunpack.c.h.b16 %v4887
        %v5279 = vunpack.c.l.b16 %v4888
        %v5280 = vunpack.c.h.b16 %v4888
        %v5281 = vunpack.c.l.b16 %v4889
        %v5282 = vunpack.c.h.b16 %v4889
        %v5283 = vunpack.c.l.b16 %v4890
        %v5284 = vunpack.c.h.b16 %v4890
        %v5285 = vunpack.c.l.b16 %v4891
        %v5286 = vunpack.c.h.b16 %v4891
        %v5287 = vunpack.c.l.b16 %v4892
        %v5288 = vunpack.c.h.b16 %v4892
        %v5289 = vpack.c.b16 %v5035, %v5033
        %v5290 = vpack.c.b16 %v5036, %v5034
        %v5291 = vpack.c.b16 %v5039, %v5037
        %v5292 = vpack.c.b16 %v5040, %v5038
        %v5293 = vpack.c.b16 %v5043, %v5041
        %v5294 = vpack.c.b16 %v5044, %v5042
        %v5295 = vpack.c.b16 %v5047, %v5045
        %v5296 = vpack.c.b16 %v5048, %v5046
        %v5297 = vpack.c.b16 %v5051, %v5049
        %v5298 = vpack.c.b16 %v5052, %v5050
        %v5299 = vpack.c.b16 %v5055, %v5053
        %v5300 = vpack.c.b16 %v5056, %v5054
        %v5301 = vpack.c.b16 %v5059, %v5057
        %v5302 = vpack.c.b16 %v5060, %v5058
        %v5303 = vpack.c.b16 %v5063, %v5061
        %v5304 = vpack.c.b16 %v5064, %v5062
        %v5305 = vpack.c.b16 %v5067, %v5065
        %v5306 = vpack.c.b16 %v5068, %v5066
        %v5307 = vpack.c.b16 %v5071, %v5069
        %v5308 = vpack.c.b16 %v5072, %v5070
        %v5309 = vpack.c.b16 %v5075, %v5073
        %v5310 = vpack.c.b16 %v5076, %v5074
        %v5311 = vpack.c.b16 %v5079, %v5077
        %v5312 = vpack.c.b16 %v5080, %v5078
        %v5313 = vpack.c.b16 %v5083, %v5081
        %v5314 = vpack.c.b16 %v5084, %v5082
        %v5315 = vpack.c.b16 %v5087, %v5085
        %v5316 = vpack.c.b16 %v5088, %v5086
        %v5317 = vpack.c.b16 %v5091, %v5089
        %v5318 = vpack.c.b16 %v5092, %v5090
        %v5319 = vpack.c.b16 %v5095, %v5093
        %v5320 = vpack.c.b16 %v5096, %v5094
        %v5321 = vpack.c.b16 %v5099, %v5097
        %v5322 = vpack.c.b16 %v5100, %v5098
        %v5323 = vpack.c.b16 %v5103, %v5101
        %v5324 = vpack.c.b16 %v5104, %v5102
        %v5325 = vpack.c.b16 %v5107, %v5105
        %v5326 = vpack.c.b16 %v5108, %v5106
        %v5327 = vpack.c.b16 %v5111, %v5109
        %v5328 = vpack.c.b16 %v5112, %v5110
        %v5329 = vpack.c.b16 %v5115, %v5113
        %v5330 = vpack.c.b16 %v5116, %v5114
        %v5331 = vpack.c.b16 %v5119, %v5117
        %v5332 = vpack.c.b16 %v5120, %v5118
        %v5333 = vpack.c.b16 %v5123, %v5121
        %v5334 = vpack.c.b16 %v5124, %v5122
        %v5335 = vpack.c.b16 %v5127, %v5125
        %v5336 = vpack.c.b16 %v5128, %v5126
        %v5337 = vpack.c.b16 %v5131, %v5129
        %v5338 = vpack.c.b16 %v5132, %v5130
        %v5339 = vpack.c.b16 %v5135, %v5133
        %v5340 = vpack.c.b16 %v5136, %v5134
        %v5341 = vpack.c.b16 %v5139, %v5137
        %v5342 = vpack.c.b16 %v5140, %v5138
        %v5343 = vpack.c.b16 %v5143, %v5141
        %v5344 = vpack.c.b16 %v5144, %v5142
        %v5345 = vpack.c.b16 %v5147, %v5145
        %v5346 = vpack.c.b16 %v5148, %v5146
        %v5347 = vpack.c.b16 %v5151, %v5149
        %v5348 = vpack.c.b16 %v5152, %v5150
        %v5349 = vpack.c.b16 %v5155, %v5153
        %v5350 = vpack.c.b16 %v5156, %v5154
        %v5351 = vpack.c.b16 %v5159, %v5157
        %v5352 = vpack.c.b16 %v5160, %v5158
        %v5353 = vpack.c.b16 %v5163, %v5161
        %v5354 = vpack.c.b16 %v5164, %v5162
        %v5355 = vpack.c.b16 %v5167, %v5165
        %v5356 = vpack.c.b16 %v5168, %v5166
        %v5357 = vpack.c.b16 %v5171, %v5169
        %v5358 = vpack.c.b16 %v5172, %v5170
        %v5359 = vpack.c.b16 %v5175, %v5173
        %v5360 = vpack.c.b16 %v5176, %v5174
        %v5361 = vpack.c.b16 %v5179, %v5177
        %v5362 = vpack.c.b16 %v5180, %v5178
        %v5363 = vpack.c.b16 %v5183, %v5181
        %v5364 = vpack.c.b16 %v5184, %v5182
        %v5365 = vpack.c.b16 %v5187, %v5185
        %v5366 = vpack.c.b16 %v5188, %v5186
        %v5367 = vpack.c.b16 %v5191, %v5189
        %v5368 = vpack.c.b16 %v5192, %v5190
        %v5369 = vpack.c.b16 %v5195, %v5193
        %v5370 = vpack.c.b16 %v5196, %v5194
        %v5371 = vpack.c.b16 %v5199, %v5197
        %v5372 = vpack.c.b16 %v5200, %v5198
        %v5373 = vpack.c.b16 %v5203, %v5201
        %v5374 = vpack.c.b16 %v5204, %v5202
        %v5375 = vpack.c.b16 %v5207, %v5205
        %v5376 = vpack.c.b16 %v5208, %v5206
        %v5377 = vpack.c.b16 %v5211, %v5209
        %v5378 = vpack.c.b16 %v5212, %v5210
        %v5379 = vpack.c.b16 %v5215, %v5213
        %v5380 = vpack.c.b16 %v5216, %v5214
        %v5381 = vpack.c.b16 %v5219, %v5217
        %v5382 = vpack.c.b16 %v5220, %v5218
        %v5383 = vpack.c.b16 %v5223, %v5221
        %v5384 = vpack.c.b16 %v5224, %v5222
        %v5385 = vpack.c.b16 %v5227, %v5225
        %v5386 = vpack.c.b16 %v5228, %v5226
        %v5387 = vpack.c.b16 %v5231, %v5229
        %v5388 = vpack.c.b16 %v5232, %v5230
        %v5389 = vpack.c.b16 %v5235, %v5233
        %v5390 = vpack.c.b16 %v5236, %v5234
        %v5391 = vpack.c.b16 %v5239, %v5237
        %v5392 = vpack.c.b16 %v5240, %v5238
        %v5393 = vpack.c.b16 %v5243, %v5241
        %v5394 = vpack.c.b16 %v5244, %v5242
        %v5395 = vpack.c.b16 %v5247, %v5245
        %v5396 = vpack.c.b16 %v5248, %v5246
        %v5397 = vpack.c.b16 %v5251, %v5249
        %v5398 = vpack.c.b16 %v5252, %v5250
        %v5399 = vpack.c.b16 %v5255, %v5253
        %v5400 = vpack.c.b16 %v5256, %v5254
        %v5401 = vpack.c.b16 %v5259, %v5257
        %v5402 = vpack.c.b16 %v5260, %v5258
        %v5403 = vpack.c.b16 %v5263, %v5261
        %v5404 = vpack.c.b16 %v5264, %v5262
        %v5405 = vpack.c.b16 %v5267, %v5265
        %v5406 = vpack.c.b16 %v5268, %v5266
        %v5407 = vpack.c.b16 %v5271, %v5269
        %v5408 = vpack.c.b16 %v5272, %v5270
        %v5409 = vpack.c.b16 %v5275, %v5273
        %v5410 = vpack.c.b16 %v5276, %v5274
        %v5411 = vpack.c.b16 %v5279, %v5277
        %v5412 = vpack.c.b16 %v5280, %v5278
        %v5413 = vpack.c.b16 %v5283, %v5281
        %v5414 = vpack.c.b16 %v5284, %v5282
        %v5415 = vpack.c.b16 %v5287, %v5285
        %v5416 = vpack.c.b16 %v5288, %v5286
        %5545 = vmatprep.subr.bf16.mxu0 %v5290
        %5546 = vmatpush1.bf16.msra.mxu0 %v5289
        %5547 = vmatprep.subr.bf16.mxu0 %v5292
        %5548 = vmatpush1.bf16.msra.mxu0 %v5291
        %5549 = vmatprep.subr.bf16.mxu0 %v5294
        %5550 = vmatpush1.bf16.msra.mxu0 %v5293
        %5551 = vmatprep.subr.bf16.mxu0 %v5296
        %5552 = vmatpush1.bf16.msra.mxu0 %v5295
        %5553 = vmatprep.subr.bf16.mxu0 %v5298
        %5554 = vmatpush1.bf16.msra.mxu0 %v5297
        %5555 = vmatprep.subr.bf16.mxu0 %v5300
        %5556 = vmatpush1.bf16.msra.mxu0 %v5299
        %5557 = vmatprep.subr.bf16.mxu0 %v5302
        %5558 = vmatpush1.bf16.msra.mxu0 %v5301
        %5559 = vmatprep.subr.bf16.mxu0 %v5304
        %5560 = vmatpush1.bf16.msra.mxu0 %v5303
        %5561 = vmatprep.subr.bf16.mxu0 %v5306
        %5562 = vmatpush1.bf16.msra.mxu0 %v5305
        %5563 = vmatprep.subr.bf16.mxu0 %v5308
        %5564 = vmatpush1.bf16.msra.mxu0 %v5307
        %5565 = vmatprep.subr.bf16.mxu0 %v5310
        %5566 = vmatpush1.bf16.msra.mxu0 %v5309
        %5567 = vmatprep.subr.bf16.mxu0 %v5312
        %5568 = vmatpush1.bf16.msra.mxu0 %v5311
        %5569 = vmatprep.subr.bf16.mxu0 %v5314
        %5570 = vmatpush1.bf16.msra.mxu0 %v5313
        %5571 = vmatprep.subr.bf16.mxu0 %v5316
        %5572 = vmatpush1.bf16.msra.mxu0 %v5315
        %5573 = vmatprep.subr.bf16.mxu0 %v5318
        %5574 = vmatpush1.bf16.msra.mxu0 %v5317
        %5575 = vmatprep.subr.bf16.mxu0 %v5320
        %5576 = vmatpush1.bf16.msra.mxu0 %v5319
        %5577 = vmatprep.mubr.bf16.mxu0 %v4750
        %5578 = vmatmul.mubr.bf16.gmra.mrb[0].mxu0 %v4749
        %v5579 = vpop.f32.mrb[0].mxu0
        %v5580 = vadd.f32 %v4898, %v5579
        %v5581 = vpop.f32.mrb[0].mxu0
        %v5582 = vadd.f32 %v4902, %v5581
        %v5583 = vpop.f32.mrb[0].mxu0
        %v5584 = vadd.f32 %v4898, %v5583
        %v5585 = vpop.f32.mrb[0].mxu0
        %v5586 = vadd.f32 %v4902, %v5585
        %5587 = vmatprep.mubr.bf16.mxu0 %v4758
        %5588 = vmatmul.mubr.bf16.gmra.mrb[0].mxu0 %v4757
        %v5589 = vpop.f32.mrb[0].mxu0
        %v5590 = vadd.f32 %v4898, %v5589
        %v5591 = vpop.f32.mrb[0].mxu0
        %v5592 = vadd.f32 %v4902, %v5591
        %v5593 = vpop.f32.mrb[0].mxu0
        %v5594 = vadd.f32 %v4898, %v5593
        %v5595 = vpop.f32.mrb[0].mxu0
        %v5596 = vadd.f32 %v4902, %v5595
        %5597 = vdwg.mxu0
        %5598 = vmatprep.subr.bf16.mxu0 %v5322
        %5599 = vmatpush1.bf16.msra.mxu0 %v5321
        %5600 = vmatprep.subr.bf16.mxu0 %v5324
        %5601 = vmatpush1.bf16.msra.mxu0 %v5323
        %5602 = vmatprep.subr.bf16.mxu0 %v5326
        %5603 = vmatpush1.bf16.msra.mxu0 %v5325
        %5604 = vmatprep.subr.bf16.mxu0 %v5328
        %5605 = vmatpush1.bf16.msra.mxu0 %v5327
        %5606 = vmatprep.subr.bf16.mxu0 %v5330
        %5607 = vmatpush1.bf16.msra.mxu0 %v5329
        %5608 = vmatprep.subr.bf16.mxu0 %v5332
        %5609 = vmatpush1.bf16.msra.mxu0 %v5331
        %5610 = vmatprep.subr.bf16.mxu0 %v5334
        %5611 = vmatpush1.bf16.msra.mxu0 %v5333
        %5612 = vmatprep.subr.bf16.mxu0 %v5336
        %5613 = vmatpush1.bf16.msra.mxu0 %v5335
        %5614 = vmatprep.subr.bf16.mxu0 %v5338
        %5615 = vmatpush1.bf16.msra.mxu0 %v5337
        %5616 = vmatprep.subr.bf16.mxu0 %v5340
        %5617 = vmatpush1.bf16.msra.mxu0 %v5339
        %5618 = vmatprep.subr.bf16.mxu0 %v5342
        %5619 = vmatpush1.bf16.msra.mxu0 %v5341
        %5620 = vmatprep.subr.bf16.mxu0 %v5344
        %5621 = vmatpush1.bf16.msra.mxu0 %v5343
        %5622 = vmatprep.subr.bf16.mxu0 %v5346
        %5623 = vmatpush1.bf16.msra.mxu0 %v5345
        %5624 = vmatprep.subr.bf16.mxu0 %v5348
        %5625 = vmatpush1.bf16.msra.mxu0 %v5347
        %5626 = vmatprep.subr.bf16.mxu0 %v5350
        %5627 = vmatpush1.bf16.msra.mxu0 %v5349
        %5628 = vmatprep.subr.bf16.mxu0 %v5352
        %5629 = vmatpush1.bf16.msra.mxu0 %v5351
        %5630 = vmatprep.mubr.bf16.mxu0 %v4752
        %5631 = vmatmul.mubr.bf16.gmra.mrb[0].mxu0 %v4751
        %v5632 = vpop.f32.mrb[0].mxu0
        %v5633 = vadd.f32 %v5580, %v5632
        %v5634 = vpop.f32.mrb[0].mxu0
        %v5635 = vadd.f32 %v5582, %v5634
        %v5636 = vpop.f32.mrb[0].mxu0
        %v5637 = vadd.f32 %v5584, %v5636
        %v5638 = vpop.f32.mrb[0].mxu0
        %v5639 = vadd.f32 %v5586, %v5638
        %5640 = vmatprep.mubr.bf16.mxu0 %v4760
        %5641 = vmatmul.mubr.bf16.gmra.mrb[0].mxu0 %v4759
        %v5642 = vpop.f32.mrb[0].mxu0
        %v5643 = vadd.f32 %v5590, %v5642
        %v5644 = vpop.f32.mrb[0].mxu0
        %v5645 = vadd.f32 %v5592, %v5644
        %v5646 = vpop.f32.mrb[0].mxu0
        %v5647 = vadd.f32 %v5594, %v5646
        %v5648 = vpop.f32.mrb[0].mxu0
        %v5649 = vadd.f32 %v5596, %v5648
        %5650 = vdwg.mxu0
        %5651 = vmatprep.subr.bf16.mxu0 %v5354
        %5652 = vmatpush1.bf16.msra.mxu0 %v5353
        %5653 = vmatprep.subr.bf16.mxu0 %v5356
        %5654 = vmatpush1.bf16.msra.mxu0 %v5355
        %5655 = vmatprep.subr.bf16.mxu0 %v5358
        %5656 = vmatpush1.bf16.msra.mxu0 %v5357
        %5657 = vmatprep.subr.bf16.mxu0 %v5360
        %5658 = vmatpush1.bf16.msra.mxu0 %v5359
        %5659 = vmatprep.subr.bf16.mxu0 %v5362
        %5660 = vmatpush1.bf16.msra.mxu0 %v5361
        %5661 = vmatprep.subr.bf16.mxu0 %v5364
        %5662 = vmatpush1.bf16.msra.mxu0 %v5363
        %5663 = vmatprep.subr.bf16.mxu0 %v5366
        %5664 = vmatpush1.bf16.msra.mxu0 %v5365
        %5665 = vmatprep.subr.bf16.mxu0 %v5368
        %5666 = vmatpush1.bf16.msra.mxu0 %v5367
        %5667 = vmatprep.subr.bf16.mxu0 %v5370
        %5668 = vmatpush1.bf16.msra.mxu0 %v5369
        %5669 = vmatprep.subr.bf16.mxu0 %v5372
        %5670 = vmatpush1.bf16.msra.mxu0 %v5371
        %5671 = vmatprep.subr.bf16.mxu0 %v5374
        %5672 = vmatpush1.bf16.msra.mxu0 %v5373
        %5673 = vmatprep.subr.bf16.mxu0 %v5376
        %5674 = vmatpush1.bf16.msra.mxu0 %v5375
        %5675 = vmatprep.subr.bf16.mxu0 %v5378
        %5676 = vmatpush1.bf16.msra.mxu0 %v5377
        %5677 = vmatprep.subr.bf16.mxu0 %v5380
        %5678 = vmatpush1.bf16.msra.mxu0 %v5379
        %5679 = vmatprep.subr.bf16.mxu0 %v5382
        %5680 = vmatpush1.bf16.msra.mxu0 %v5381
        %5681 = vmatprep.subr.bf16.mxu0 %v5384
        %5682 = vmatpush1.bf16.msra.mxu0 %v5383
        %5683 = vmatprep.mubr.bf16.mxu0 %v4754
        %5684 = vmatmul.mubr.bf16.gmra.mrb[0].mxu0 %v4753
        %v5685 = vpop.f32.mrb[0].mxu0
        %v5686 = vadd.f32 %v5633, %v5685
        %v5687 = vpop.f32.mrb[0].mxu0
        %v5688 = vadd.f32 %v5635, %v5687
        %v5689 = vpop.f32.mrb[0].mxu0
        %v5690 = vadd.f32 %v5637, %v5689
        %v5691 = vpop.f32.mrb[0].mxu0
        %v5692 = vadd.f32 %v5639, %v5691
        %5693 = vmatprep.mubr.bf16.mxu0 %v4762
        %5694 = vmatmul.mubr.bf16.gmra.mrb[0].mxu0 %v4761
        %v5695 = vpop.f32.mrb[0].mxu0
        %v5696 = vadd.f32 %v5643, %v5695
        %v5697 = vpop.f32.mrb[0].mxu0
        %v5698 = vadd.f32 %v5645, %v5697
        %v5699 = vpop.f32.mrb[0].mxu0
        %v5700 = vadd.f32 %v5647, %v5699
        %v5701 = vpop.f32.mrb[0].mxu0
        %v5702 = vadd.f32 %v5649, %v5701
        %5703 = vdwg.mxu0
        %5704 = vmatprep.subr.bf16.mxu0 %v5386
        %5705 = vmatpush1.bf16.msra.mxu0 %v5385
        %5706 = vmatprep.subr.bf16.mxu0 %v5388
        %5707 = vmatpush1.bf16.msra.mxu0 %v5387
        %5708 = vmatprep.subr.bf16.mxu0 %v5390
        %5709 = vmatpush1.bf16.msra.mxu0 %v5389
        %5710 = vmatprep.subr.bf16.mxu0 %v5392
        %5711 = vmatpush1.bf16.msra.mxu0 %v5391
        %5712 = vmatprep.subr.bf16.mxu0 %v5394
        %5713 = vmatpush1.bf16.msra.mxu0 %v5393
        %5714 = vmatprep.subr.bf16.mxu0 %v5396
        %5715 = vmatpush1.bf16.msra.mxu0 %v5395
        %5716 = vmatprep.subr.bf16.mxu0 %v5398
        %5717 = vmatpush1.bf16.msra.mxu0 %v5397
        %5718 = vmatprep.subr.bf16.mxu0 %v5400
        %5719 = vmatpush1.bf16.msra.mxu0 %v5399
        %5720 = vmatprep.subr.bf16.mxu0 %v5402
        %5721 = vmatpush1.bf16.msra.mxu0 %v5401
        %5722 = vmatprep.subr.bf16.mxu0 %v5404
        %5723 = vmatpush1.bf16.msra.mxu0 %v5403
        %5724 = vmatprep.subr.bf16.mxu0 %v5406
        %5725 = vmatpush1.bf16.msra.mxu0 %v5405
        %5726 = vmatprep.subr.bf16.mxu0 %v5408
        %5727 = vmatpush1.bf16.msra.mxu0 %v5407
        %5728 = vmatprep.subr.bf16.mxu0 %v5410
        %5729 = vmatpush1.bf16.msra.mxu0 %v5409
        %5730 = vmatprep.subr.bf16.mxu0 %v5412
        %5731 = vmatpush1.bf16.msra.mxu0 %v5411
        %5732 = vmatprep.subr.bf16.mxu0 %v5414
        %5733 = vmatpush1.bf16.msra.mxu0 %v5413
        %5734 = vmatprep.subr.bf16.mxu0 %v5416
        %5735 = vmatpush1.bf16.msra.mxu0 %v5415
        %5736 = vmatprep.mubr.bf16.mxu0 %v4756
        %5737 = vmatmul.mubr.bf16.gmra.mrb[0].mxu0 %v4755
        %v5738 = vpop.f32.mrb[0].mxu0
        %v5739 = vadd.f32 %v5686, %v5738
        %v5740 = vpop.f32.mrb[0].mxu0
        %v5741 = vadd.f32 %v5688, %v5740
        %v5742 = vpop.f32.mrb[0].mxu0
        %v5743 = vadd.f32 %v5690, %v5742
        %v5744 = vpop.f32.mrb[0].mxu0
        %v5745 = vadd.f32 %v5692, %v5744
        %5746 = vmatprep.mubr.bf16.mxu0 %v4764
        %5747 = vmatmul.mubr.bf16.gmra.mrb[0].mxu0 %v4763
        %v5748 = vpop.f32.mrb[0].mxu0
        %v5749 = vadd.f32 %v5696, %v5748
        %v5750 = vpop.f32.mrb[0].mxu0
        %v5751 = vadd.f32 %v5698, %v5750
        %v5752 = vpop.f32.mrb[0].mxu0
        %v5753 = vadd.f32 %v5700, %v5752
        %v5754 = vpop.f32.mrb[0].mxu0
        %v5755 = vadd.f32 %v5702, %v5754
        %5756 = vdwg.mxu0
        %v5757 = vadd.f32 %v2851, %v5739
        %v5758 = vadd.f32 %v2852, %v5741
        %v5759 = vadd.f32 %v2853, %v5743
        %v5760 = vadd.f32 %v2854, %v5745
        %v5761 = vadd.f32 %v2855, %v5749
        %v5762 = vadd.f32 %v2856, %v5751
        %v5763 = vadd.f32 %v2857, %v5753
        %v5764 = vadd.f32 %v2858, %v5755
        %v5765 = vld [vmem:[%s904] sm:$0x3]
        %v5766 = vld [vmem:[%s908] sm:$0x3]
        %v5767 = vadd.f32 %v5757, %v5758
        %5768 = vadd.xlane.f32.xlu0 %v5767
        %v5769 = vpop.xlane.xlu0 %5768
        %v5770 = vadd.f32 %v5759, %v5760
        %5771 = vadd.xlane.f32.xlu0 %v5770
        %v5772 = vpop.xlane.xlu0 %5771
        %v5773 = vadd.f32 %v5761, %v5762
        %5774 = vadd.xlane.f32.xlu0 %v5773
        %v5775 = vpop.xlane.xlu0 %5774
        %v5776 = vadd.f32 %v5763, %v5764
        %5777 = vadd.xlane.f32.xlu0 %v5776
        %v5778 = vpop.xlane.xlu0 %5777
        %v5779 = vmul.f32 %v5769, %v2768
        %v5780 = vmul.f32 %v5772, %v2768
        %v5781 = vmul.f32 %v5775, %v2768
        %v5782 = vmul.f32 %v5778, %v2768
        %v5783 = vsub.f32 %v5757, %v5779
        %v5784 = vsub.f32 %v5758, %v5779
        %v5785 = vsub.f32 %v5759, %v5780
        %v5786 = vsub.f32 %v5760, %v5780
        %v5787 = vsub.f32 %v5761, %v5781
        %v5788 = vsub.f32 %v5762, %v5781
        %v5789 = vsub.f32 %v5763, %v5782
        %v5790 = vsub.f32 %v5764, %v5782
        %v5791 = vmul.f32 %v5783, %v5783
        %v5792 = vmul.f32 %v5784, %v5784
        %v5793 = vmul.f32 %v5785, %v5785
        %v5794 = vmul.f32 %v5786, %v5786
        %v5795 = vmul.f32 %v5787, %v5787
        %v5796 = vmul.f32 %v5788, %v5788
        %v5797 = vmul.f32 %v5789, %v5789
        %v5798 = vmul.f32 %v5790, %v5790
        %v5799 = vadd.f32 %v5791, %v5792
        %5800 = vadd.xlane.f32.xlu0 %v5799
        %v5801 = vpop.xlane.xlu0 %5800
        %v5802 = vadd.f32 %v5793, %v5794
        %5803 = vadd.xlane.f32.xlu0 %v5802
        %v5804 = vpop.xlane.xlu0 %5803
        %v5805 = vadd.f32 %v5795, %v5796
        %5806 = vadd.xlane.f32.xlu0 %v5805
        %v5807 = vpop.xlane.xlu0 %5806
        %v5808 = vadd.f32 %v5797, %v5798
        %5809 = vadd.xlane.f32.xlu0 %v5808
        %v5810 = vpop.xlane.xlu0 %5809
        %v5811 = vmul.f32 %v5801, %v2768
        %v5812 = vmul.f32 %v5804, %v2768
        %v5813 = vmul.f32 %v5807, %v2768
        %v5814 = vmul.f32 %v5810, %v2768
        %v5815 = vadd.f32 %v5811, 1e-05
        %v5816 = vadd.f32 %v5812, 1e-05
        %v5817 = vadd.f32 %v5813, 1e-05
        %v5818 = vadd.f32 %v5814, 1e-05
        %v5819 = vrsqrt.pop %v5815
        %v5820 = vrsqrt.pop %v5816
        %v5821 = vrsqrt.pop %v5817
        %v5822 = vrsqrt.pop %v5818
        %v5823 = vmul.f32 %v5783, %v5819
        %v5824 = vmul.f32 %v5784, %v5819
        %v5825 = vmul.f32 %v5785, %v5820
        %v5826 = vmul.f32 %v5786, %v5820
        %v5827 = vmul.f32 %v5787, %v5821
        %v5828 = vmul.f32 %v5788, %v5821
        %v5829 = vmul.f32 %v5789, %v5822
        %v5830 = vmul.f32 %v5790, %v5822
        %v5832 = vlaneseq
        %v5833 = vshrl.u32 %v5832, 7
        %v5834 = vsub.s32 0, %v5833
        %v5835 = vrot.slane %v5765, %v5834
        %v5836 = vlaneseq
        %v5837 = vshrl.u32 %v5836, 7
        %v5838 = vsub.s32 1, %v5837
        %v5839 = vrot.slane %v5765, %v5838
        %v5842 = vmul.f32 %v5823, %v5835
        %v5843 = vmul.f32 %v5824, %v5839
        %v5844 = vmul.f32 %v5825, %v5835
        %v5845 = vmul.f32 %v5826, %v5839
        %v5846 = vmul.f32 %v5827, %v5835
        %v5847 = vmul.f32 %v5828, %v5839
        %v5848 = vmul.f32 %v5829, %v5835
        %v5849 = vmul.f32 %v5830, %v5839
        %v5851 = vlaneseq
        %v5852 = vshrl.u32 %v5851, 7
        %v5853 = vsub.s32 0, %v5852
        %v5854 = vrot.slane %v5766, %v5853
        %v5855 = vlaneseq
        %v5856 = vshrl.u32 %v5855, 7
        %v5857 = vsub.s32 1, %v5856
        %v5858 = vrot.slane %v5766, %v5857
        %v5861 = vadd.f32 %v5842, %v5854
        %v5862 = vadd.f32 %v5843, %v5858
        %v5863 = vadd.f32 %v5844, %v5854
        %v5864 = vadd.f32 %v5845, %v5858
        %v5865 = vadd.f32 %v5846, %v5854
        %v5866 = vadd.f32 %v5847, %v5858
        %v5867 = vadd.f32 %v5848, %v5854
        %v5868 = vadd.f32 %v5849, %v5858
        %5869 = vst [vmem:[#allocation2] sm:$0xff] %v5861
        %5870 = vst [vmem:[#allocation2 + $0x8] sm:$0xff] %v5862
        %5871 = vst [vmem:[#allocation2 + $0x10] sm:$0xff] %v5863
        %5872 = vst [vmem:[#allocation2 + $0x18] sm:$0xff] %v5864
        %5873 = vst [vmem:[#allocation2 + $0x20] sm:$0xff] %v5865
        %5874 = vst [vmem:[#allocation2 + $0x28] sm:$0xff] %v5866
        %5875 = vst [vmem:[#allocation2 + $0x30] sm:$0xff] %v5867
        %5876 = vst [vmem:[#allocation2 + $0x38] sm:$0xff] %v5868
        %p5877 = scmp.eq.s32.totalorder %s41, 1
        // Predicated region
        $region129: #{tpu_custom_call.1} parent=95 // pred_check
          %p5878 = pneg %p5877
        $region130: #{tpu_custom_call.1} parent=95 // pred_check_branch
          %5880 = sbr.rel (%p5878) target = $region132
        $region131: #{tpu_custom_call.1} parent=95 // pred_region
          %v5881 = vld [vmem:[%s15] sm:$0x3]
          %v5882 = vld [vmem:[%s16] sm:$0x3]
          %v5883 = vadd.f32 %v5861, %v5862
          %5884 = vadd.xlane.f32.xlu0 %v5883
          %v5885 = vpop.xlane.xlu0 %5884
          %v5886 = vadd.f32 %v5863, %v5864
          %5887 = vadd.xlane.f32.xlu0 %v5886
          %v5888 = vpop.xlane.xlu0 %5887
          %v5889 = vadd.f32 %v5865, %v5866
          %5890 = vadd.xlane.f32.xlu0 %v5889
          %v5891 = vpop.xlane.xlu0 %5890
          %v5892 = vadd.f32 %v5867, %v5868
          %5893 = vadd.xlane.f32.xlu0 %v5892
          %v5894 = vpop.xlane.xlu0 %5893
          %v5895 = vmul.f32 %v5885, %v2768
          %v5896 = vmul.f32 %v5888, %v2768
          %v5897 = vmul.f32 %v5891, %v2768
          %v5898 = vmul.f32 %v5894, %v2768
          %v5899 = vsub.f32 %v5861, %v5895
          %v5900 = vsub.f32 %v5862, %v5895
          %v5901 = vsub.f32 %v5863, %v5896
          %v5902 = vsub.f32 %v5864, %v5896
          %v5903 = vsub.f32 %v5865, %v5897
          %v5904 = vsub.f32 %v5866, %v5897
          %v5905 = vsub.f32 %v5867, %v5898
          %v5906 = vsub.f32 %v5868, %v5898
          %v5907 = vmul.f32 %v5899, %v5899
          %v5908 = vmul.f32 %v5900, %v5900
          %v5909 = vmul.f32 %v5901, %v5901
          %v5910 = vmul.f32 %v5902, %v5902
          %v5911 = vmul.f32 %v5903, %v5903
          %v5912 = vmul.f32 %v5904, %v5904
          %v5913 = vmul.f32 %v5905, %v5905
          %v5914 = vmul.f32 %v5906, %v5906
          %v5915 = vadd.f32 %v5907, %v5908
          %5916 = vadd.xlane.f32.xlu0 %v5915
          %v5917 = vpop.xlane.xlu0 %5916
          %v5918 = vadd.f32 %v5909, %v5910
          %5919 = vadd.xlane.f32.xlu0 %v5918
          %v5920 = vpop.xlane.xlu0 %5919
          %v5921 = vadd.f32 %v5911, %v5912
          %5922 = vadd.xlane.f32.xlu0 %v5921
          %v5923 = vpop.xlane.xlu0 %5922
          %v5924 = vadd.f32 %v5913, %v5914
          %5925 = vadd.xlane.f32.xlu0 %v5924
          %v5926 = vpop.xlane.xlu0 %5925
          %v5927 = vmul.f32 %v5917, %v2768
          %v5928 = vmul.f32 %v5920, %v2768
          %v5929 = vmul.f32 %v5923, %v2768
          %v5930 = vmul.f32 %v5926, %v2768
          %v5931 = vadd.f32 %v5927, 1e-05
          %v5932 = vadd.f32 %v5928, 1e-05
          %v5933 = vadd.f32 %v5929, 1e-05
          %v5934 = vadd.f32 %v5930, 1e-05
          %v5935 = vrsqrt.pop %v5931
          %v5936 = vrsqrt.pop %v5932
          %v5937 = vrsqrt.pop %v5933
          %v5938 = vrsqrt.pop %v5934
          %v5939 = vmul.f32 %v5899, %v5935
          %v5940 = vmul.f32 %v5900, %v5935
          %v5941 = vmul.f32 %v5901, %v5936
          %v5942 = vmul.f32 %v5902, %v5936
          %v5943 = vmul.f32 %v5903, %v5937
          %v5944 = vmul.f32 %v5904, %v5937
          %v5945 = vmul.f32 %v5905, %v5938
          %v5946 = vmul.f32 %v5906, %v5938
          %v5948 = vlaneseq
          %v5949 = vshrl.u32 %v5948, 7
          %v5950 = vsub.s32 0, %v5949
          %v5951 = vrot.slane %v5881, %v5950
          %v5952 = vlaneseq
          %v5953 = vshrl.u32 %v5952, 7
          %v5954 = vsub.s32 1, %v5953
          %v5955 = vrot.slane %v5881, %v5954
          %v5958 = vmul.f32 %v5939, %v5951
          %v5959 = vmul.f32 %v5940, %v5955
          %v5960 = vmul.f32 %v5941, %v5951
          %v5961 = vmul.f32 %v5942, %v5955
          %v5962 = vmul.f32 %v5943, %v5951
          %v5963 = vmul.f32 %v5944, %v5955
          %v5964 = vmul.f32 %v5945, %v5951
          %v5965 = vmul.f32 %v5946, %v5955
          %v5967 = vlaneseq
          %v5968 = vshrl.u32 %v5967, 7
          %v5969 = vsub.s32 0, %v5968
          %v5970 = vrot.slane %v5882, %v5969
          %v5971 = vlaneseq
          %v5972 = vshrl.u32 %v5971, 7
          %v5973 = vsub.s32 1, %v5972
          %v5974 = vrot.slane %v5882, %v5973
          %v5977 = vadd.f32 %v5958, %v5970
          %v5978 = vadd.f32 %v5959, %v5974
          %v5979 = vadd.f32 %v5960, %v5970
          %v5980 = vadd.f32 %v5961, %v5974
          %v5981 = vadd.f32 %v5962, %v5970
          %v5982 = vadd.f32 %v5963, %v5974
          %v5983 = vadd.f32 %v5964, %v5970
          %v5984 = vadd.f32 %v5965, %v5974
          %v5985 = vpack.c.bf16 %v5979, %v5977
          %v5986 = vpack.c.bf16 %v5980, %v5978
          %v5987 = vpack.c.bf16 %v5983, %v5981
          %v5988 = vpack.c.bf16 %v5984, %v5982
          %v5989 = vld [vmem:[#allocation14] sm:$0xf]
          %v5990 = vld [vmem:[#allocation14 + $0x4] sm:$0xf]
          %v5991 = vld [vmem:[#allocation14 + $0x8] sm:$0xf]
          %v5992 = vld [vmem:[#allocation14 + $0xc] sm:$0xf]
          %v5993 = vld [vmem:[#allocation14 + $0x10] sm:$0xf]
          %v5994 = vld [vmem:[#allocation14 + $0x14] sm:$0xf]
          %v5995 = vld [vmem:[#allocation14 + $0x18] sm:$0xf]
          %v5996 = vld [vmem:[#allocation14 + $0x1c] sm:$0xf]
          %v5997 = vld [vmem:[#allocation14 + $0x20] sm:$0xf]
          %v5998 = vld [vmem:[#allocation14 + $0x24] sm:$0xf]
          %v5999 = vld [vmem:[#allocation14 + $0x28] sm:$0xf]
          %v6000 = vld [vmem:[#allocation14 + $0x2c] sm:$0xf]
          %v6001 = vld [vmem:[#allocation14 + $0x30] sm:$0xf]
          %v6002 = vld [vmem:[#allocation14 + $0x34] sm:$0xf]
          %v6003 = vld [vmem:[#allocation14 + $0x38] sm:$0xf]
          %v6004 = vld [vmem:[#allocation14 + $0x3c] sm:$0xf]
          %v6005 = vld [vmem:[#allocation14 + $0x40] sm:$0xf]
          %v6006 = vld [vmem:[#allocation14 + $0x44] sm:$0xf]
          %v6007 = vld [vmem:[#allocation14 + $0x48] sm:$0xf]
          %v6008 = vld [vmem:[#allocation14 + $0x4c] sm:$0xf]
          %v6009 = vld [vmem:[#allocation14 + $0x50] sm:$0xf]
          %v6010 = vld [vmem:[#allocation14 + $0x54] sm:$0xf]
          %v6011 = vld [vmem:[#allocation14 + $0x58] sm:$0xf]
          %v6012 = vld [vmem:[#allocation14 + $0x5c] sm:$0xf]
          %v6013 = vld [vmem:[#allocation14 + $0x60] sm:$0xf]
          %v6014 = vld [vmem:[#allocation14 + $0x64] sm:$0xf]
          %v6015 = vld [vmem:[#allocation14 + $0x68] sm:$0xf]
          %v6016 = vld [vmem:[#allocation14 + $0x6c] sm:$0xf]
          %v6017 = vld [vmem:[#allocation14 + $0x70] sm:$0xf]
          %v6018 = vld [vmem:[#allocation14 + $0x74] sm:$0xf]
          %v6019 = vld [vmem:[#allocation14 + $0x78] sm:$0xf]
          %v6020 = vld [vmem:[#allocation14 + $0x7c] sm:$0xf]
          %v6021 = vld [vmem:[%s18] sm:$0x1]
          %v6023 = vlaneseq
          %v6024 = vshrl.u32 %v6023, 7
          %v6025 = vsub.s32 0, %v6024
          %v6026 = vrot.slane %v6021, %v6025
          %v6060 = vunpack.c.l.b16 %v5989
          %v6061 = vunpack.c.l.b16 %v5990
          %v6062 = vunpack.c.l.b16 %v5991
          %v6063 = vunpack.c.l.b16 %v5992
          %v6064 = vunpack.c.l.b16 %v5993
          %v6065 = vunpack.c.l.b16 %v5994
          %v6066 = vunpack.c.l.b16 %v5995
          %v6067 = vunpack.c.l.b16 %v5996
          %v6068 = vunpack.c.l.b16 %v5997
          %v6069 = vunpack.c.l.b16 %v5998
          %v6070 = vunpack.c.l.b16 %v5999
          %v6071 = vunpack.c.l.b16 %v6000
          %v6072 = vunpack.c.l.b16 %v6001
          %v6073 = vunpack.c.l.b16 %v6002
          %v6074 = vunpack.c.l.b16 %v6003
          %v6075 = vunpack.c.l.b16 %v6004
          %v6076 = vunpack.c.l.b16 %v6005
          %v6077 = vunpack.c.l.b16 %v6006
          %v6078 = vunpack.c.l.b16 %v6007
          %v6079 = vunpack.c.l.b16 %v6008
          %v6080 = vunpack.c.l.b16 %v6009
          %v6081 = vunpack.c.l.b16 %v6010
          %v6082 = vunpack.c.l.b16 %v6011
          %v6083 = vunpack.c.l.b16 %v6012
          %v6084 = vunpack.c.l.b16 %v6013
          %v6085 = vunpack.c.l.b16 %v6014
          %v6086 = vunpack.c.l.b16 %v6015
          %v6087 = vunpack.c.l.b16 %v6016
          %v6088 = vunpack.c.l.b16 %v6017
          %v6089 = vunpack.c.l.b16 %v6018
          %v6090 = vunpack.c.l.b16 %v6019
          %v6091 = vunpack.c.l.b16 %v6020
          %v6092 = vpack.c.b16 %v6061, %v6060
          %v6093 = vpack.c.b16 %v6063, %v6062
          %v6094 = vpack.c.b16 %v6065, %v6064
          %v6095 = vpack.c.b16 %v6067, %v6066
          %v6096 = vpack.c.b16 %v6069, %v6068
          %v6097 = vpack.c.b16 %v6071, %v6070
          %v6098 = vpack.c.b16 %v6073, %v6072
          %v6099 = vpack.c.b16 %v6075, %v6074
          %v6100 = vpack.c.b16 %v6077, %v6076
          %v6101 = vpack.c.b16 %v6079, %v6078
          %v6102 = vpack.c.b16 %v6081, %v6080
          %v6103 = vpack.c.b16 %v6083, %v6082
          %v6104 = vpack.c.b16 %v6085, %v6084
          %v6105 = vpack.c.b16 %v6087, %v6086
          %v6106 = vpack.c.b16 %v6089, %v6088
          %v6107 = vpack.c.b16 %v6091, %v6090
          %6124 = vmatprep.subr.bf16.mxu0 0
          %6125 = vmatpush1.bf16.msra.mxu0 %v6092
          %6126 = vmatprep.subr.bf16.mxu0 0
          %6127 = vmatpush1.bf16.msra.mxu0 %v6093
          %6128 = vmatprep.subr.bf16.mxu0 0
          %6129 = vmatpush1.bf16.msra.mxu0 %v6094
          %6130 = vmatprep.subr.bf16.mxu0 0
          %6131 = vmatpush1.bf16.msra.mxu0 %v6095
          %6132 = vmatprep.subr.bf16.mxu0 0
          %6133 = vmatpush1.bf16.msra.mxu0 %v6096
          %6134 = vmatprep.subr.bf16.mxu0 0
          %6135 = vmatpush1.bf16.msra.mxu0 %v6097
          %6136 = vmatprep.subr.bf16.mxu0 0
          %6137 = vmatpush1.bf16.msra.mxu0 %v6098
          %6138 = vmatprep.subr.bf16.mxu0 0
          %6139 = vmatpush1.bf16.msra.mxu0 %v6099
          %6140 = vmatprep.subr.bf16.mxu0 0
          %6141 = vmatpush1.bf16.msra.mxu0 %v6100
          %6142 = vmatprep.subr.bf16.mxu0 0
          %6143 = vmatpush1.bf16.msra.mxu0 %v6101
          %6144 = vmatprep.subr.bf16.mxu0 0
          %6145 = vmatpush1.bf16.msra.mxu0 %v6102
          %6146 = vmatprep.subr.bf16.mxu0 0
          %6147 = vmatpush1.bf16.msra.mxu0 %v6103
          %6148 = vmatprep.subr.bf16.mxu0 0
          %6149 = vmatpush1.bf16.msra.mxu0 %v6104
          %6150 = vmatprep.subr.bf16.mxu0 0
          %6151 = vmatpush1.bf16.msra.mxu0 %v6105
          %6152 = vmatprep.subr.bf16.mxu0 0
          %6153 = vmatpush1.bf16.msra.mxu0 %v6106
          %6154 = vmatprep.subr.bf16.mxu0 0
          %6155 = vmatpush1.bf16.msra.mxu0 %v6107
          %6156 = vmatprep.mubr.bf16.mxu0 %v5986
          %6157 = vmatmul.mubr.bf16.gmra.mrb[0].mxu0 %v5985
          %v6158 = vpop.f32.mrb[0].mxu0
          %v6159 = vadd.f32 %v6026, %v6158
          %v6160 = vpop.f32.mrb[0].mxu0
          %v6161 = vpop.f32.mrb[0].mxu0
          %v6162 = vadd.f32 %v6026, %v6161
          %v6163 = vpop.f32.mrb[0].mxu0
          %6164 = vmatprep.mubr.bf16.mxu0 %v5988
          %6165 = vmatmul.mubr.bf16.gmra.mrb[0].mxu0 %v5987
          %v6166 = vpop.f32.mrb[0].mxu0
          %v6167 = vadd.f32 %v6026, %v6166
          %v6168 = vpop.f32.mrb[0].mxu0
          %v6169 = vpop.f32.mrb[0].mxu0
          %v6170 = vadd.f32 %v6026, %v6169
          %v6171 = vpop.f32.mrb[0].mxu0
          %6172 = vdwg.mxu0
          %6173 = vst [vmem:[#allocation15] sm:$0xff] %v6159
          %6174 = vst [vmem:[#allocation15 + $0x8] sm:$0xff] %v6162
          %6175 = vst [vmem:[#allocation15 + $0x10] sm:$0xff] %v6167
          %6176 = vst [vmem:[#allocation15 + $0x18] sm:$0xff] %v6170
        $region132: #{tpu_custom_call.1} parent=95 // pred_fallthru
          _
        // Predicated region
        $region133: #{tpu_custom_call.1} parent=95 // pred_check
          %p6177 = pneg %p513
        $region134: #{tpu_custom_call.1} parent=95 // pred_check_branch
          %6179 = sbr.rel (%p6177) target = $region136
        $region135: #{tpu_custom_call.1} parent=95 // pred_region
          %s6181 = ssub.s32 512, 512
          %6182 = vsyncadd [#allocation5], %s6181
          %s6183 = sshll.u32 [#allocation15], 4
          %s6184 = int_to_ptr.vmem [resolvable:$true] %s6183
          %6189 = dma.vmem_to_hbm [thread:$0]  %s6184, 512, %s19, [#allocation5], 128, 128, 8
        $region136: #{tpu_custom_call.1} parent=95 // pred_fallthru
          _
        // Predicated region
        $region137: #{tpu_custom_call.1} parent=95 // pred_check
          %p6190 = pneg %p513
        $region138: #{tpu_custom_call.1} parent=95 // pred_check_branch
          %6192 = sbr.rel (%p6190) target = $region140
        $region139: #{tpu_custom_call.1} parent=95 // pred_region
          %6193 = dma.done [#allocation5], 512
        $region140: #{tpu_custom_call.1} parent=95 // pred_fallthru
          _
      $region96: #{tpu_custom_call.1} parent=5 // pred_fallthru
        _
      %p6194 = scmp.le.s32.totalorder 2, %s36
      // Predicated region
      $region141: #{tpu_custom_call.1} parent=5 // pred_check
        %p6195 = pneg %p6194
      $region142: #{tpu_custom_call.1} parent=5 // pred_check_branch
        %6197 = sbr.rel (%p6195) target = $region144
      $region143: #{tpu_custom_call.1} parent=5 // pred_region
        %s6198 = ssub.s32 %s36, 2
      $region144: #{tpu_custom_call.1} parent=5 // pred_fallthru
        _
    $region6: #{tpu_custom_call.1} parent=1 // loop_footer
      %s40 = sadd.s32 1, %s36
    $region7: #{tpu_custom_call.1} parent=1 // loop_footer_branch
      %35 = sbr.rel target = $region3
    $region8: #{tpu_custom_call.1} parent=1 // loop_exit
      _
    %6199 = vsyncpa [#allocation4], 1
    %s6200 = scalar_lea.sflag [#allocation4], 1
    %6201 = vsyncpa %s6200, 1
    %6202 = vsyncpa [#allocation7], 1
    %s6203 = scalar_lea.sflag [#allocation7], 1
    %6204 = vsyncpa %s6203, 1
    %6205 = vsyncpa [#allocation10], 1
    %s6206 = scalar_lea.sflag [#allocation10], 1
    %6207 = vsyncpa %s6206, 1
    %6208 = vsyncpa [#allocation13], 1
    %s6209 = scalar_lea.sflag [#allocation13], 1
    %6210 = vsyncpa %s6209, 1
    %6211 = vsyncpa [#allocation5], 1
    %s6212 = scalar_lea.sflag [#allocation5], 1
    %6213 = vsyncpa %s6212, 1

</llo_original>
